<compile_context>
chip_gen: v7x
topology: tpu7x:2x2x1
jax: 0.10.0
libtpu: 0.0.40
codegen_flags: <defaults>
</compile_context>

<pallas_src>
import functools

import jax
import jax.numpy as jnp
from jax import lax
from jax.experimental import pallas as pl
from jax.experimental.pallas import tpu as pltpu


# ----------------------------------------------------------------------------
# Small helpers for padding / weight repacking (run once, outside the kernel).
# ----------------------------------------------------------------------------
def _round_up(x, m):
    return (x + m - 1) // m * m


def _pad2(w, rows, cols):
    return jnp.pad(w, ((0, rows - w.shape[0]), (0, cols - w.shape[1])))


def _pad1(v, n):
    return jnp.pad(v, (0, n - v.shape[0]))


def _cat_gate_weights(w3, rows, hp):
    """w3: [3, D_in, H] -> [rows, 3*hp], each gate zero-padded to its own 128-block."""
    return jnp.concatenate([_pad2(w3[g], rows, hp) for g in range(3)], axis=1)


def _cat_gate_bias(b3, hp):
    """b3: [3, H] -> [1, 3*hp]."""
    return jnp.concatenate([_pad1(b3[g], hp) for g in range(3)], axis=0)[None, :]


def _prepare_kernel_params(p, d_pad, h_pad):
    """Repack PyTorch-style per-gate weights into fused, padded kernel weights."""
    # Encoder: fused input/hidden gate weights, pre-added r/z biases.
    enc_wih = _cat_gate_weights(p["enc_wih"], d_pad, h_pad)          # [Dp, 3Hp]
    enc_whh = _cat_gate_weights(p["enc_whh"], h_pad, h_pad)          # [Hp, 3Hp]
    enc_bi = _cat_gate_bias(
        jnp.stack([p["enc_bih"][0] + p["enc_bhh"][0],
                   p["enc_bih"][1] + p["enc_bhh"][1],
                   p["enc_bih"][2]]), h_pad)                         # [1, 3Hp]
    enc_bhn = _pad1(p["enc_bhh"][2], h_pad)[None, :]                 # [1, Hp]
    enc_wtr = _pad2(p["enc_wtr"], h_pad, h_pad)                      # [Hp, Hp]
    enc_btr = _pad2(p["enc_btr"], 1, h_pad)                          # [1, Hp]

    # Decoder: same fusion, plus output projection folded into next-step gates.
    dec_wih = _cat_gate_weights(p["dec_wih"], h_pad, h_pad)          # [Hp, 3Hp]
    dec_whh = _cat_gate_weights(p["dec_whh"], h_pad, h_pad)          # [Hp, 3Hp]
    dec_bi = _cat_gate_bias(
        jnp.stack([p["dec_bih"][0] + p["dec_bhh"][0],
                   p["dec_bih"][1] + p["dec_bhh"][1],
                   p["dec_bih"][2]]), h_pad)                         # [1, 3Hp]
    dec_bhn = _pad1(p["dec_bhh"][2], h_pad)[None, :]                 # [1, Hp]

    wout = _pad2(p["dec_wout"], h_pad, h_pad)                        # [Hp, Hp]
    bout = _pad2(p["dec_bout"], 1, h_pad)                            # [1, Hp]
    # y_t = h @ W_out + b_out; gi_{t+1} = y_t @ Wih_cat + bi  ==>  fold:
    dec_wf = jnp.concatenate([wout, wout @ dec_wih], axis=1)         # [Hp, 4Hp]
    dec_bf = jnp.concatenate([bout, bout @ dec_wih + dec_bi], axis=1)  # [1, 4Hp]

    return dict(enc_wih=enc_wih, enc_whh=enc_whh, enc_bi=enc_bi, enc_bhn=enc_bhn,
                enc_wtr=enc_wtr, enc_btr=enc_btr,
                dec_wih=dec_wih, dec_whh=dec_whh, dec_bi=dec_bi, dec_bhn=dec_bhn,
                dec_wf=dec_wf, dec_bf=dec_bf)


# ----------------------------------------------------------------------------
# Fused Seq2Seq kernel: single invocation, in-body unrolled recurrences.
# Shapes inside the kernel are padded: Bp = round_up(B, 8), Hp/Dp multiples of 128.
# ----------------------------------------------------------------------------
def _seq2seq_kernel(
    x_ref,                                            # [T, Bp, Dp]
    enc_wih_ref, enc_whh_ref, enc_bi_ref, enc_bhn_ref,  # [Dp,3Hp],[Hp,3Hp],[1,3Hp],[1,Hp]
    enc_wtr_ref, enc_btr_ref,                         # [Hp, Hp], [1, Hp]
    dec_wih_ref, dec_whh_ref, dec_bi_ref, dec_bhn_ref,  # [Hp,3Hp],[Hp,3Hp],[1,3Hp],[1,Hp]
    dec_wf_ref, dec_bf_ref,                           # [Hp, 4Hp], [1, 4Hp]
    enc_out_ref, dec_out_ref,                         # [T, Bp, Hp], [Td, Bp, Hp]
    gi_scratch,                                       # VMEM [T*Bp, 3Hp]
):
    T, Bp, Dp = x_ref.shape
    Hp = enc_whh_ref.shape[0]
    Td = dec_out_ref.shape[0]

    def gru_gates(gi, gh, bhn, h):
        # PyTorch GRUCell gate order r, z, n.
        r = jax.nn.sigmoid(gi[:, :Hp] + gh[:, :Hp])
        z = jax.nn.sigmoid(gi[:, Hp:2 * Hp] + gh[:, Hp:2 * Hp])
        n = jnp.tanh(gi[:, 2 * Hp:] + r * (gh[:, 2 * Hp:] + bhn))
        return (1.0 - z) * n + z * h

    # ---------------- Encoder ----------------
    # Hoisted input projection: one [T*Bp, Dp] @ [Dp, 3Hp] MXU matmul for all steps.
    x_all = x_ref[...].reshape(T * Bp, Dp)
    gi_scratch[...] = (
        jnp.dot(x_all, enc_wih_ref[...], preferred_element_type=jnp.float32)
        + enc_bi_ref[...]
    )

    enc_whh = enc_whh_ref[...]
    enc_bhn = enc_bhn_ref[...]

    def enc_body(t, h):
        row = pl.multiple_of(t * Bp, Bp)
        gi = gi_scratch[pl.ds(row, Bp), :]            # [Bp, 3Hp]
        gh = jnp.dot(h, enc_whh, preferred_element_type=jnp.float32)
        h_new = gru_gates(gi, gh, enc_bhn, h)
        enc_out_ref[t] = h_new                        # encoder_outputs[t]
        return h_new

    h_enc = lax.fori_loop(0, T, enc_body,
                          jnp.zeros((Bp, Hp), jnp.float32), unroll=True)

    # encoder_transform = tanh(h_final @ W_tr + b_tr)
    h_tr = jnp.tanh(
        jnp.dot(h_enc, enc_wtr_ref[...], preferred_element_type=jnp.float32)
        + enc_btr_ref[...])

    # ---------------- Decoder ----------------
    dec_whh = dec_whh_ref[...]
    dec_bhn = dec_bhn_ref[...]
    dec_wf = dec_wf_ref[...]
    dec_bf = dec_bf_ref[...]

    # Input gates for step 0 (input = encoder_transform).
    gi0 = (jnp.dot(h_tr, dec_wih_ref[...], preferred_element_type=jnp.float32)
           + dec_bi_ref[...])

    def dec_body(t, carry):
        h, gi = carry
        gh = jnp.dot(h, dec_whh, preferred_element_type=jnp.float32)
        h_new = gru_gates(gi, gh, dec_bhn, h)
        # Fused projection: y_t (first Hp lanes) and next-step gi (remaining 3Hp).
        yg = jnp.dot(h_new, dec_wf, preferred_element_type=jnp.float32) + dec_bf
        dec_out_ref[t] = yg[:, :Hp]                   # decoder_outputs[t]
        return (h_new, yg[:, Hp:])

    lax.fori_loop(0, Td, dec_body, (h_enc, gi0), unroll=True)


# ----------------------------------------------------------------------------
# Public wrapper: batch-major in/out, padding + weight repack in plain JAX.
# ----------------------------------------------------------------------------
@functools.partial(jax.jit, static_argnames=("T_dec",))
def seq2seq_forward(x_btd, params, T_dec):
    """x_btd: [B, T, Din] float32.

    Returns (encoder_outputs [B, T, H], decoder_outputs [B, T_dec, H]),
    matching `return (encoder_outputs, decoder_outputs)` of the PyTorch module.
    """
    B, T, Din = x_btd.shape
    H = params["enc_whh"].shape[-1]
    Bp = _round_up(B, 8)          # sublane multiple
    Hp = _round_up(H, 128)        # lane multiple
    Dp = _round_up(Din, 128)

    kp = _prepare_kernel_params(params, Dp, Hp)

    # Time-major, zero-padded input for the kernel.
    x_tbd = jnp.transpose(x_btd, (1, 0, 2))
    x_pad = jnp.pad(x_tbd, ((0, 0), (0, Bp - B), (0, Dp - Din)))

    enc_out_p, dec_out_p = pl.pallas_call(
        _seq2seq_kernel,
        out_shape=(jax.ShapeDtypeStruct((T, Bp, Hp), jnp.float32),
                   jax.ShapeDtypeStruct((T_dec, Bp, Hp), jnp.float32)),
        scratch_shapes=[pltpu.VMEM((T * Bp, 3 * Hp), jnp.float32)],
    )(x_pad,
      kp["enc_wih"], kp["enc_whh"], kp["enc_bi"], kp["enc_bhn"],
      kp["enc_wtr"], kp["enc_btr"],
      kp["dec_wih"], kp["dec_whh"], kp["dec_bi"], kp["dec_bhn"],
      kp["dec_wf"], kp["dec_bf"])

    enc_out = jnp.transpose(enc_out_p[:, :B, :H], (1, 0, 2))
    dec_out = jnp.transpose(dec_out_p[:, :B, :H], (1, 0, 2))
    return enc_out, dec_out


# ----------------------------------------------------------------------------
# Synthetic parameters (PyTorch-style per-gate layout, gate order r, z, n).
# ----------------------------------------------------------------------------
def init_params(key, D_in, H):
    ks = jax.random.split(key, 10)
    s = 0.1
    return {
        "enc_wih":  s * jax.random.normal(ks[0], (3, D_in, H), jnp.float32),
        "enc_whh":  s * jax.random.normal(ks[1], (3, H, H), jnp.float32),
        "enc_bih":  s * jax.random.normal(ks[2], (3, H), jnp.float32),
        "enc_bhh":  s * jax.random.normal(ks[3], (3, H), jnp.float32),
        "enc_wtr":  s * jax.random.normal(ks[4], (H, H), jnp.float32),
        "enc_btr":  s * jax.random.normal(ks[5], (1, H), jnp.float32),
        "dec_wih":  s * jax.random.normal(ks[6], (3, H, H), jnp.float32),
        "dec_whh":  s * jax.random.normal(ks[7], (3, H, H), jnp.float32),
        "dec_bih":  s * jax.random.normal(ks[8], (3, H), jnp.float32),
        "dec_bhh":  s * jax.random.normal(ks[9], (3, H), jnp.float32),
        "dec_wout": s * jax.random.normal(jax.random.fold_in(key, 100), (H, H), jnp.float32),
        "dec_bout": s * jax.random.normal(jax.random.fold_in(key, 101), (1, H), jnp.float32),
    }


# Pure-JAX reference with the ORIGINAL (unfused, unpadded) weights.
def _reference(x_btd, params, T_dec):
    x = jnp.transpose(x_btd, (1, 0, 2))
    T, B, _ = x.shape
    H = params["enc_whh"].shape[-1]

    def cell(x_t, h, wih, whh, bih, bhh):
        r = jax.nn.sigmoid(x_t @ wih[0] + bih[0] + h @ whh[0] + bhh[0])
        z = jax.nn.sigmoid(x_t @ wih[1] + bih[1] + h @ whh[1] + bhh[1])
        n = jnp.tanh(x_t @ wih[2] + bih[2] + r * (h @ whh[2] + bhh[2]))
        return (1.0 - z) * n + z * h

    h = jnp.zeros((B, H), jnp.float32)
    enc_out = []
    for t in range(T):
        h = cell(x[t], h, params["enc_wih"], params["enc_whh"],
                 params["enc_bih"], params["enc_bhh"])
        enc_out.append(h)
    enc_out = jnp.stack(enc_out)
    h_tr = jnp.tanh(h @ params["enc_wtr"] + params["enc_btr"])

    dh, dx = h, h_tr
    dec_out = []
    for _ in range(T_dec):
        dh = cell(dx, dh, params["dec_wih"], params["dec_whh"],
                  params["dec_bih"], params["dec_bhh"])
        y = dh @ params["dec_wout"] + params["dec_bout"]
        dec_out.append(y)
        dx = y
    dec_out = jnp.stack(dec_out)
    return jnp.transpose(enc_out, (1, 0, 2)), jnp.transpose(dec_out, (1, 0, 2))


if __name__ == "__main__":
    B, T, D_in, H, T_dec = 2, 8, 16, 32, 8
    key = jax.random.PRNGKey(0)
    k_x, k_p = jax.random.split(key)
    x = jax.random.normal(k_x, (B, T, D_in), jnp.float32)
    params = init_params(k_p, D_in, H)

    enc_out, dec_out = seq2seq_forward(x, params, T_dec)
    jax.block_until_ready((enc_out, dec_out))

    ref_enc, ref_dec = _reference(x, params, T_dec)
    assert enc_out.shape == (B, T, H) and dec_out.shape == (B, T_dec, H)
    # Slightly relaxed vs bit-exact: gate fusion / decoder W_out-folding reassociate
    # fp adds/matmuls (exact in real arithmetic).
    assert jnp.allclose(enc_out, ref_enc, atol=2e-5, rtol=2e-5), \
        float(jnp.max(jnp.abs(enc_out - ref_enc)))
    assert jnp.allclose(dec_out, ref_dec, atol=2e-5, rtol=2e-5), \
        float(jnp.max(jnp.abs(dec_out - ref_dec)))

    print("KERNEL_OK")
</pallas_src>

<mosaic_0001>
module attributes {stable_mosaic.version = 11 : i64} {
  func.func @_seq2seq_kernel(%arg0: memref<8x8x128xf32, #tpu.memory_space<vmem>>, %arg1: memref<128x384xf32, #tpu.memory_space<vmem>>, %arg2: memref<128x384xf32, #tpu.memory_space<vmem>>, %arg3: memref<1x384xf32, #tpu.memory_space<vmem>>, %arg4: memref<1x128xf32, #tpu.memory_space<vmem>>, %arg5: memref<128x128xf32, #tpu.memory_space<vmem>>, %arg6: memref<1x128xf32, #tpu.memory_space<vmem>>, %arg7: memref<128x384xf32, #tpu.memory_space<vmem>>, %arg8: memref<128x384xf32, #tpu.memory_space<vmem>>, %arg9: memref<1x384xf32, #tpu.memory_space<vmem>>, %arg10: memref<1x128xf32, #tpu.memory_space<vmem>>, %arg11: memref<128x512xf32, #tpu.memory_space<vmem>>, %arg12: memref<1x512xf32, #tpu.memory_space<vmem>>, %arg13: memref<8x8x128xf32, #tpu.memory_space<vmem>>, %arg14: memref<8x8x128xf32, #tpu.memory_space<vmem>>, %arg15: memref<64x384xf32, #tpu.memory_space<vmem>>) attributes {dimension_semantics = [], scalar_prefetch = 0 : i64, scratch_operands = 1 : i64, tpu.core_type = #tpu.core_type<tc>} {
    %c0 = arith.constant 0 : index
    %c0_0 = arith.constant 0 : index
    %c0_1 = arith.constant 0 : index
    %0 = vector.load %arg0[%c0, %c0_0, %c0_1] : memref<8x8x128xf32, #tpu.memory_space<vmem>>, vector<8x8x128xf32>
    %1 = vector.shape_cast %0 : vector<8x8x128xf32> to vector<64x128xf32>
    %c0_2 = arith.constant 0 : index
    %c0_3 = arith.constant 0 : index
    %2 = vector.load %arg1[%c0_2, %c0_3] : memref<128x384xf32, #tpu.memory_space<vmem>>, vector<128x384xf32>
    %cst = arith.constant dense<0.000000e+00> : vector<64x384xf32>
    %3 = tpu.matmul %1, %2, %cst {dimension_numbers = #tpu.dot_dimension_numbers<[1], [0], [0], [1], [0, 0, 1, 1], [], []>} : vector<64x128xf32>, vector<128x384xf32>, vector<64x384xf32> -> vector<64x384xf32>
    %c0_4 = arith.constant 0 : index
    %c0_5 = arith.constant 0 : index
    %4 = vector.load %arg3[%c0_4, %c0_5] : memref<1x384xf32, #tpu.memory_space<vmem>>, vector<1x384xf32>
    %5 = vector.broadcast %4 : vector<1x384xf32> to vector<64x384xf32>
    %6 = arith.addf %3, %5 : vector<64x384xf32>
    %c0_6 = arith.constant 0 : index
    %c0_7 = arith.constant 0 : index
    %7 = vector.load %arg15[%c0_6, %c0_7] : memref<64x384xf32, #tpu.memory_space<vmem>>, vector<64x384xf32>
    tpu.vector_store %arg15[%c0_6, %c0_7], %6 {strides = array<i32>} : memref<64x384xf32, #tpu.memory_space<vmem>>, vector<64x384xf32>,
    %c0_8 = arith.constant 0 : index
    %c0_9 = arith.constant 0 : index
    %8 = vector.load %arg2[%c0_8, %c0_9] : memref<128x384xf32, #tpu.memory_space<vmem>>, vector<128x384xf32>
    %c0_10 = arith.constant 0 : index
    %c0_11 = arith.constant 0 : index
    %9 = vector.load %arg4[%c0_10, %c0_11] : memref<1x128xf32, #tpu.memory_space<vmem>>, vector<1x128xf32>
    %cst_12 = arith.constant 0.000000e+00 : f32
    %10 = vector.broadcast %cst_12 : f32 to vector<8x128xf32>
    %c0_i32 = arith.constant 0 : i32
    %c8_i32 = arith.constant 8 : i32
    %11 = arith.muli %c0_i32, %c8_i32 : i32
    %12 = tpu.assume_multiple %11, 8 : i32
    %13 = arith.index_cast %12 : i32 to index
    %c0_13 = arith.constant 0 : index
    %14 = vector.load %arg15[%13, %c0_13] : memref<64x384xf32, #tpu.memory_space<vmem>>, vector<8x384xf32>
    %cst_14 = arith.constant dense<0.000000e+00> : vector<8x384xf32>
    %15 = tpu.matmul %10, %8, %cst_14 {dimension_numbers = #tpu.dot_dimension_numbers<[1], [0], [0], [1], [0, 0, 1, 1], [], []>} : vector<8x128xf32>, vector<128x384xf32>, vector<8x384xf32> -> vector<8x384xf32>
    %16 = vector.extract_strided_slice %14 {offsets = [0, 0], sizes = [8, 128], strides = [1, 1]} : vector<8x384xf32> to vector<8x128xf32>
    %17 = vector.extract_strided_slice %15 {offsets = [0, 0], sizes = [8, 128], strides = [1, 1]} : vector<8x384xf32> to vector<8x128xf32>
    %18 = arith.addf %16, %17 : vector<8x128xf32>
    %19 = arith.negf %18 : vector<8x128xf32>
    %20 = math.exp %19 : vector<8x128xf32>
    %cst_15 = arith.constant 1.000000e+00 : f32
    %21 = vector.broadcast %cst_15 : f32 to vector<8x128xf32>
    %22 = arith.addf %21, %20 : vector<8x128xf32>
    %23 = arith.divf %21, %22 : vector<8x128xf32>
    %24 = vector.extract_strided_slice %14 {offsets = [0, 128], sizes = [8, 128], strides = [1, 1]} : vector<8x384xf32> to vector<8x128xf32>
    %25 = vector.extract_strided_slice %15 {offsets = [0, 128], sizes = [8, 128], strides = [1, 1]} : vector<8x384xf32> to vector<8x128xf32>
    %26 = arith.addf %24, %25 : vector<8x128xf32>
    %27 = arith.negf %26 : vector<8x128xf32>
    %28 = math.exp %27 : vector<8x128xf32>
    %cst_16 = arith.constant 1.000000e+00 : f32
    %29 = vector.broadcast %cst_16 : f32 to vector<8x128xf32>
    %30 = arith.addf %29, %28 : vector<8x128xf32>
    %31 = arith.divf %29, %30 : vector<8x128xf32>
    %32 = vector.extract_strided_slice %14 {offsets = [0, 256], sizes = [8, 128], strides = [1, 1]} : vector<8x384xf32> to vector<8x128xf32>
    %33 = vector.extract_strided_slice %15 {offsets = [0, 256], sizes = [8, 128], strides = [1, 1]} : vector<8x384xf32> to vector<8x128xf32>
    %34 = vector.broadcast %9 : vector<1x128xf32> to vector<8x128xf32>
    %35 = arith.addf %33, %34 : vector<8x128xf32>
    %36 = arith.mulf %23, %35 : vector<8x128xf32>
    %37 = arith.addf %32, %36 : vector<8x128xf32>
    %38 = math.tanh %37 : vector<8x128xf32>
    %cst_17 = arith.constant 1.000000e+00 : f32
    %39 = vector.broadcast %cst_17 : f32 to vector<8x128xf32>
    %40 = arith.subf %39, %31 : vector<8x128xf32>
    %41 = arith.mulf %40, %38 : vector<8x128xf32>
    %42 = arith.mulf %31, %10 : vector<8x128xf32>
    %43 = arith.addf %41, %42 : vector<8x128xf32>
    %44 = arith.index_cast %c0_i32 : i32 to index
    %c0_18 = arith.constant 0 : index
    %c0_19 = arith.constant 0 : index
    %45 = vector.load %arg13[%44, %c0_18, %c0_19] : memref<8x8x128xf32, #tpu.memory_space<vmem>>, vector<1x8x128xf32>
    %46 = vector.shape_cast %45 : vector<1x8x128xf32> to vector<8x128xf32>
    %47 = vector.shape_cast %43 : vector<8x128xf32> to vector<1x8x128xf32>
    tpu.vector_store %arg13[%44, %c0_18, %c0_19], %47 {strides = array<i32>} : memref<8x8x128xf32, #tpu.memory_space<vmem>>, vector<1x8x128xf32>,
    %c1_i32 = arith.constant 1 : i32
    %c8_i32_20 = arith.constant 8 : i32
    %48 = arith.muli %c1_i32, %c8_i32_20 : i32
    %49 = tpu.assume_multiple %48, 8 : i32
    %50 = arith.index_cast %49 : i32 to index
    %c0_21 = arith.constant 0 : index
    %51 = vector.load %arg15[%50, %c0_21] : memref<64x384xf32, #tpu.memory_space<vmem>>, vector<8x384xf32>
    %cst_22 = arith.constant dense<0.000000e+00> : vector<8x384xf32>
    %52 = tpu.matmul %43, %8, %cst_22 {dimension_numbers = #tpu.dot_dimension_numbers<[1], [0], [0], [1], [0, 0, 1, 1], [], []>} : vector<8x128xf32>, vector<128x384xf32>, vector<8x384xf32> -> vector<8x384xf32>
    %53 = vector.extract_strided_slice %51 {offsets = [0, 0], sizes = [8, 128], strides = [1, 1]} : vector<8x384xf32> to vector<8x128xf32>
    %54 = vector.extract_strided_slice %52 {offsets = [0, 0], sizes = [8, 128], strides = [1, 1]} : vector<8x384xf32> to vector<8x128xf32>
    %55 = arith.addf %53, %54 : vector<8x128xf32>
    %56 = arith.negf %55 : vector<8x128xf32>
    %57 = math.exp %56 : vector<8x128xf32>
    %cst_23 = arith.constant 1.000000e+00 : f32
    %58 = vector.broadcast %cst_23 : f32 to vector<8x128xf32>
    %59 = arith.addf %58, %57 : vector<8x128xf32>
    %60 = arith.divf %58, %59 : vector<8x128xf32>
    %61 = vector.extract_strided_slice %51 {offsets = [0, 128], sizes = [8, 128], strides = [1, 1]} : vector<8x384xf32> to vector<8x128xf32>
    %62 = vector.extract_strided_slice %52 {offsets = [0, 128], sizes = [8, 128], strides = [1, 1]} : vector<8x384xf32> to vector<8x128xf32>
    %63 = arith.addf %61, %62 : vector<8x128xf32>
    %64 = arith.negf %63 : vector<8x128xf32>
    %65 = math.exp %64 : vector<8x128xf32>
    %cst_24 = arith.constant 1.000000e+00 : f32
    %66 = vector.broadcast %cst_24 : f32 to vector<8x128xf32>
    %67 = arith.addf %66, %65 : vector<8x128xf32>
    %68 = arith.divf %66, %67 : vector<8x128xf32>
    %69 = vector.extract_strided_slice %51 {offsets = [0, 256], sizes = [8, 128], strides = [1, 1]} : vector<8x384xf32> to vector<8x128xf32>
    %70 = vector.extract_strided_slice %52 {offsets = [0, 256], sizes = [8, 128], strides = [1, 1]} : vector<8x384xf32> to vector<8x128xf32>
    %71 = vector.broadcast %9 : vector<1x128xf32> to vector<8x128xf32>
    %72 = arith.addf %70, %71 : vector<8x128xf32>
    %73 = arith.mulf %60, %72 : vector<8x128xf32>
    %74 = arith.addf %69, %73 : vector<8x128xf32>
    %75 = math.tanh %74 : vector<8x128xf32>
    %cst_25 = arith.constant 1.000000e+00 : f32
    %76 = vector.broadcast %cst_25 : f32 to vector<8x128xf32>
    %77 = arith.subf %76, %68 : vector<8x128xf32>
    %78 = arith.mulf %77, %75 : vector<8x128xf32>
    %79 = arith.mulf %68, %43 : vector<8x128xf32>
    %80 = arith.addf %78, %79 : vector<8x128xf32>
    %81 = arith.index_cast %c1_i32 : i32 to index
    %c0_26 = arith.constant 0 : index
    %c0_27 = arith.constant 0 : index
    %82 = vector.load %arg13[%81, %c0_26, %c0_27] : memref<8x8x128xf32, #tpu.memory_space<vmem>>, vector<1x8x128xf32>
    %83 = vector.shape_cast %82 : vector<1x8x128xf32> to vector<8x128xf32>
    %84 = vector.shape_cast %80 : vector<8x128xf32> to vector<1x8x128xf32>
    tpu.vector_store %arg13[%81, %c0_26, %c0_27], %84 {strides = array<i32>} : memref<8x8x128xf32, #tpu.memory_space<vmem>>, vector<1x8x128xf32>,
    %c2_i32 = arith.constant 2 : i32
    %c8_i32_28 = arith.constant 8 : i32
    %85 = arith.muli %c2_i32, %c8_i32_28 : i32
    %86 = tpu.assume_multiple %85, 8 : i32
    %87 = arith.index_cast %86 : i32 to index
    %c0_29 = arith.constant 0 : index
    %88 = vector.load %arg15[%87, %c0_29] : memref<64x384xf32, #tpu.memory_space<vmem>>, vector<8x384xf32>
    %cst_30 = arith.constant dense<0.000000e+00> : vector<8x384xf32>
    %89 = tpu.matmul %80, %8, %cst_30 {dimension_numbers = #tpu.dot_dimension_numbers<[1], [0], [0], [1], [0, 0, 1, 1], [], []>} : vector<8x128xf32>, vector<128x384xf32>, vector<8x384xf32> -> vector<8x384xf32>
    %90 = vector.extract_strided_slice %88 {offsets = [0, 0], sizes = [8, 128], strides = [1, 1]} : vector<8x384xf32> to vector<8x128xf32>
    %91 = vector.extract_strided_slice %89 {offsets = [0, 0], sizes = [8, 128], strides = [1, 1]} : vector<8x384xf32> to vector<8x128xf32>
    %92 = arith.addf %90, %91 : vector<8x128xf32>
    %93 = arith.negf %92 : vector<8x128xf32>
    %94 = math.exp %93 : vector<8x128xf32>
    %cst_31 = arith.constant 1.000000e+00 : f32
    %95 = vector.broadcast %cst_31 : f32 to vector<8x128xf32>
    %96 = arith.addf %95, %94 : vector<8x128xf32>
    %97 = arith.divf %95, %96 : vector<8x128xf32>
    %98 = vector.extract_strided_slice %88 {offsets = [0, 128], sizes = [8, 128], strides = [1, 1]} : vector<8x384xf32> to vector<8x128xf32>
    %99 = vector.extract_strided_slice %89 {offsets = [0, 128], sizes = [8, 128], strides = [1, 1]} : vector<8x384xf32> to vector<8x128xf32>
    %100 = arith.addf %98, %99 : vector<8x128xf32>
    %101 = arith.negf %100 : vector<8x128xf32>
    %102 = math.exp %101 : vector<8x128xf32>
    %cst_32 = arith.constant 1.000000e+00 : f32
    %103 = vector.broadcast %cst_32 : f32 to vector<8x128xf32>
    %104 = arith.addf %103, %102 : vector<8x128xf32>
    %105 = arith.divf %103, %104 : vector<8x128xf32>
    %106 = vector.extract_strided_slice %88 {offsets = [0, 256], sizes = [8, 128], strides = [1, 1]} : vector<8x384xf32> to vector<8x128xf32>
    %107 = vector.extract_strided_slice %89 {offsets = [0, 256], sizes = [8, 128], strides = [1, 1]} : vector<8x384xf32> to vector<8x128xf32>
    %108 = vector.broadcast %9 : vector<1x128xf32> to vector<8x128xf32>
    %109 = arith.addf %107, %108 : vector<8x128xf32>
    %110 = arith.mulf %97, %109 : vector<8x128xf32>
    %111 = arith.addf %106, %110 : vector<8x128xf32>
    %112 = math.tanh %111 : vector<8x128xf32>
    %cst_33 = arith.constant 1.000000e+00 : f32
    %113 = vector.broadcast %cst_33 : f32 to vector<8x128xf32>
    %114 = arith.subf %113, %105 : vector<8x128xf32>
    %115 = arith.mulf %114, %112 : vector<8x128xf32>
    %116 = arith.mulf %105, %80 : vector<8x128xf32>
    %117 = arith.addf %115, %116 : vector<8x128xf32>
    %118 = arith.index_cast %c2_i32 : i32 to index
    %c0_34 = arith.constant 0 : index
    %c0_35 = arith.constant 0 : index
    %119 = vector.load %arg13[%118, %c0_34, %c0_35] : memref<8x8x128xf32, #tpu.memory_space<vmem>>, vector<1x8x128xf32>
    %120 = vector.shape_cast %119 : vector<1x8x128xf32> to vector<8x128xf32>
    %121 = vector.shape_cast %117 : vector<8x128xf32> to vector<1x8x128xf32>
    tpu.vector_store %arg13[%118, %c0_34, %c0_35], %121 {strides = array<i32>} : memref<8x8x128xf32, #tpu.memory_space<vmem>>, vector<1x8x128xf32>,
    %c3_i32 = arith.constant 3 : i32
    %c8_i32_36 = arith.constant 8 : i32
    %122 = arith.muli %c3_i32, %c8_i32_36 : i32
    %123 = tpu.assume_multiple %122, 8 : i32
    %124 = arith.index_cast %123 : i32 to index
    %c0_37 = arith.constant 0 : index
    %125 = vector.load %arg15[%124, %c0_37] : memref<64x384xf32, #tpu.memory_space<vmem>>, vector<8x384xf32>
    %cst_38 = arith.constant dense<0.000000e+00> : vector<8x384xf32>
    %126 = tpu.matmul %117, %8, %cst_38 {dimension_numbers = #tpu.dot_dimension_numbers<[1], [0], [0], [1], [0, 0, 1, 1], [], []>} : vector<8x128xf32>, vector<128x384xf32>, vector<8x384xf32> -> vector<8x384xf32>
    %127 = vector.extract_strided_slice %125 {offsets = [0, 0], sizes = [8, 128], strides = [1, 1]} : vector<8x384xf32> to vector<8x128xf32>
    %128 = vector.extract_strided_slice %126 {offsets = [0, 0], sizes = [8, 128], strides = [1, 1]} : vector<8x384xf32> to vector<8x128xf32>
    %129 = arith.addf %127, %128 : vector<8x128xf32>
    %130 = arith.negf %129 : vector<8x128xf32>
    %131 = math.exp %130 : vector<8x128xf32>
    %cst_39 = arith.constant 1.000000e+00 : f32
    %132 = vector.broadcast %cst_39 : f32 to vector<8x128xf32>
    %133 = arith.addf %132, %131 : vector<8x128xf32>
    %134 = arith.divf %132, %133 : vector<8x128xf32>
    %135 = vector.extract_strided_slice %125 {offsets = [0, 128], sizes = [8, 128], strides = [1, 1]} : vector<8x384xf32> to vector<8x128xf32>
    %136 = vector.extract_strided_slice %126 {offsets = [0, 128], sizes = [8, 128], strides = [1, 1]} : vector<8x384xf32> to vector<8x128xf32>
    %137 = arith.addf %135, %136 : vector<8x128xf32>
    %138 = arith.negf %137 : vector<8x128xf32>
    %139 = math.exp %138 : vector<8x128xf32>
    %cst_40 = arith.constant 1.000000e+00 : f32
    %140 = vector.broadcast %cst_40 : f32 to vector<8x128xf32>
    %141 = arith.addf %140, %139 : vector<8x128xf32>
    %142 = arith.divf %140, %141 : vector<8x128xf32>
    %143 = vector.extract_strided_slice %125 {offsets = [0, 256], sizes = [8, 128], strides = [1, 1]} : vector<8x384xf32> to vector<8x128xf32>
    %144 = vector.extract_strided_slice %126 {offsets = [0, 256], sizes = [8, 128], strides = [1, 1]} : vector<8x384xf32> to vector<8x128xf32>
    %145 = vector.broadcast %9 : vector<1x128xf32> to vector<8x128xf32>
    %146 = arith.addf %144, %145 : vector<8x128xf32>
    %147 = arith.mulf %134, %146 : vector<8x128xf32>
    %148 = arith.addf %143, %147 : vector<8x128xf32>
    %149 = math.tanh %148 : vector<8x128xf32>
    %cst_41 = arith.constant 1.000000e+00 : f32
    %150 = vector.broadcast %cst_41 : f32 to vector<8x128xf32>
    %151 = arith.subf %150, %142 : vector<8x128xf32>
    %152 = arith.mulf %151, %149 : vector<8x128xf32>
    %153 = arith.mulf %142, %117 : vector<8x128xf32>
    %154 = arith.addf %152, %153 : vector<8x128xf32>
    %155 = arith.index_cast %c3_i32 : i32 to index
    %c0_42 = arith.constant 0 : index
    %c0_43 = arith.constant 0 : index
    %156 = vector.load %arg13[%155, %c0_42, %c0_43] : memref<8x8x128xf32, #tpu.memory_space<vmem>>, vector<1x8x128xf32>
    %157 = vector.shape_cast %156 : vector<1x8x128xf32> to vector<8x128xf32>
    %158 = vector.shape_cast %154 : vector<8x128xf32> to vector<1x8x128xf32>
    tpu.vector_store %arg13[%155, %c0_42, %c0_43], %158 {strides = array<i32>} : memref<8x8x128xf32, #tpu.memory_space<vmem>>, vector<1x8x128xf32>,
    %c4_i32 = arith.constant 4 : i32
    %c8_i32_44 = arith.constant 8 : i32
    %159 = arith.muli %c4_i32, %c8_i32_44 : i32
    %160 = tpu.assume_multiple %159, 8 : i32
    %161 = arith.index_cast %160 : i32 to index
    %c0_45 = arith.constant 0 : index
    %162 = vector.load %arg15[%161, %c0_45] : memref<64x384xf32, #tpu.memory_space<vmem>>, vector<8x384xf32>
    %cst_46 = arith.constant dense<0.000000e+00> : vector<8x384xf32>
    %163 = tpu.matmul %154, %8, %cst_46 {dimension_numbers = #tpu.dot_dimension_numbers<[1], [0], [0], [1], [0, 0, 1, 1], [], []>} : vector<8x128xf32>, vector<128x384xf32>, vector<8x384xf32> -> vector<8x384xf32>
    %164 = vector.extract_strided_slice %162 {offsets = [0, 0], sizes = [8, 128], strides = [1, 1]} : vector<8x384xf32> to vector<8x128xf32>
    %165 = vector.extract_strided_slice %163 {offsets = [0, 0], sizes = [8, 128], strides = [1, 1]} : vector<8x384xf32> to vector<8x128xf32>
    %166 = arith.addf %164, %165 : vector<8x128xf32>
    %167 = arith.negf %166 : vector<8x128xf32>
    %168 = math.exp %167 : vector<8x128xf32>
    %cst_47 = arith.constant 1.000000e+00 : f32
    %169 = vector.broadcast %cst_47 : f32 to vector<8x128xf32>
    %170 = arith.addf %169, %168 : vector<8x128xf32>
    %171 = arith.divf %169, %170 : vector<8x128xf32>
    %172 = vector.extract_strided_slice %162 {offsets = [0, 128], sizes = [8, 128], strides = [1, 1]} : vector<8x384xf32> to vector<8x128xf32>
    %173 = vector.extract_strided_slice %163 {offsets = [0, 128], sizes = [8, 128], strides = [1, 1]} : vector<8x384xf32> to vector<8x128xf32>
    %174 = arith.addf %172, %173 : vector<8x128xf32>
    %175 = arith.negf %174 : vector<8x128xf32>
    %176 = math.exp %175 : vector<8x128xf32>
    %cst_48 = arith.constant 1.000000e+00 : f32
    %177 = vector.broadcast %cst_48 : f32 to vector<8x128xf32>
    %178 = arith.addf %177, %176 : vector<8x128xf32>
    %179 = arith.divf %177, %178 : vector<8x128xf32>
    %180 = vector.extract_strided_slice %162 {offsets = [0, 256], sizes = [8, 128], strides = [1, 1]} : vector<8x384xf32> to vector<8x128xf32>
    %181 = vector.extract_strided_slice %163 {offsets = [0, 256], sizes = [8, 128], strides = [1, 1]} : vector<8x384xf32> to vector<8x128xf32>
    %182 = vector.broadcast %9 : vector<1x128xf32> to vector<8x128xf32>
    %183 = arith.addf %181, %182 : vector<8x128xf32>
    %184 = arith.mulf %171, %183 : vector<8x128xf32>
    %185 = arith.addf %180, %184 : vector<8x128xf32>
    %186 = math.tanh %185 : vector<8x128xf32>
    %cst_49 = arith.constant 1.000000e+00 : f32
    %187 = vector.broadcast %cst_49 : f32 to vector<8x128xf32>
    %188 = arith.subf %187, %179 : vector<8x128xf32>
    %189 = arith.mulf %188, %186 : vector<8x128xf32>
    %190 = arith.mulf %179, %154 : vector<8x128xf32>
    %191 = arith.addf %189, %190 : vector<8x128xf32>
    %192 = arith.index_cast %c4_i32 : i32 to index
    %c0_50 = arith.constant 0 : index
    %c0_51 = arith.constant 0 : index
    %193 = vector.load %arg13[%192, %c0_50, %c0_51] : memref<8x8x128xf32, #tpu.memory_space<vmem>>, vector<1x8x128xf32>
    %194 = vector.shape_cast %193 : vector<1x8x128xf32> to vector<8x128xf32>
    %195 = vector.shape_cast %191 : vector<8x128xf32> to vector<1x8x128xf32>
    tpu.vector_store %arg13[%192, %c0_50, %c0_51], %195 {strides = array<i32>} : memref<8x8x128xf32, #tpu.memory_space<vmem>>, vector<1x8x128xf32>,
    %c5_i32 = arith.constant 5 : i32
    %c8_i32_52 = arith.constant 8 : i32
    %196 = arith.muli %c5_i32, %c8_i32_52 : i32
    %197 = tpu.assume_multiple %196, 8 : i32
    %198 = arith.index_cast %197 : i32 to index
    %c0_53 = arith.constant 0 : index
    %199 = vector.load %arg15[%198, %c0_53] : memref<64x384xf32, #tpu.memory_space<vmem>>, vector<8x384xf32>
    %cst_54 = arith.constant dense<0.000000e+00> : vector<8x384xf32>
    %200 = tpu.matmul %191, %8, %cst_54 {dimension_numbers = #tpu.dot_dimension_numbers<[1], [0], [0], [1], [0, 0, 1, 1], [], []>} : vector<8x128xf32>, vector<128x384xf32>, vector<8x384xf32> -> vector<8x384xf32>
    %201 = vector.extract_strided_slice %199 {offsets = [0, 0], sizes = [8, 128], strides = [1, 1]} : vector<8x384xf32> to vector<8x128xf32>
    %202 = vector.extract_strided_slice %200 {offsets = [0, 0], sizes = [8, 128], strides = [1, 1]} : vector<8x384xf32> to vector<8x128xf32>
    %203 = arith.addf %201, %202 : vector<8x128xf32>
    %204 = arith.negf %203 : vector<8x128xf32>
    %205 = math.exp %204 : vector<8x128xf32>
    %cst_55 = arith.constant 1.000000e+00 : f32
    %206 = vector.broadcast %cst_55 : f32 to vector<8x128xf32>
    %207 = arith.addf %206, %205 : vector<8x128xf32>
    %208 = arith.divf %206, %207 : vector<8x128xf32>
    %209 = vector.extract_strided_slice %199 {offsets = [0, 128], sizes = [8, 128], strides = [1, 1]} : vector<8x384xf32> to vector<8x128xf32>
    %210 = vector.extract_strided_slice %200 {offsets = [0, 128], sizes = [8, 128], strides = [1, 1]} : vector<8x384xf32> to vector<8x128xf32>
    %211 = arith.addf %209, %210 : vector<8x128xf32>
    %212 = arith.negf %211 : vector<8x128xf32>
    %213 = math.exp %212 : vector<8x128xf32>
    %cst_56 = arith.constant 1.000000e+00 : f32
    %214 = vector.broadcast %cst_56 : f32 to vector<8x128xf32>
    %215 = arith.addf %214, %213 : vector<8x128xf32>
    %216 = arith.divf %214, %215 : vector<8x128xf32>
    %217 = vector.extract_strided_slice %199 {offsets = [0, 256], sizes = [8, 128], strides = [1, 1]} : vector<8x384xf32> to vector<8x128xf32>
    %218 = vector.extract_strided_slice %200 {offsets = [0, 256], sizes = [8, 128], strides = [1, 1]} : vector<8x384xf32> to vector<8x128xf32>
    %219 = vector.broadcast %9 : vector<1x128xf32> to vector<8x128xf32>
    %220 = arith.addf %218, %219 : vector<8x128xf32>
    %221 = arith.mulf %208, %220 : vector<8x128xf32>
    %222 = arith.addf %217, %221 : vector<8x128xf32>
    %223 = math.tanh %222 : vector<8x128xf32>
    %cst_57 = arith.constant 1.000000e+00 : f32
    %224 = vector.broadcast %cst_57 : f32 to vector<8x128xf32>
    %225 = arith.subf %224, %216 : vector<8x128xf32>
    %226 = arith.mulf %225, %223 : vector<8x128xf32>
    %227 = arith.mulf %216, %191 : vector<8x128xf32>
    %228 = arith.addf %226, %227 : vector<8x128xf32>
    %229 = arith.index_cast %c5_i32 : i32 to index
    %c0_58 = arith.constant 0 : index
    %c0_59 = arith.constant 0 : index
    %230 = vector.load %arg13[%229, %c0_58, %c0_59] : memref<8x8x128xf32, #tpu.memory_space<vmem>>, vector<1x8x128xf32>
    %231 = vector.shape_cast %230 : vector<1x8x128xf32> to vector<8x128xf32>
    %232 = vector.shape_cast %228 : vector<8x128xf32> to vector<1x8x128xf32>
    tpu.vector_store %arg13[%229, %c0_58, %c0_59], %232 {strides = array<i32>} : memref<8x8x128xf32, #tpu.memory_space<vmem>>, vector<1x8x128xf32>,
    %c6_i32 = arith.constant 6 : i32
    %c8_i32_60 = arith.constant 8 : i32
    %233 = arith.muli %c6_i32, %c8_i32_60 : i32
    %234 = tpu.assume_multiple %233, 8 : i32
    %235 = arith.index_cast %234 : i32 to index
    %c0_61 = arith.constant 0 : index
    %236 = vector.load %arg15[%235, %c0_61] : memref<64x384xf32, #tpu.memory_space<vmem>>, vector<8x384xf32>
    %cst_62 = arith.constant dense<0.000000e+00> : vector<8x384xf32>
    %237 = tpu.matmul %228, %8, %cst_62 {dimension_numbers = #tpu.dot_dimension_numbers<[1], [0], [0], [1], [0, 0, 1, 1], [], []>} : vector<8x128xf32>, vector<128x384xf32>, vector<8x384xf32> -> vector<8x384xf32>
    %238 = vector.extract_strided_slice %236 {offsets = [0, 0], sizes = [8, 128], strides = [1, 1]} : vector<8x384xf32> to vector<8x128xf32>
    %239 = vector.extract_strided_slice %237 {offsets = [0, 0], sizes = [8, 128], strides = [1, 1]} : vector<8x384xf32> to vector<8x128xf32>
    %240 = arith.addf %238, %239 : vector<8x128xf32>
    %241 = arith.negf %240 : vector<8x128xf32>
    %242 = math.exp %241 : vector<8x128xf32>
    %cst_63 = arith.constant 1.000000e+00 : f32
    %243 = vector.broadcast %cst_63 : f32 to vector<8x128xf32>
    %244 = arith.addf %243, %242 : vector<8x128xf32>
    %245 = arith.divf %243, %244 : vector<8x128xf32>
    %246 = vector.extract_strided_slice %236 {offsets = [0, 128], sizes = [8, 128], strides = [1, 1]} : vector<8x384xf32> to vector<8x128xf32>
    %247 = vector.extract_strided_slice %237 {offsets = [0, 128], sizes = [8, 128], strides = [1, 1]} : vector<8x384xf32> to vector<8x128xf32>
    %248 = arith.addf %246, %247 : vector<8x128xf32>
    %249 = arith.negf %248 : vector<8x128xf32>
    %250 = math.exp %249 : vector<8x128xf32>
    %cst_64 = arith.constant 1.000000e+00 : f32
    %251 = vector.broadcast %cst_64 : f32 to vector<8x128xf32>
    %252 = arith.addf %251, %250 : vector<8x128xf32>
    %253 = arith.divf %251, %252 : vector<8x128xf32>
    %254 = vector.extract_strided_slice %236 {offsets = [0, 256], sizes = [8, 128], strides = [1, 1]} : vector<8x384xf32> to vector<8x128xf32>
    %255 = vector.extract_strided_slice %237 {offsets = [0, 256], sizes = [8, 128], strides = [1, 1]} : vector<8x384xf32> to vector<8x128xf32>
    %256 = vector.broadcast %9 : vector<1x128xf32> to vector<8x128xf32>
    %257 = arith.addf %255, %256 : vector<8x128xf32>
    %258 = arith.mulf %245, %257 : vector<8x128xf32>
    %259 = arith.addf %254, %258 : vector<8x128xf32>
    %260 = math.tanh %259 : vector<8x128xf32>
    %cst_65 = arith.constant 1.000000e+00 : f32
    %261 = vector.broadcast %cst_65 : f32 to vector<8x128xf32>
    %262 = arith.subf %261, %253 : vector<8x128xf32>
    %263 = arith.mulf %262, %260 : vector<8x128xf32>
    %264 = arith.mulf %253, %228 : vector<8x128xf32>
    %265 = arith.addf %263, %264 : vector<8x128xf32>
    %266 = arith.index_cast %c6_i32 : i32 to index
    %c0_66 = arith.constant 0 : index
    %c0_67 = arith.constant 0 : index
    %267 = vector.load %arg13[%266, %c0_66, %c0_67] : memref<8x8x128xf32, #tpu.memory_space<vmem>>, vector<1x8x128xf32>
    %268 = vector.shape_cast %267 : vector<1x8x128xf32> to vector<8x128xf32>
    %269 = vector.shape_cast %265 : vector<8x128xf32> to vector<1x8x128xf32>
    tpu.vector_store %arg13[%266, %c0_66, %c0_67], %269 {strides = array<i32>} : memref<8x8x128xf32, #tpu.memory_space<vmem>>, vector<1x8x128xf32>,
    %c7_i32 = arith.constant 7 : i32
    %c8_i32_68 = arith.constant 8 : i32
    %270 = arith.muli %c7_i32, %c8_i32_68 : i32
    %271 = tpu.assume_multiple %270, 8 : i32
    %272 = arith.index_cast %271 : i32 to index
    %c0_69 = arith.constant 0 : index
    %273 = vector.load %arg15[%272, %c0_69] : memref<64x384xf32, #tpu.memory_space<vmem>>, vector<8x384xf32>
    %cst_70 = arith.constant dense<0.000000e+00> : vector<8x384xf32>
    %274 = tpu.matmul %265, %8, %cst_70 {dimension_numbers = #tpu.dot_dimension_numbers<[1], [0], [0], [1], [0, 0, 1, 1], [], []>} : vector<8x128xf32>, vector<128x384xf32>, vector<8x384xf32> -> vector<8x384xf32>
    %275 = vector.extract_strided_slice %273 {offsets = [0, 0], sizes = [8, 128], strides = [1, 1]} : vector<8x384xf32> to vector<8x128xf32>
    %276 = vector.extract_strided_slice %274 {offsets = [0, 0], sizes = [8, 128], strides = [1, 1]} : vector<8x384xf32> to vector<8x128xf32>
    %277 = arith.addf %275, %276 : vector<8x128xf32>
    %278 = arith.negf %277 : vector<8x128xf32>
    %279 = math.exp %278 : vector<8x128xf32>
    %cst_71 = arith.constant 1.000000e+00 : f32
    %280 = vector.broadcast %cst_71 : f32 to vector<8x128xf32>
    %281 = arith.addf %280, %279 : vector<8x128xf32>
    %282 = arith.divf %280, %281 : vector<8x128xf32>
    %283 = vector.extract_strided_slice %273 {offsets = [0, 128], sizes = [8, 128], strides = [1, 1]} : vector<8x384xf32> to vector<8x128xf32>
    %284 = vector.extract_strided_slice %274 {offsets = [0, 128], sizes = [8, 128], strides = [1, 1]} : vector<8x384xf32> to vector<8x128xf32>
    %285 = arith.addf %283, %284 : vector<8x128xf32>
    %286 = arith.negf %285 : vector<8x128xf32>
    %287 = math.exp %286 : vector<8x128xf32>
    %cst_72 = arith.constant 1.000000e+00 : f32
    %288 = vector.broadcast %cst_72 : f32 to vector<8x128xf32>
    %289 = arith.addf %288, %287 : vector<8x128xf32>
    %290 = arith.divf %288, %289 : vector<8x128xf32>
    %291 = vector.extract_strided_slice %273 {offsets = [0, 256], sizes = [8, 128], strides = [1, 1]} : vector<8x384xf32> to vector<8x128xf32>
    %292 = vector.extract_strided_slice %274 {offsets = [0, 256], sizes = [8, 128], strides = [1, 1]} : vector<8x384xf32> to vector<8x128xf32>
    %293 = vector.broadcast %9 : vector<1x128xf32> to vector<8x128xf32>
    %294 = arith.addf %292, %293 : vector<8x128xf32>
    %295 = arith.mulf %282, %294 : vector<8x128xf32>
    %296 = arith.addf %291, %295 : vector<8x128xf32>
    %297 = math.tanh %296 : vector<8x128xf32>
    %cst_73 = arith.constant 1.000000e+00 : f32
    %298 = vector.broadcast %cst_73 : f32 to vector<8x128xf32>
    %299 = arith.subf %298, %290 : vector<8x128xf32>
    %300 = arith.mulf %299, %297 : vector<8x128xf32>
    %301 = arith.mulf %290, %265 : vector<8x128xf32>
    %302 = arith.addf %300, %301 : vector<8x128xf32>
    %303 = arith.index_cast %c7_i32 : i32 to index
    %c0_74 = arith.constant 0 : index
    %c0_75 = arith.constant 0 : index
    %304 = vector.load %arg13[%303, %c0_74, %c0_75] : memref<8x8x128xf32, #tpu.memory_space<vmem>>, vector<1x8x128xf32>
    %305 = vector.shape_cast %304 : vector<1x8x128xf32> to vector<8x128xf32>
    %306 = vector.shape_cast %302 : vector<8x128xf32> to vector<1x8x128xf32>
    tpu.vector_store %arg13[%303, %c0_74, %c0_75], %306 {strides = array<i32>} : memref<8x8x128xf32, #tpu.memory_space<vmem>>, vector<1x8x128xf32>,
    %c8_i32_76 = arith.constant 8 : i32
    %c0_77 = arith.constant 0 : index
    %c0_78 = arith.constant 0 : index
    %307 = vector.load %arg5[%c0_77, %c0_78] : memref<128x128xf32, #tpu.memory_space<vmem>>, vector<128x128xf32>
    %cst_79 = arith.constant dense<0.000000e+00> : vector<8x128xf32>
    %308 = tpu.matmul %302, %307, %cst_79 {dimension_numbers = #tpu.dot_dimension_numbers<[1], [0], [0], [1], [0, 0, 1, 1], [], []>} : vector<8x128xf32>, vector<128x128xf32>, vector<8x128xf32> -> vector<8x128xf32>
    %c0_80 = arith.constant 0 : index
    %c0_81 = arith.constant 0 : index
    %309 = vector.load %arg6[%c0_80, %c0_81] : memref<1x128xf32, #tpu.memory_space<vmem>>, vector<1x128xf32>
    %310 = vector.broadcast %309 : vector<1x128xf32> to vector<8x128xf32>
    %311 = arith.addf %308, %310 : vector<8x128xf32>
    %312 = math.tanh %311 : vector<8x128xf32>
    %c0_82 = arith.constant 0 : index
    %c0_83 = arith.constant 0 : index
    %313 = vector.load %arg8[%c0_82, %c0_83] : memref<128x384xf32, #tpu.memory_space<vmem>>, vector<128x384xf32>
    %c0_84 = arith.constant 0 : index
    %c0_85 = arith.constant 0 : index
    %314 = vector.load %arg10[%c0_84, %c0_85] : memref<1x128xf32, #tpu.memory_space<vmem>>, vector<1x128xf32>
    %c0_86 = arith.constant 0 : index
    %c0_87 = arith.constant 0 : index
    %315 = vector.load %arg11[%c0_86, %c0_87] : memref<128x512xf32, #tpu.memory_space<vmem>>, vector<128x512xf32>
    %c0_88 = arith.constant 0 : index
    %c0_89 = arith.constant 0 : index
    %316 = vector.load %arg12[%c0_88, %c0_89] : memref<1x512xf32, #tpu.memory_space<vmem>>, vector<1x512xf32>
    %c0_90 = arith.constant 0 : index
    %c0_91 = arith.constant 0 : index
    %317 = vector.load %arg7[%c0_90, %c0_91] : memref<128x384xf32, #tpu.memory_space<vmem>>, vector<128x384xf32>
    %cst_92 = arith.constant dense<0.000000e+00> : vector<8x384xf32>
    %318 = tpu.matmul %312, %317, %cst_92 {dimension_numbers = #tpu.dot_dimension_numbers<[1], [0], [0], [1], [0, 0, 1, 1], [], []>} : vector<8x128xf32>, vector<128x384xf32>, vector<8x384xf32> -> vector<8x384xf32>
    %c0_93 = arith.constant 0 : index
    %c0_94 = arith.constant 0 : index
    %319 = vector.load %arg9[%c0_93, %c0_94] : memref<1x384xf32, #tpu.memory_space<vmem>>, vector<1x384xf32>
    %320 = vector.broadcast %319 : vector<1x384xf32> to vector<8x384xf32>
    %321 = arith.addf %318, %320 : vector<8x384xf32>
    %c0_i32_95 = arith.constant 0 : i32
    %cst_96 = arith.constant dense<0.000000e+00> : vector<8x384xf32>
    %322 = tpu.matmul %302, %313, %cst_96 {dimension_numbers = #tpu.dot_dimension_numbers<[1], [0], [0], [1], [0, 0, 1, 1], [], []>} : vector<8x128xf32>, vector<128x384xf32>, vector<8x384xf32> -> vector<8x384xf32>
    %323 = vector.extract_strided_slice %321 {offsets = [0, 0], sizes = [8, 128], strides = [1, 1]} : vector<8x384xf32> to vector<8x128xf32>
    %324 = vector.extract_strided_slice %322 {offsets = [0, 0], sizes = [8, 128], strides = [1, 1]} : vector<8x384xf32> to vector<8x128xf32>
    %325 = arith.addf %323, %324 : vector<8x128xf32>
    %326 = arith.negf %325 : vector<8x128xf32>
    %327 = math.exp %326 : vector<8x128xf32>
    %cst_97 = arith.constant 1.000000e+00 : f32
    %328 = vector.broadcast %cst_97 : f32 to vector<8x128xf32>
    %329 = arith.addf %328, %327 : vector<8x128xf32>
    %330 = arith.divf %328, %329 : vector<8x128xf32>
    %331 = vector.extract_strided_slice %321 {offsets = [0, 128], sizes = [8, 128], strides = [1, 1]} : vector<8x384xf32> to vector<8x128xf32>
    %332 = vector.extract_strided_slice %322 {offsets = [0, 128], sizes = [8, 128], strides = [1, 1]} : vector<8x384xf32> to vector<8x128xf32>
    %333 = arith.addf %331, %332 : vector<8x128xf32>
    %334 = arith.negf %333 : vector<8x128xf32>
    %335 = math.exp %334 : vector<8x128xf32>
    %cst_98 = arith.constant 1.000000e+00 : f32
    %336 = vector.broadcast %cst_98 : f32 to vector<8x128xf32>
    %337 = arith.addf %336, %335 : vector<8x128xf32>
    %338 = arith.divf %336, %337 : vector<8x128xf32>
    %339 = vector.extract_strided_slice %321 {offsets = [0, 256], sizes = [8, 128], strides = [1, 1]} : vector<8x384xf32> to vector<8x128xf32>
    %340 = vector.extract_strided_slice %322 {offsets = [0, 256], sizes = [8, 128], strides = [1, 1]} : vector<8x384xf32> to vector<8x128xf32>
    %341 = vector.broadcast %314 : vector<1x128xf32> to vector<8x128xf32>
    %342 = arith.addf %340, %341 : vector<8x128xf32>
    %343 = arith.mulf %330, %342 : vector<8x128xf32>
    %344 = arith.addf %339, %343 : vector<8x128xf32>
    %345 = math.tanh %344 : vector<8x128xf32>
    %cst_99 = arith.constant 1.000000e+00 : f32
    %346 = vector.broadcast %cst_99 : f32 to vector<8x128xf32>
    %347 = arith.subf %346, %338 : vector<8x128xf32>
    %348 = arith.mulf %347, %345 : vector<8x128xf32>
    %349 = arith.mulf %338, %302 : vector<8x128xf32>
    %350 = arith.addf %348, %349 : vector<8x128xf32>
    %cst_100 = arith.constant dense<0.000000e+00> : vector<8x512xf32>
    %351 = tpu.matmul %350, %315, %cst_100 {dimension_numbers = #tpu.dot_dimension_numbers<[1], [0], [0], [1], [0, 0, 1, 1], [], []>} : vector<8x128xf32>, vector<128x512xf32>, vector<8x512xf32> -> vector<8x512xf32>
    %352 = vector.broadcast %316 : vector<1x512xf32> to vector<8x512xf32>
    %353 = arith.addf %351, %352 : vector<8x512xf32>
    %354 = vector.extract_strided_slice %353 {offsets = [0, 0], sizes = [8, 128], strides = [1, 1]} : vector<8x512xf32> to vector<8x128xf32>
    %355 = arith.index_cast %c0_i32_95 : i32 to index
    %c0_101 = arith.constant 0 : index
    %c0_102 = arith.constant 0 : index
    %356 = vector.load %arg14[%355, %c0_101, %c0_102] : memref<8x8x128xf32, #tpu.memory_space<vmem>>, vector<1x8x128xf32>
    %357 = vector.shape_cast %356 : vector<1x8x128xf32> to vector<8x128xf32>
    %358 = vector.shape_cast %354 : vector<8x128xf32> to vector<1x8x128xf32>
    tpu.vector_store %arg14[%355, %c0_101, %c0_102], %358 {strides = array<i32>} : memref<8x8x128xf32, #tpu.memory_space<vmem>>, vector<1x8x128xf32>,
    %359 = vector.extract_strided_slice %353 {offsets = [0, 128], sizes = [8, 384], strides = [1, 1]} : vector<8x512xf32> to vector<8x384xf32>
    %c1_i32_103 = arith.constant 1 : i32
    %cst_104 = arith.constant dense<0.000000e+00> : vector<8x384xf32>
    %360 = tpu.matmul %350, %313, %cst_104 {dimension_numbers = #tpu.dot_dimension_numbers<[1], [0], [0], [1], [0, 0, 1, 1], [], []>} : vector<8x128xf32>, vector<128x384xf32>, vector<8x384xf32> -> vector<8x384xf32>
    %361 = vector.extract_strided_slice %359 {offsets = [0, 0], sizes = [8, 128], strides = [1, 1]} : vector<8x384xf32> to vector<8x128xf32>
    %362 = vector.extract_strided_slice %360 {offsets = [0, 0], sizes = [8, 128], strides = [1, 1]} : vector<8x384xf32> to vector<8x128xf32>
    %363 = arith.addf %361, %362 : vector<8x128xf32>
    %364 = arith.negf %363 : vector<8x128xf32>
    %365 = math.exp %364 : vector<8x128xf32>
    %cst_105 = arith.constant 1.000000e+00 : f32
    %366 = vector.broadcast %cst_105 : f32 to vector<8x128xf32>
    %367 = arith.addf %366, %365 : vector<8x128xf32>
    %368 = arith.divf %366, %367 : vector<8x128xf32>
    %369 = vector.extract_strided_slice %359 {offsets = [0, 128], sizes = [8, 128], strides = [1, 1]} : vector<8x384xf32> to vector<8x128xf32>
    %370 = vector.extract_strided_slice %360 {offsets = [0, 128], sizes = [8, 128], strides = [1, 1]} : vector<8x384xf32> to vector<8x128xf32>
    %371 = arith.addf %369, %370 : vector<8x128xf32>
    %372 = arith.negf %371 : vector<8x128xf32>
    %373 = math.exp %372 : vector<8x128xf32>
    %cst_106 = arith.constant 1.000000e+00 : f32
    %374 = vector.broadcast %cst_106 : f32 to vector<8x128xf32>
    %375 = arith.addf %374, %373 : vector<8x128xf32>
    %376 = arith.divf %374, %375 : vector<8x128xf32>
    %377 = vector.extract_strided_slice %359 {offsets = [0, 256], sizes = [8, 128], strides = [1, 1]} : vector<8x384xf32> to vector<8x128xf32>
    %378 = vector.extract_strided_slice %360 {offsets = [0, 256], sizes = [8, 128], strides = [1, 1]} : vector<8x384xf32> to vector<8x128xf32>
    %379 = vector.broadcast %314 : vector<1x128xf32> to vector<8x128xf32>
    %380 = arith.addf %378, %379 : vector<8x128xf32>
    %381 = arith.mulf %368, %380 : vector<8x128xf32>
    %382 = arith.addf %377, %381 : vector<8x128xf32>
    %383 = math.tanh %382 : vector<8x128xf32>
    %cst_107 = arith.constant 1.000000e+00 : f32
    %384 = vector.broadcast %cst_107 : f32 to vector<8x128xf32>
    %385 = arith.subf %384, %376 : vector<8x128xf32>
    %386 = arith.mulf %385, %383 : vector<8x128xf32>
    %387 = arith.mulf %376, %350 : vector<8x128xf32>
    %388 = arith.addf %386, %387 : vector<8x128xf32>
    %cst_108 = arith.constant dense<0.000000e+00> : vector<8x512xf32>
    %389 = tpu.matmul %388, %315, %cst_108 {dimension_numbers = #tpu.dot_dimension_numbers<[1], [0], [0], [1], [0, 0, 1, 1], [], []>} : vector<8x128xf32>, vector<128x512xf32>, vector<8x512xf32> -> vector<8x512xf32>
    %390 = vector.broadcast %316 : vector<1x512xf32> to vector<8x512xf32>
    %391 = arith.addf %389, %390 : vector<8x512xf32>
    %392 = vector.extract_strided_slice %391 {offsets = [0, 0], sizes = [8, 128], strides = [1, 1]} : vector<8x512xf32> to vector<8x128xf32>
    %393 = arith.index_cast %c1_i32_103 : i32 to index
    %c0_109 = arith.constant 0 : index
    %c0_110 = arith.constant 0 : index
    %394 = vector.load %arg14[%393, %c0_109, %c0_110] : memref<8x8x128xf32, #tpu.memory_space<vmem>>, vector<1x8x128xf32>
    %395 = vector.shape_cast %394 : vector<1x8x128xf32> to vector<8x128xf32>
    %396 = vector.shape_cast %392 : vector<8x128xf32> to vector<1x8x128xf32>
    tpu.vector_store %arg14[%393, %c0_109, %c0_110], %396 {strides = array<i32>} : memref<8x8x128xf32, #tpu.memory_space<vmem>>, vector<1x8x128xf32>,
    %397 = vector.extract_strided_slice %391 {offsets = [0, 128], sizes = [8, 384], strides = [1, 1]} : vector<8x512xf32> to vector<8x384xf32>
    %c2_i32_111 = arith.constant 2 : i32
    %cst_112 = arith.constant dense<0.000000e+00> : vector<8x384xf32>
    %398 = tpu.matmul %388, %313, %cst_112 {dimension_numbers = #tpu.dot_dimension_numbers<[1], [0], [0], [1], [0, 0, 1, 1], [], []>} : vector<8x128xf32>, vector<128x384xf32>, vector<8x384xf32> -> vector<8x384xf32>
    %399 = vector.extract_strided_slice %397 {offsets = [0, 0], sizes = [8, 128], strides = [1, 1]} : vector<8x384xf32> to vector<8x128xf32>
    %400 = vector.extract_strided_slice %398 {offsets = [0, 0], sizes = [8, 128], strides = [1, 1]} : vector<8x384xf32> to vector<8x128xf32>
    %401 = arith.addf %399, %400 : vector<8x128xf32>
    %402 = arith.negf %401 : vector<8x128xf32>
    %403 = math.exp %402 : vector<8x128xf32>
    %cst_113 = arith.constant 1.000000e+00 : f32
    %404 = vector.broadcast %cst_113 : f32 to vector<8x128xf32>
    %405 = arith.addf %404, %403 : vector<8x128xf32>
    %406 = arith.divf %404, %405 : vector<8x128xf32>
    %407 = vector.extract_strided_slice %397 {offsets = [0, 128], sizes = [8, 128], strides = [1, 1]} : vector<8x384xf32> to vector<8x128xf32>
    %408 = vector.extract_strided_slice %398 {offsets = [0, 128], sizes = [8, 128], strides = [1, 1]} : vector<8x384xf32> to vector<8x128xf32>
    %409 = arith.addf %407, %408 : vector<8x128xf32>
    %410 = arith.negf %409 : vector<8x128xf32>
    %411 = math.exp %410 : vector<8x128xf32>
    %cst_114 = arith.constant 1.000000e+00 : f32
    %412 = vector.broadcast %cst_114 : f32 to vector<8x128xf32>
    %413 = arith.addf %412, %411 : vector<8x128xf32>
    %414 = arith.divf %412, %413 : vector<8x128xf32>
    %415 = vector.extract_strided_slice %397 {offsets = [0, 256], sizes = [8, 128], strides = [1, 1]} : vector<8x384xf32> to vector<8x128xf32>
    %416 = vector.extract_strided_slice %398 {offsets = [0, 256], sizes = [8, 128], strides = [1, 1]} : vector<8x384xf32> to vector<8x128xf32>
    %417 = vector.broadcast %314 : vector<1x128xf32> to vector<8x128xf32>
    %418 = arith.addf %416, %417 : vector<8x128xf32>
    %419 = arith.mulf %406, %418 : vector<8x128xf32>
    %420 = arith.addf %415, %419 : vector<8x128xf32>
    %421 = math.tanh %420 : vector<8x128xf32>
    %cst_115 = arith.constant 1.000000e+00 : f32
    %422 = vector.broadcast %cst_115 : f32 to vector<8x128xf32>
    %423 = arith.subf %422, %414 : vector<8x128xf32>
    %424 = arith.mulf %423, %421 : vector<8x128xf32>
    %425 = arith.mulf %414, %388 : vector<8x128xf32>
    %426 = arith.addf %424, %425 : vector<8x128xf32>
    %cst_116 = arith.constant dense<0.000000e+00> : vector<8x512xf32>
    %427 = tpu.matmul %426, %315, %cst_116 {dimension_numbers = #tpu.dot_dimension_numbers<[1], [0], [0], [1], [0, 0, 1, 1], [], []>} : vector<8x128xf32>, vector<128x512xf32>, vector<8x512xf32> -> vector<8x512xf32>
    %428 = vector.broadcast %316 : vector<1x512xf32> to vector<8x512xf32>
    %429 = arith.addf %427, %428 : vector<8x512xf32>
    %430 = vector.extract_strided_slice %429 {offsets = [0, 0], sizes = [8, 128], strides = [1, 1]} : vector<8x512xf32> to vector<8x128xf32>
    %431 = arith.index_cast %c2_i32_111 : i32 to index
    %c0_117 = arith.constant 0 : index
    %c0_118 = arith.constant 0 : index
    %432 = vector.load %arg14[%431, %c0_117, %c0_118] : memref<8x8x128xf32, #tpu.memory_space<vmem>>, vector<1x8x128xf32>
    %433 = vector.shape_cast %432 : vector<1x8x128xf32> to vector<8x128xf32>
    %434 = vector.shape_cast %430 : vector<8x128xf32> to vector<1x8x128xf32>
    tpu.vector_store %arg14[%431, %c0_117, %c0_118], %434 {strides = array<i32>} : memref<8x8x128xf32, #tpu.memory_space<vmem>>, vector<1x8x128xf32>,
    %435 = vector.extract_strided_slice %429 {offsets = [0, 128], sizes = [8, 384], strides = [1, 1]} : vector<8x512xf32> to vector<8x384xf32>
    %c3_i32_119 = arith.constant 3 : i32
    %cst_120 = arith.constant dense<0.000000e+00> : vector<8x384xf32>
    %436 = tpu.matmul %426, %313, %cst_120 {dimension_numbers = #tpu.dot_dimension_numbers<[1], [0], [0], [1], [0, 0, 1, 1], [], []>} : vector<8x128xf32>, vector<128x384xf32>, vector<8x384xf32> -> vector<8x384xf32>
    %437 = vector.extract_strided_slice %435 {offsets = [0, 0], sizes = [8, 128], strides = [1, 1]} : vector<8x384xf32> to vector<8x128xf32>
    %438 = vector.extract_strided_slice %436 {offsets = [0, 0], sizes = [8, 128], strides = [1, 1]} : vector<8x384xf32> to vector<8x128xf32>
    %439 = arith.addf %437, %438 : vector<8x128xf32>
    %440 = arith.negf %439 : vector<8x128xf32>
    %441 = math.exp %440 : vector<8x128xf32>
    %cst_121 = arith.constant 1.000000e+00 : f32
    %442 = vector.broadcast %cst_121 : f32 to vector<8x128xf32>
    %443 = arith.addf %442, %441 : vector<8x128xf32>
    %444 = arith.divf %442, %443 : vector<8x128xf32>
    %445 = vector.extract_strided_slice %435 {offsets = [0, 128], sizes = [8, 128], strides = [1, 1]} : vector<8x384xf32> to vector<8x128xf32>
    %446 = vector.extract_strided_slice %436 {offsets = [0, 128], sizes = [8, 128], strides = [1, 1]} : vector<8x384xf32> to vector<8x128xf32>
    %447 = arith.addf %445, %446 : vector<8x128xf32>
    %448 = arith.negf %447 : vector<8x128xf32>
    %449 = math.exp %448 : vector<8x128xf32>
    %cst_122 = arith.constant 1.000000e+00 : f32
    %450 = vector.broadcast %cst_122 : f32 to vector<8x128xf32>
    %451 = arith.addf %450, %449 : vector<8x128xf32>
    %452 = arith.divf %450, %451 : vector<8x128xf32>
    %453 = vector.extract_strided_slice %435 {offsets = [0, 256], sizes = [8, 128], strides = [1, 1]} : vector<8x384xf32> to vector<8x128xf32>
    %454 = vector.extract_strided_slice %436 {offsets = [0, 256], sizes = [8, 128], strides = [1, 1]} : vector<8x384xf32> to vector<8x128xf32>
    %455 = vector.broadcast %314 : vector<1x128xf32> to vector<8x128xf32>
    %456 = arith.addf %454, %455 : vector<8x128xf32>
    %457 = arith.mulf %444, %456 : vector<8x128xf32>
    %458 = arith.addf %453, %457 : vector<8x128xf32>
    %459 = math.tanh %458 : vector<8x128xf32>
    %cst_123 = arith.constant 1.000000e+00 : f32
    %460 = vector.broadcast %cst_123 : f32 to vector<8x128xf32>
    %461 = arith.subf %460, %452 : vector<8x128xf32>
    %462 = arith.mulf %461, %459 : vector<8x128xf32>
    %463 = arith.mulf %452, %426 : vector<8x128xf32>
    %464 = arith.addf %462, %463 : vector<8x128xf32>
    %cst_124 = arith.constant dense<0.000000e+00> : vector<8x512xf32>
    %465 = tpu.matmul %464, %315, %cst_124 {dimension_numbers = #tpu.dot_dimension_numbers<[1], [0], [0], [1], [0, 0, 1, 1], [], []>} : vector<8x128xf32>, vector<128x512xf32>, vector<8x512xf32> -> vector<8x512xf32>
    %466 = vector.broadcast %316 : vector<1x512xf32> to vector<8x512xf32>
    %467 = arith.addf %465, %466 : vector<8x512xf32>
    %468 = vector.extract_strided_slice %467 {offsets = [0, 0], sizes = [8, 128], strides = [1, 1]} : vector<8x512xf32> to vector<8x128xf32>
    %469 = arith.index_cast %c3_i32_119 : i32 to index
    %c0_125 = arith.constant 0 : index
    %c0_126 = arith.constant 0 : index
    %470 = vector.load %arg14[%469, %c0_125, %c0_126] : memref<8x8x128xf32, #tpu.memory_space<vmem>>, vector<1x8x128xf32>
    %471 = vector.shape_cast %470 : vector<1x8x128xf32> to vector<8x128xf32>
    %472 = vector.shape_cast %468 : vector<8x128xf32> to vector<1x8x128xf32>
    tpu.vector_store %arg14[%469, %c0_125, %c0_126], %472 {strides = array<i32>} : memref<8x8x128xf32, #tpu.memory_space<vmem>>, vector<1x8x128xf32>,
    %473 = vector.extract_strided_slice %467 {offsets = [0, 128], sizes = [8, 384], strides = [1, 1]} : vector<8x512xf32> to vector<8x384xf32>
    %c4_i32_127 = arith.constant 4 : i32
    %cst_128 = arith.constant dense<0.000000e+00> : vector<8x384xf32>
    %474 = tpu.matmul %464, %313, %cst_128 {dimension_numbers = #tpu.dot_dimension_numbers<[1], [0], [0], [1], [0, 0, 1, 1], [], []>} : vector<8x128xf32>, vector<128x384xf32>, vector<8x384xf32> -> vector<8x384xf32>
    %475 = vector.extract_strided_slice %473 {offsets = [0, 0], sizes = [8, 128], strides = [1, 1]} : vector<8x384xf32> to vector<8x128xf32>
    %476 = vector.extract_strided_slice %474 {offsets = [0, 0], sizes = [8, 128], strides = [1, 1]} : vector<8x384xf32> to vector<8x128xf32>
    %477 = arith.addf %475, %476 : vector<8x128xf32>
    %478 = arith.negf %477 : vector<8x128xf32>
    %479 = math.exp %478 : vector<8x128xf32>
    %cst_129 = arith.constant 1.000000e+00 : f32
    %480 = vector.broadcast %cst_129 : f32 to vector<8x128xf32>
    %481 = arith.addf %480, %479 : vector<8x128xf32>
    %482 = arith.divf %480, %481 : vector<8x128xf32>
    %483 = vector.extract_strided_slice %473 {offsets = [0, 128], sizes = [8, 128], strides = [1, 1]} : vector<8x384xf32> to vector<8x128xf32>
    %484 = vector.extract_strided_slice %474 {offsets = [0, 128], sizes = [8, 128], strides = [1, 1]} : vector<8x384xf32> to vector<8x128xf32>
    %485 = arith.addf %483, %484 : vector<8x128xf32>
    %486 = arith.negf %485 : vector<8x128xf32>
    %487 = math.exp %486 : vector<8x128xf32>
    %cst_130 = arith.constant 1.000000e+00 : f32
    %488 = vector.broadcast %cst_130 : f32 to vector<8x128xf32>
    %489 = arith.addf %488, %487 : vector<8x128xf32>
    %490 = arith.divf %488, %489 : vector<8x128xf32>
    %491 = vector.extract_strided_slice %473 {offsets = [0, 256], sizes = [8, 128], strides = [1, 1]} : vector<8x384xf32> to vector<8x128xf32>
    %492 = vector.extract_strided_slice %474 {offsets = [0, 256], sizes = [8, 128], strides = [1, 1]} : vector<8x384xf32> to vector<8x128xf32>
    %493 = vector.broadcast %314 : vector<1x128xf32> to vector<8x128xf32>
    %494 = arith.addf %492, %493 : vector<8x128xf32>
    %495 = arith.mulf %482, %494 : vector<8x128xf32>
    %496 = arith.addf %491, %495 : vector<8x128xf32>
    %497 = math.tanh %496 : vector<8x128xf32>
    %cst_131 = arith.constant 1.000000e+00 : f32
    %498 = vector.broadcast %cst_131 : f32 to vector<8x128xf32>
    %499 = arith.subf %498, %490 : vector<8x128xf32>
    %500 = arith.mulf %499, %497 : vector<8x128xf32>
    %501 = arith.mulf %490, %464 : vector<8x128xf32>
    %502 = arith.addf %500, %501 : vector<8x128xf32>
    %cst_132 = arith.constant dense<0.000000e+00> : vector<8x512xf32>
    %503 = tpu.matmul %502, %315, %cst_132 {dimension_numbers = #tpu.dot_dimension_numbers<[1], [0], [0], [1], [0, 0, 1, 1], [], []>} : vector<8x128xf32>, vector<128x512xf32>, vector<8x512xf32> -> vector<8x512xf32>
    %504 = vector.broadcast %316 : vector<1x512xf32> to vector<8x512xf32>
    %505 = arith.addf %503, %504 : vector<8x512xf32>
    %506 = vector.extract_strided_slice %505 {offsets = [0, 0], sizes = [8, 128], strides = [1, 1]} : vector<8x512xf32> to vector<8x128xf32>
    %507 = arith.index_cast %c4_i32_127 : i32 to index
    %c0_133 = arith.constant 0 : index
    %c0_134 = arith.constant 0 : index
    %508 = vector.load %arg14[%507, %c0_133, %c0_134] : memref<8x8x128xf32, #tpu.memory_space<vmem>>, vector<1x8x128xf32>
    %509 = vector.shape_cast %508 : vector<1x8x128xf32> to vector<8x128xf32>
    %510 = vector.shape_cast %506 : vector<8x128xf32> to vector<1x8x128xf32>
    tpu.vector_store %arg14[%507, %c0_133, %c0_134], %510 {strides = array<i32>} : memref<8x8x128xf32, #tpu.memory_space<vmem>>, vector<1x8x128xf32>,
    %511 = vector.extract_strided_slice %505 {offsets = [0, 128], sizes = [8, 384], strides = [1, 1]} : vector<8x512xf32> to vector<8x384xf32>
    %c5_i32_135 = arith.constant 5 : i32
    %cst_136 = arith.constant dense<0.000000e+00> : vector<8x384xf32>
    %512 = tpu.matmul %502, %313, %cst_136 {dimension_numbers = #tpu.dot_dimension_numbers<[1], [0], [0], [1], [0, 0, 1, 1], [], []>} : vector<8x128xf32>, vector<128x384xf32>, vector<8x384xf32> -> vector<8x384xf32>
    %513 = vector.extract_strided_slice %511 {offsets = [0, 0], sizes = [8, 128], strides = [1, 1]} : vector<8x384xf32> to vector<8x128xf32>
    %514 = vector.extract_strided_slice %512 {offsets = [0, 0], sizes = [8, 128], strides = [1, 1]} : vector<8x384xf32> to vector<8x128xf32>
    %515 = arith.addf %513, %514 : vector<8x128xf32>
    %516 = arith.negf %515 : vector<8x128xf32>
    %517 = math.exp %516 : vector<8x128xf32>
    %cst_137 = arith.constant 1.000000e+00 : f32
    %518 = vector.broadcast %cst_137 : f32 to vector<8x128xf32>
    %519 = arith.addf %518, %517 : vector<8x128xf32>
    %520 = arith.divf %518, %519 : vector<8x128xf32>
    %521 = vector.extract_strided_slice %511 {offsets = [0, 128], sizes = [8, 128], strides = [1, 1]} : vector<8x384xf32> to vector<8x128xf32>
    %522 = vector.extract_strided_slice %512 {offsets = [0, 128], sizes = [8, 128], strides = [1, 1]} : vector<8x384xf32> to vector<8x128xf32>
    %523 = arith.addf %521, %522 : vector<8x128xf32>
    %524 = arith.negf %523 : vector<8x128xf32>
    %525 = math.exp %524 : vector<8x128xf32>
    %cst_138 = arith.constant 1.000000e+00 : f32
    %526 = vector.broadcast %cst_138 : f32 to vector<8x128xf32>
    %527 = arith.addf %526, %525 : vector<8x128xf32>
    %528 = arith.divf %526, %527 : vector<8x128xf32>
    %529 = vector.extract_strided_slice %511 {offsets = [0, 256], sizes = [8, 128], strides = [1, 1]} : vector<8x384xf32> to vector<8x128xf32>
    %530 = vector.extract_strided_slice %512 {offsets = [0, 256], sizes = [8, 128], strides = [1, 1]} : vector<8x384xf32> to vector<8x128xf32>
    %531 = vector.broadcast %314 : vector<1x128xf32> to vector<8x128xf32>
    %532 = arith.addf %530, %531 : vector<8x128xf32>
    %533 = arith.mulf %520, %532 : vector<8x128xf32>
    %534 = arith.addf %529, %533 : vector<8x128xf32>
    %535 = math.tanh %534 : vector<8x128xf32>
    %cst_139 = arith.constant 1.000000e+00 : f32
    %536 = vector.broadcast %cst_139 : f32 to vector<8x128xf32>
    %537 = arith.subf %536, %528 : vector<8x128xf32>
    %538 = arith.mulf %537, %535 : vector<8x128xf32>
    %539 = arith.mulf %528, %502 : vector<8x128xf32>
    %540 = arith.addf %538, %539 : vector<8x128xf32>
    %cst_140 = arith.constant dense<0.000000e+00> : vector<8x512xf32>
    %541 = tpu.matmul %540, %315, %cst_140 {dimension_numbers = #tpu.dot_dimension_numbers<[1], [0], [0], [1], [0, 0, 1, 1], [], []>} : vector<8x128xf32>, vector<128x512xf32>, vector<8x512xf32> -> vector<8x512xf32>
    %542 = vector.broadcast %316 : vector<1x512xf32> to vector<8x512xf32>
    %543 = arith.addf %541, %542 : vector<8x512xf32>
    %544 = vector.extract_strided_slice %543 {offsets = [0, 0], sizes = [8, 128], strides = [1, 1]} : vector<8x512xf32> to vector<8x128xf32>
    %545 = arith.index_cast %c5_i32_135 : i32 to index
    %c0_141 = arith.constant 0 : index
    %c0_142 = arith.constant 0 : index
    %546 = vector.load %arg14[%545, %c0_141, %c0_142] : memref<8x8x128xf32, #tpu.memory_space<vmem>>, vector<1x8x128xf32>
    %547 = vector.shape_cast %546 : vector<1x8x128xf32> to vector<8x128xf32>
    %548 = vector.shape_cast %544 : vector<8x128xf32> to vector<1x8x128xf32>
    tpu.vector_store %arg14[%545, %c0_141, %c0_142], %548 {strides = array<i32>} : memref<8x8x128xf32, #tpu.memory_space<vmem>>, vector<1x8x128xf32>,
    %549 = vector.extract_strided_slice %543 {offsets = [0, 128], sizes = [8, 384], strides = [1, 1]} : vector<8x512xf32> to vector<8x384xf32>
    %c6_i32_143 = arith.constant 6 : i32
    %cst_144 = arith.constant dense<0.000000e+00> : vector<8x384xf32>
    %550 = tpu.matmul %540, %313, %cst_144 {dimension_numbers = #tpu.dot_dimension_numbers<[1], [0], [0], [1], [0, 0, 1, 1], [], []>} : vector<8x128xf32>, vector<128x384xf32>, vector<8x384xf32> -> vector<8x384xf32>
    %551 = vector.extract_strided_slice %549 {offsets = [0, 0], sizes = [8, 128], strides = [1, 1]} : vector<8x384xf32> to vector<8x128xf32>
    %552 = vector.extract_strided_slice %550 {offsets = [0, 0], sizes = [8, 128], strides = [1, 1]} : vector<8x384xf32> to vector<8x128xf32>
    %553 = arith.addf %551, %552 : vector<8x128xf32>
    %554 = arith.negf %553 : vector<8x128xf32>
    %555 = math.exp %554 : vector<8x128xf32>
    %cst_145 = arith.constant 1.000000e+00 : f32
    %556 = vector.broadcast %cst_145 : f32 to vector<8x128xf32>
    %557 = arith.addf %556, %555 : vector<8x128xf32>
    %558 = arith.divf %556, %557 : vector<8x128xf32>
    %559 = vector.extract_strided_slice %549 {offsets = [0, 128], sizes = [8, 128], strides = [1, 1]} : vector<8x384xf32> to vector<8x128xf32>
    %560 = vector.extract_strided_slice %550 {offsets = [0, 128], sizes = [8, 128], strides = [1, 1]} : vector<8x384xf32> to vector<8x128xf32>
    %561 = arith.addf %559, %560 : vector<8x128xf32>
    %562 = arith.negf %561 : vector<8x128xf32>
    %563 = math.exp %562 : vector<8x128xf32>
    %cst_146 = arith.constant 1.000000e+00 : f32
    %564 = vector.broadcast %cst_146 : f32 to vector<8x128xf32>
    %565 = arith.addf %564, %563 : vector<8x128xf32>
    %566 = arith.divf %564, %565 : vector<8x128xf32>
    %567 = vector.extract_strided_slice %549 {offsets = [0, 256], sizes = [8, 128], strides = [1, 1]} : vector<8x384xf32> to vector<8x128xf32>
    %568 = vector.extract_strided_slice %550 {offsets = [0, 256], sizes = [8, 128], strides = [1, 1]} : vector<8x384xf32> to vector<8x128xf32>
    %569 = vector.broadcast %314 : vector<1x128xf32> to vector<8x128xf32>
    %570 = arith.addf %568, %569 : vector<8x128xf32>
    %571 = arith.mulf %558, %570 : vector<8x128xf32>
    %572 = arith.addf %567, %571 : vector<8x128xf32>
    %573 = math.tanh %572 : vector<8x128xf32>
    %cst_147 = arith.constant 1.000000e+00 : f32
    %574 = vector.broadcast %cst_147 : f32 to vector<8x128xf32>
    %575 = arith.subf %574, %566 : vector<8x128xf32>
    %576 = arith.mulf %575, %573 : vector<8x128xf32>
    %577 = arith.mulf %566, %540 : vector<8x128xf32>
    %578 = arith.addf %576, %577 : vector<8x128xf32>
    %cst_148 = arith.constant dense<0.000000e+00> : vector<8x512xf32>
    %579 = tpu.matmul %578, %315, %cst_148 {dimension_numbers = #tpu.dot_dimension_numbers<[1], [0], [0], [1], [0, 0, 1, 1], [], []>} : vector<8x128xf32>, vector<128x512xf32>, vector<8x512xf32> -> vector<8x512xf32>
    %580 = vector.broadcast %316 : vector<1x512xf32> to vector<8x512xf32>
    %581 = arith.addf %579, %580 : vector<8x512xf32>
    %582 = vector.extract_strided_slice %581 {offsets = [0, 0], sizes = [8, 128], strides = [1, 1]} : vector<8x512xf32> to vector<8x128xf32>
    %583 = arith.index_cast %c6_i32_143 : i32 to index
    %c0_149 = arith.constant 0 : index
    %c0_150 = arith.constant 0 : index
    %584 = vector.load %arg14[%583, %c0_149, %c0_150] : memref<8x8x128xf32, #tpu.memory_space<vmem>>, vector<1x8x128xf32>
    %585 = vector.shape_cast %584 : vector<1x8x128xf32> to vector<8x128xf32>
    %586 = vector.shape_cast %582 : vector<8x128xf32> to vector<1x8x128xf32>
    tpu.vector_store %arg14[%583, %c0_149, %c0_150], %586 {strides = array<i32>} : memref<8x8x128xf32, #tpu.memory_space<vmem>>, vector<1x8x128xf32>,
    %587 = vector.extract_strided_slice %581 {offsets = [0, 128], sizes = [8, 384], strides = [1, 1]} : vector<8x512xf32> to vector<8x384xf32>
    %c7_i32_151 = arith.constant 7 : i32
    %cst_152 = arith.constant dense<0.000000e+00> : vector<8x384xf32>
    %588 = tpu.matmul %578, %313, %cst_152 {dimension_numbers = #tpu.dot_dimension_numbers<[1], [0], [0], [1], [0, 0, 1, 1], [], []>} : vector<8x128xf32>, vector<128x384xf32>, vector<8x384xf32> -> vector<8x384xf32>
    %589 = vector.extract_strided_slice %587 {offsets = [0, 0], sizes = [8, 128], strides = [1, 1]} : vector<8x384xf32> to vector<8x128xf32>
    %590 = vector.extract_strided_slice %588 {offsets = [0, 0], sizes = [8, 128], strides = [1, 1]} : vector<8x384xf32> to vector<8x128xf32>
    %591 = arith.addf %589, %590 : vector<8x128xf32>
    %592 = arith.negf %591 : vector<8x128xf32>
    %593 = math.exp %592 : vector<8x128xf32>
    %cst_153 = arith.constant 1.000000e+00 : f32
    %594 = vector.broadcast %cst_153 : f32 to vector<8x128xf32>
    %595 = arith.addf %594, %593 : vector<8x128xf32>
    %596 = arith.divf %594, %595 : vector<8x128xf32>
    %597 = vector.extract_strided_slice %587 {offsets = [0, 128], sizes = [8, 128], strides = [1, 1]} : vector<8x384xf32> to vector<8x128xf32>
    %598 = vector.extract_strided_slice %588 {offsets = [0, 128], sizes = [8, 128], strides = [1, 1]} : vector<8x384xf32> to vector<8x128xf32>
    %599 = arith.addf %597, %598 : vector<8x128xf32>
    %600 = arith.negf %599 : vector<8x128xf32>
    %601 = math.exp %600 : vector<8x128xf32>
    %cst_154 = arith.constant 1.000000e+00 : f32
    %602 = vector.broadcast %cst_154 : f32 to vector<8x128xf32>
    %603 = arith.addf %602, %601 : vector<8x128xf32>
    %604 = arith.divf %602, %603 : vector<8x128xf32>
    %605 = vector.extract_strided_slice %587 {offsets = [0, 256], sizes = [8, 128], strides = [1, 1]} : vector<8x384xf32> to vector<8x128xf32>
    %606 = vector.extract_strided_slice %588 {offsets = [0, 256], sizes = [8, 128], strides = [1, 1]} : vector<8x384xf32> to vector<8x128xf32>
    %607 = vector.broadcast %314 : vector<1x128xf32> to vector<8x128xf32>
    %608 = arith.addf %606, %607 : vector<8x128xf32>
    %609 = arith.mulf %596, %608 : vector<8x128xf32>
    %610 = arith.addf %605, %609 : vector<8x128xf32>
    %611 = math.tanh %610 : vector<8x128xf32>
    %cst_155 = arith.constant 1.000000e+00 : f32
    %612 = vector.broadcast %cst_155 : f32 to vector<8x128xf32>
    %613 = arith.subf %612, %604 : vector<8x128xf32>
    %614 = arith.mulf %613, %611 : vector<8x128xf32>
    %615 = arith.mulf %604, %578 : vector<8x128xf32>
    %616 = arith.addf %614, %615 : vector<8x128xf32>
    %cst_156 = arith.constant dense<0.000000e+00> : vector<8x512xf32>
    %617 = tpu.matmul %616, %315, %cst_156 {dimension_numbers = #tpu.dot_dimension_numbers<[1], [0], [0], [1], [0, 0, 1, 1], [], []>} : vector<8x128xf32>, vector<128x512xf32>, vector<8x512xf32> -> vector<8x512xf32>
    %618 = vector.broadcast %316 : vector<1x512xf32> to vector<8x512xf32>
    %619 = arith.addf %617, %618 : vector<8x512xf32>
    %620 = vector.extract_strided_slice %619 {offsets = [0, 0], sizes = [8, 128], strides = [1, 1]} : vector<8x512xf32> to vector<8x128xf32>
    %621 = arith.index_cast %c7_i32_151 : i32 to index
    %c0_157 = arith.constant 0 : index
    %c0_158 = arith.constant 0 : index
    %622 = vector.load %arg14[%621, %c0_157, %c0_158] : memref<8x8x128xf32, #tpu.memory_space<vmem>>, vector<1x8x128xf32>
    %623 = vector.shape_cast %622 : vector<1x8x128xf32> to vector<8x128xf32>
    %624 = vector.shape_cast %620 : vector<8x128xf32> to vector<1x8x128xf32>
    tpu.vector_store %arg14[%621, %c0_157, %c0_158], %624 {strides = array<i32>} : memref<8x8x128xf32, #tpu.memory_space<vmem>>, vector<1x8x128xf32>,
    %625 = vector.extract_strided_slice %619 {offsets = [0, 128], sizes = [8, 384], strides = [1, 1]} : vector<8x512xf32> to vector<8x384xf32>
    %c8_i32_159 = arith.constant 8 : i32
    return
  }
}

</mosaic_0001>

<llo_original>
// kernel: seq2seq_forward.1
$region0: #{seq2seq_forward.1}
  #allocation0 [shape = 'u32[]', space=smem, size = 0x4, offset = 0x4, fixed_abs, tag = 'smem constant byte address 0x4 - core index']
  #allocation1 [shape = 'u32[144,128]{1,0:T(1,128)}', space=vmem, size = 0x12000, scoped, tag = 'internal scratch']
  #allocation2 [shape = 'f32[64,384]{1,0:T(8,128)}', space=vmem, size = 0x18000, scoped, tag = 'scratch operand']
  %s0 = inlined_call_operand.vmem [shape: f32[8,8,128], index: 0, kind: input, shape index: {}]
  %s1 = inlined_call_operand.vmem [shape: f32[128,384], index: 1, kind: input, shape index: {}]
  %s2 = inlined_call_operand.vmem [shape: f32[128,384], index: 2, kind: input, shape index: {}]
  %s3 = inlined_call_operand.vmem [shape: f32[1,384], index: 3, kind: input, shape index: {}]
  %s4 = inlined_call_operand.vmem [shape: f32[1,128], index: 4, kind: input, shape index: {}]
  %s5 = inlined_call_operand.vmem [shape: f32[128,128], index: 5, kind: input, shape index: {}]
  %s6 = inlined_call_operand.vmem [shape: f32[1,128], index: 6, kind: input, shape index: {}]
  %s7 = inlined_call_operand.vmem [shape: f32[128,384], index: 7, kind: input, shape index: {}]
  %s8 = inlined_call_operand.vmem [shape: f32[128,384], index: 8, kind: input, shape index: {}]
  %s9 = inlined_call_operand.vmem [shape: f32[1,384], index: 9, kind: input, shape index: {}]
  %s10 = inlined_call_operand.vmem [shape: f32[1,128], index: 10, kind: input, shape index: {}]
  %s11 = inlined_call_operand.vmem [shape: f32[128,512], index: 11, kind: input, shape index: {}]
  %s12 = inlined_call_operand.vmem [shape: f32[1,512], index: 12, kind: input, shape index: {}]
  %s13 = inlined_call_operand.vmem [shape: f32[8,8,128], index: 13, kind: output, shape index: {0}]
  %s14 = inlined_call_operand.vmem [shape: f32[8,8,128], index: 14, kind: output, shape index: {1}]
  %15 = xla_tuple %s13, %s14
  %s16 = sld [smem:[#allocation0]]
  $region70: #{seq2seq_forward.1} parent=0
    _
  %s18 = ssub.s32 1, %s16
  %s19 = scalar_select 0, %s18, %s16
  // Predicated region
  $region2: #{seq2seq_forward.1} parent=0 // pred_check
    _
  $region3: #{seq2seq_forward.1} parent=0 // pred_check_branch
    %21 = sbr.rel (0) target = $region5
  $region4: #{seq2seq_forward.1} parent=0 // pred_region
    _
  $region5: #{seq2seq_forward.1} parent=0 // pred_fallthru
    _
  // Predicated region
  $region6: #{seq2seq_forward.1} parent=0 // pred_check
    _
  $region7: #{seq2seq_forward.1} parent=0 // pred_check_branch
    %23 = sbr.rel (0) target = $region9
  $region8: #{seq2seq_forward.1} parent=0 // pred_region
    _
  $region9: #{seq2seq_forward.1} parent=0 // pred_fallthru
    _
  // Predicated region
  $region10: #{seq2seq_forward.1} parent=0 // pred_check
    _
  $region11: #{seq2seq_forward.1} parent=0 // pred_check_branch
    %25 = sbr.rel (0) target = $region13
  $region12: #{seq2seq_forward.1} parent=0 // pred_region
    _
  $region13: #{seq2seq_forward.1} parent=0 // pred_fallthru
    _
  // Predicated region
  $region14: #{seq2seq_forward.1} parent=0 // pred_check
    _
  $region15: #{seq2seq_forward.1} parent=0 // pred_check_branch
    %27 = sbr.rel (0) target = $region17
  $region16: #{seq2seq_forward.1} parent=0 // pred_region
    _
  $region17: #{seq2seq_forward.1} parent=0 // pred_fallthru
    _
  // Predicated region
  $region18: #{seq2seq_forward.1} parent=0 // pred_check
    _
  $region19: #{seq2seq_forward.1} parent=0 // pred_check_branch
    %29 = sbr.rel (0) target = $region21
  $region20: #{seq2seq_forward.1} parent=0 // pred_region
    _
  $region21: #{seq2seq_forward.1} parent=0 // pred_fallthru
    _
  // Predicated region
  $region22: #{seq2seq_forward.1} parent=0 // pred_check
    _
  $region23: #{seq2seq_forward.1} parent=0 // pred_check_branch
    %31 = sbr.rel (0) target = $region25
  $region24: #{seq2seq_forward.1} parent=0 // pred_region
    _
  $region25: #{seq2seq_forward.1} parent=0 // pred_fallthru
    _
  // Predicated region
  $region26: #{seq2seq_forward.1} parent=0 // pred_check
    _
  $region27: #{seq2seq_forward.1} parent=0 // pred_check_branch
    %33 = sbr.rel (0) target = $region29
  $region28: #{seq2seq_forward.1} parent=0 // pred_region
    _
  $region29: #{seq2seq_forward.1} parent=0 // pred_fallthru
    _
  // Predicated region
  $region30: #{seq2seq_forward.1} parent=0 // pred_check
    _
  $region31: #{seq2seq_forward.1} parent=0 // pred_check_branch
    %35 = sbr.rel (0) target = $region33
  $region32: #{seq2seq_forward.1} parent=0 // pred_region
    _
  $region33: #{seq2seq_forward.1} parent=0 // pred_fallthru
    _
  // Predicated region
  $region34: #{seq2seq_forward.1} parent=0 // pred_check
    _
  $region35: #{seq2seq_forward.1} parent=0 // pred_check_branch
    %37 = sbr.rel (0) target = $region37
  $region36: #{seq2seq_forward.1} parent=0 // pred_region
    _
  $region37: #{seq2seq_forward.1} parent=0 // pred_fallthru
    _
  // Predicated region
  $region38: #{seq2seq_forward.1} parent=0 // pred_check
    _
  $region39: #{seq2seq_forward.1} parent=0 // pred_check_branch
    %39 = sbr.rel (0) target = $region41
  $region40: #{seq2seq_forward.1} parent=0 // pred_region
    _
  $region41: #{seq2seq_forward.1} parent=0 // pred_fallthru
    _
  // Predicated region
  $region42: #{seq2seq_forward.1} parent=0 // pred_check
    _
  $region43: #{seq2seq_forward.1} parent=0 // pred_check_branch
    %41 = sbr.rel (0) target = $region45
  $region44: #{seq2seq_forward.1} parent=0 // pred_region
    _
  $region45: #{seq2seq_forward.1} parent=0 // pred_fallthru
    _
  // Predicated region
  $region46: #{seq2seq_forward.1} parent=0 // pred_check
    _
  $region47: #{seq2seq_forward.1} parent=0 // pred_check_branch
    %43 = sbr.rel (0) target = $region49
  $region48: #{seq2seq_forward.1} parent=0 // pred_region
    _
  $region49: #{seq2seq_forward.1} parent=0 // pred_fallthru
    _
  // Predicated region
  $region50: #{seq2seq_forward.1} parent=0 // pred_check
    _
  $region51: #{seq2seq_forward.1} parent=0 // pred_check_branch
    %45 = sbr.rel (0) target = $region53
  $region52: #{seq2seq_forward.1} parent=0 // pred_region
    _
  $region53: #{seq2seq_forward.1} parent=0 // pred_fallthru
    _
  %v46 = vld [vmem:[%s0] sm:$0xff]
  %v47 = vld [vmem:[%s0 + $0x8] sm:$0xff]
  %v48 = vld [vmem:[%s0 + $0x10] sm:$0xff]
  %v49 = vld [vmem:[%s0 + $0x18] sm:$0xff]
  %v50 = vld [vmem:[%s0 + $0x20] sm:$0xff]
  %v51 = vld [vmem:[%s0 + $0x28] sm:$0xff]
  %v52 = vld [vmem:[%s0 + $0x30] sm:$0xff]
  %v53 = vld [vmem:[%s0 + $0x38] sm:$0xff]
  %v54 = vld [vmem:[%s1] sm:$0xff]
  %v55 = vld [vmem:[%s1 + $0x8] sm:$0xff]
  %v56 = vld [vmem:[%s1 + $0x10] sm:$0xff]
  %v57 = vld [vmem:[%s1 + $0x18] sm:$0xff]
  %v58 = vld [vmem:[%s1 + $0x20] sm:$0xff]
  %v59 = vld [vmem:[%s1 + $0x28] sm:$0xff]
  %v60 = vld [vmem:[%s1 + $0x30] sm:$0xff]
  %v61 = vld [vmem:[%s1 + $0x38] sm:$0xff]
  %v62 = vld [vmem:[%s1 + $0x40] sm:$0xff]
  %v63 = vld [vmem:[%s1 + $0x48] sm:$0xff]
  %v64 = vld [vmem:[%s1 + $0x50] sm:$0xff]
  %v65 = vld [vmem:[%s1 + $0x58] sm:$0xff]
  %v66 = vld [vmem:[%s1 + $0x60] sm:$0xff]
  %v67 = vld [vmem:[%s1 + $0x68] sm:$0xff]
  %v68 = vld [vmem:[%s1 + $0x70] sm:$0xff]
  %v69 = vld [vmem:[%s1 + $0x78] sm:$0xff]
  %v70 = vld [vmem:[%s1 + $0x80] sm:$0xff]
  %v71 = vld [vmem:[%s1 + $0x88] sm:$0xff]
  %v72 = vld [vmem:[%s1 + $0x90] sm:$0xff]
  %v73 = vld [vmem:[%s1 + $0x98] sm:$0xff]
  %v74 = vld [vmem:[%s1 + $0xa0] sm:$0xff]
  %v75 = vld [vmem:[%s1 + $0xa8] sm:$0xff]
  %v76 = vld [vmem:[%s1 + $0xb0] sm:$0xff]
  %v77 = vld [vmem:[%s1 + $0xb8] sm:$0xff]
  %v78 = vld [vmem:[%s1 + $0xc0] sm:$0xff]
  %v79 = vld [vmem:[%s1 + $0xc8] sm:$0xff]
  %v80 = vld [vmem:[%s1 + $0xd0] sm:$0xff]
  %v81 = vld [vmem:[%s1 + $0xd8] sm:$0xff]
  %v82 = vld [vmem:[%s1 + $0xe0] sm:$0xff]
  %v83 = vld [vmem:[%s1 + $0xe8] sm:$0xff]
  %v84 = vld [vmem:[%s1 + $0xf0] sm:$0xff]
  %v85 = vld [vmem:[%s1 + $0xf8] sm:$0xff]
  %v86 = vld [vmem:[%s1 + $0x100] sm:$0xff]
  %v87 = vld [vmem:[%s1 + $0x108] sm:$0xff]
  %v88 = vld [vmem:[%s1 + $0x110] sm:$0xff]
  %v89 = vld [vmem:[%s1 + $0x118] sm:$0xff]
  %v90 = vld [vmem:[%s1 + $0x120] sm:$0xff]
  %v91 = vld [vmem:[%s1 + $0x128] sm:$0xff]
  %v92 = vld [vmem:[%s1 + $0x130] sm:$0xff]
  %v93 = vld [vmem:[%s1 + $0x138] sm:$0xff]
  %v94 = vld [vmem:[%s1 + $0x140] sm:$0xff]
  %v95 = vld [vmem:[%s1 + $0x148] sm:$0xff]
  %v96 = vld [vmem:[%s1 + $0x150] sm:$0xff]
  %v97 = vld [vmem:[%s1 + $0x158] sm:$0xff]
  %v98 = vld [vmem:[%s1 + $0x160] sm:$0xff]
  %v99 = vld [vmem:[%s1 + $0x168] sm:$0xff]
  %v100 = vld [vmem:[%s1 + $0x170] sm:$0xff]
  %v101 = vld [vmem:[%s1 + $0x178] sm:$0xff]
  %v102 = vld [vmem:[%s3] sm:$0x7]
  %v104 = vlaneseq
  %v105 = vshrl.u32 %v104, 7
  %v106 = vsub.s32 0, %v105
  %v107 = vrot.slane %v102, %v106
  %v108 = vlaneseq
  %v109 = vshrl.u32 %v108, 7
  %v110 = vsub.s32 1, %v109
  %v111 = vrot.slane %v102, %v110
  %v112 = vlaneseq
  %v113 = vshrl.u32 %v112, 7
  %v114 = vsub.s32 2, %v113
  %v115 = vrot.slane %v102, %v114
  %119 = vmatprep.subr.mxu0 %v55
  %120 = vmatpush1.msra.mxu0 %v54
  %121 = vmatprep.subr.mxu0 %v58
  %122 = vmatpush1.msra.mxu0 %v57
  %123 = vmatprep.subr.mxu0 %v61
  %124 = vmatpush1.msra.mxu0 %v60
  %125 = vmatprep.subr.mxu0 %v64
  %126 = vmatpush1.msra.mxu0 %v63
  %127 = vmatprep.subr.mxu0 %v67
  %128 = vmatpush1.msra.mxu0 %v66
  %129 = vmatprep.subr.mxu0 %v70
  %130 = vmatpush1.msra.mxu0 %v69
  %131 = vmatprep.subr.mxu0 %v73
  %132 = vmatpush1.msra.mxu0 %v72
  %133 = vmatprep.subr.mxu0 %v76
  %134 = vmatpush1.msra.mxu0 %v75
  %135 = vmatprep.subr.mxu0 %v79
  %136 = vmatpush1.msra.mxu0 %v78
  %137 = vmatprep.subr.mxu0 %v82
  %138 = vmatpush1.msra.mxu0 %v81
  %139 = vmatprep.subr.mxu0 %v85
  %140 = vmatpush1.msra.mxu0 %v84
  %141 = vmatprep.subr.mxu0 %v88
  %142 = vmatpush1.msra.mxu0 %v87
  %143 = vmatprep.subr.mxu0 %v91
  %144 = vmatpush1.msra.mxu0 %v90
  %145 = vmatprep.subr.mxu0 %v94
  %146 = vmatpush1.msra.mxu0 %v93
  %147 = vmatprep.subr.mxu0 %v97
  %148 = vmatpush1.msra.mxu0 %v96
  %149 = vmatprep.subr.mxu0 %v100
  %150 = vmatpush1.msra.mxu0 %v99
  %151 = vmatprep.subr.mxu0 0.0
  %152 = vmatpush1.msra.mxu0 0.0
  %153 = vmatprep.subr.mxu0 0.0
  %154 = vmatpush1.msra.mxu0 0.0
  %155 = vmatprep.subr.mxu0 0.0
  %156 = vmatpush1.msra.mxu0 0.0
  %157 = vmatprep.subr.mxu0 0.0
  %158 = vmatpush1.msra.mxu0 0.0
  %159 = vmatprep.subr.mxu0 0.0
  %160 = vmatpush1.msra.mxu0 0.0
  %161 = vmatprep.subr.mxu0 0.0
  %162 = vmatpush1.msra.mxu0 0.0
  %163 = vmatprep.subr.mxu0 0.0
  %164 = vmatpush1.msra.mxu0 0.0
  %165 = vmatprep.subr.mxu0 0.0
  %166 = vmatpush1.msra.mxu0 0.0
  %167 = vmatprep.subr.mxu0 0.0
  %168 = vmatpush1.msra.mxu0 0.0
  %169 = vmatprep.subr.mxu0 0.0
  %170 = vmatpush1.msra.mxu0 0.0
  %171 = vmatprep.subr.mxu0 0.0
  %172 = vmatpush1.msra.mxu0 0.0
  %173 = vmatprep.subr.mxu0 0.0
  %174 = vmatpush1.msra.mxu0 0.0
  %175 = vmatprep.subr.mxu0 0.0
  %176 = vmatpush1.msra.mxu0 0.0
  %177 = vmatprep.subr.mxu0 0.0
  %178 = vmatpush1.msra.mxu0 0.0
  %179 = vmatprep.subr.mxu0 0.0
  %180 = vmatpush1.msra.mxu0 0.0
  %181 = vmatprep.subr.mxu0 0.0
  %182 = vmatpush1.msra.mxu0 0.0
  %183 = vmatprep.mubr.f32.mxu0 0.0
  %184 = vmatmul.mubr.f32.gmra.mrb[0].mxu0 %v46
  %v185 = vpop.f32.mrb[0].mxu0
  %v186 = vadd.f32 %v107, %v185
  %v187 = vpop.f32.mrb[0].mxu0
  %v188 = vadd.f32 %v111, %v187
  %189 = vmatprep.mubr.f32.mxu0 0.0
  %190 = vmatmul.mubr.f32.gmra.mrb[0].mxu0 %v47
  %v191 = vpop.f32.mrb[0].mxu0
  %v192 = vadd.f32 %v107, %v191
  %v193 = vpop.f32.mrb[0].mxu0
  %v194 = vadd.f32 %v111, %v193
  %195 = vmatprep.mubr.f32.mxu0 0.0
  %196 = vmatmul.mubr.f32.gmra.mrb[0].mxu0 %v48
  %v197 = vpop.f32.mrb[0].mxu0
  %v198 = vadd.f32 %v107, %v197
  %v199 = vpop.f32.mrb[0].mxu0
  %v200 = vadd.f32 %v111, %v199
  %201 = vmatprep.mubr.f32.mxu0 0.0
  %202 = vmatmul.mubr.f32.gmra.mrb[0].mxu0 %v49
  %v203 = vpop.f32.mrb[0].mxu0
  %v204 = vadd.f32 %v107, %v203
  %v205 = vpop.f32.mrb[0].mxu0
  %v206 = vadd.f32 %v111, %v205
  %207 = vmatprep.mubr.f32.mxu0 0.0
  %208 = vmatmul.mubr.f32.gmra.mrb[0].mxu0 %v50
  %v209 = vpop.f32.mrb[0].mxu0
  %v210 = vadd.f32 %v107, %v209
  %v211 = vpop.f32.mrb[0].mxu0
  %v212 = vadd.f32 %v111, %v211
  %213 = vmatprep.mubr.f32.mxu0 0.0
  %214 = vmatmul.mubr.f32.gmra.mrb[0].mxu0 %v51
  %v215 = vpop.f32.mrb[0].mxu0
  %v216 = vadd.f32 %v107, %v215
  %v217 = vpop.f32.mrb[0].mxu0
  %v218 = vadd.f32 %v111, %v217
  %219 = vmatprep.mubr.f32.mxu0 0.0
  %220 = vmatmul.mubr.f32.gmra.mrb[0].mxu0 %v52
  %v221 = vpop.f32.mrb[0].mxu0
  %v222 = vadd.f32 %v107, %v221
  %v223 = vpop.f32.mrb[0].mxu0
  %v224 = vadd.f32 %v111, %v223
  %225 = vmatprep.mubr.f32.mxu0 0.0
  %226 = vmatmul.mubr.f32.gmra.mrb[0].mxu0 %v53
  %v227 = vpop.f32.mrb[0].mxu0
  %v228 = vadd.f32 %v107, %v227
  %v229 = vpop.f32.mrb[0].mxu0
  %v230 = vadd.f32 %v111, %v229
  %231 = vdwg.mxu0
  %232 = vmatprep.subr.mxu0 0.0
  %233 = vmatpush1.msra.mxu0 %v56
  %234 = vmatprep.subr.mxu0 0.0
  %235 = vmatpush1.msra.mxu0 %v59
  %236 = vmatprep.subr.mxu0 0.0
  %237 = vmatpush1.msra.mxu0 %v62
  %238 = vmatprep.subr.mxu0 0.0
  %239 = vmatpush1.msra.mxu0 %v65
  %240 = vmatprep.subr.mxu0 0.0
  %241 = vmatpush1.msra.mxu0 %v68
  %242 = vmatprep.subr.mxu0 0.0
  %243 = vmatpush1.msra.mxu0 %v71
  %244 = vmatprep.subr.mxu0 0.0
  %245 = vmatpush1.msra.mxu0 %v74
  %246 = vmatprep.subr.mxu0 0.0
  %247 = vmatpush1.msra.mxu0 %v77
  %248 = vmatprep.subr.mxu0 0.0
  %249 = vmatpush1.msra.mxu0 %v80
  %250 = vmatprep.subr.mxu0 0.0
  %251 = vmatpush1.msra.mxu0 %v83
  %252 = vmatprep.subr.mxu0 0.0
  %253 = vmatpush1.msra.mxu0 %v86
  %254 = vmatprep.subr.mxu0 0.0
  %255 = vmatpush1.msra.mxu0 %v89
  %256 = vmatprep.subr.mxu0 0.0
  %257 = vmatpush1.msra.mxu0 %v92
  %258 = vmatprep.subr.mxu0 0.0
  %259 = vmatpush1.msra.mxu0 %v95
  %260 = vmatprep.subr.mxu0 0.0
  %261 = vmatpush1.msra.mxu0 %v98
  %262 = vmatprep.subr.mxu0 0.0
  %263 = vmatpush1.msra.mxu0 %v101
  %264 = vmatprep.subr.mxu0 0.0
  %265 = vmatpush1.msra.mxu0 0.0
  %266 = vmatprep.subr.mxu0 0.0
  %267 = vmatpush1.msra.mxu0 0.0
  %268 = vmatprep.subr.mxu0 0.0
  %269 = vmatpush1.msra.mxu0 0.0
  %270 = vmatprep.subr.mxu0 0.0
  %271 = vmatpush1.msra.mxu0 0.0
  %272 = vmatprep.subr.mxu0 0.0
  %273 = vmatpush1.msra.mxu0 0.0
  %274 = vmatprep.subr.mxu0 0.0
  %275 = vmatpush1.msra.mxu0 0.0
  %276 = vmatprep.subr.mxu0 0.0
  %277 = vmatpush1.msra.mxu0 0.0
  %278 = vmatprep.subr.mxu0 0.0
  %279 = vmatpush1.msra.mxu0 0.0
  %280 = vmatprep.subr.mxu0 0.0
  %281 = vmatpush1.msra.mxu0 0.0
  %282 = vmatprep.subr.mxu0 0.0
  %283 = vmatpush1.msra.mxu0 0.0
  %284 = vmatprep.subr.mxu0 0.0
  %285 = vmatpush1.msra.mxu0 0.0
  %286 = vmatprep.subr.mxu0 0.0
  %287 = vmatpush1.msra.mxu0 0.0
  %288 = vmatprep.subr.mxu0 0.0
  %289 = vmatpush1.msra.mxu0 0.0
  %290 = vmatprep.subr.mxu0 0.0
  %291 = vmatpush1.msra.mxu0 0.0
  %292 = vmatprep.subr.mxu0 0.0
  %293 = vmatpush1.msra.mxu0 0.0
  %294 = vmatprep.subr.mxu0 0.0
  %295 = vmatpush1.msra.mxu0 0.0
  %296 = vmatprep.mubr.f32.mxu0 0.0
  %297 = vmatmul.mubr.f32.gmra.mrb[0].mxu0 %v46
  %v298 = vpop.f32.mrb[0].mxu0
  %v299 = vadd.f32 %v115, %v298
  %v300 = vpop.f32.mrb[0].mxu0
  %301 = vmatprep.mubr.f32.mxu0 0.0
  %302 = vmatmul.mubr.f32.gmra.mrb[0].mxu0 %v47
  %v303 = vpop.f32.mrb[0].mxu0
  %v304 = vadd.f32 %v115, %v303
  %v305 = vpop.f32.mrb[0].mxu0
  %306 = vmatprep.mubr.f32.mxu0 0.0
  %307 = vmatmul.mubr.f32.gmra.mrb[0].mxu0 %v48
  %v308 = vpop.f32.mrb[0].mxu0
  %v309 = vadd.f32 %v115, %v308
  %v310 = vpop.f32.mrb[0].mxu0
  %311 = vmatprep.mubr.f32.mxu0 0.0
  %312 = vmatmul.mubr.f32.gmra.mrb[0].mxu0 %v49
  %v313 = vpop.f32.mrb[0].mxu0
  %v314 = vadd.f32 %v115, %v313
  %v315 = vpop.f32.mrb[0].mxu0
  %316 = vmatprep.mubr.f32.mxu0 0.0
  %317 = vmatmul.mubr.f32.gmra.mrb[0].mxu0 %v50
  %v318 = vpop.f32.mrb[0].mxu0
  %v319 = vadd.f32 %v115, %v318
  %v320 = vpop.f32.mrb[0].mxu0
  %321 = vmatprep.mubr.f32.mxu0 0.0
  %322 = vmatmul.mubr.f32.gmra.mrb[0].mxu0 %v51
  %v323 = vpop.f32.mrb[0].mxu0
  %v324 = vadd.f32 %v115, %v323
  %v325 = vpop.f32.mrb[0].mxu0
  %326 = vmatprep.mubr.f32.mxu0 0.0
  %327 = vmatmul.mubr.f32.gmra.mrb[0].mxu0 %v52
  %v328 = vpop.f32.mrb[0].mxu0
  %v329 = vadd.f32 %v115, %v328
  %v330 = vpop.f32.mrb[0].mxu0
  %331 = vmatprep.mubr.f32.mxu0 0.0
  %332 = vmatmul.mubr.f32.gmra.mrb[0].mxu0 %v53
  %v333 = vpop.f32.mrb[0].mxu0
  %v334 = vadd.f32 %v115, %v333
  %v335 = vpop.f32.mrb[0].mxu0
  %336 = vdwg.mxu0
  %337 = vst [vmem:[#allocation2] sm:$0xff] %v186
  %338 = vst [vmem:[#allocation2 + $0x8] sm:$0xff] %v188
  %339 = vst [vmem:[#allocation2 + $0x10] sm:$0xff] %v299
  %340 = vst [vmem:[#allocation2 + $0x18] sm:$0xff] %v192
  %341 = vst [vmem:[#allocation2 + $0x20] sm:$0xff] %v194
  %342 = vst [vmem:[#allocation2 + $0x28] sm:$0xff] %v304
  %343 = vst [vmem:[#allocation2 + $0x30] sm:$0xff] %v198
  %344 = vst [vmem:[#allocation2 + $0x38] sm:$0xff] %v200
  %345 = vst [vmem:[#allocation2 + $0x40] sm:$0xff] %v309
  %346 = vst [vmem:[#allocation2 + $0x48] sm:$0xff] %v204
  %347 = vst [vmem:[#allocation2 + $0x50] sm:$0xff] %v206
  %348 = vst [vmem:[#allocation2 + $0x58] sm:$0xff] %v314
  %349 = vst [vmem:[#allocation2 + $0x60] sm:$0xff] %v210
  %350 = vst [vmem:[#allocation2 + $0x68] sm:$0xff] %v212
  %351 = vst [vmem:[#allocation2 + $0x70] sm:$0xff] %v319
  %352 = vst [vmem:[#allocation2 + $0x78] sm:$0xff] %v216
  %353 = vst [vmem:[#allocation2 + $0x80] sm:$0xff] %v218
  %354 = vst [vmem:[#allocation2 + $0x88] sm:$0xff] %v324
  %355 = vst [vmem:[#allocation2 + $0x90] sm:$0xff] %v222
  %356 = vst [vmem:[#allocation2 + $0x98] sm:$0xff] %v224
  %357 = vst [vmem:[#allocation2 + $0xa0] sm:$0xff] %v329
  %358 = vst [vmem:[#allocation2 + $0xa8] sm:$0xff] %v228
  %359 = vst [vmem:[#allocation2 + $0xb0] sm:$0xff] %v230
  %360 = vst [vmem:[#allocation2 + $0xb8] sm:$0xff] %v334
  %v361 = vld [vmem:[%s2] sm:$0xff]
  %v362 = vld [vmem:[%s2 + $0x8] sm:$0xff]
  %v363 = vld [vmem:[%s2 + $0x10] sm:$0xff]
  %v364 = vld [vmem:[%s2 + $0x18] sm:$0xff]
  %v365 = vld [vmem:[%s2 + $0x20] sm:$0xff]
  %v366 = vld [vmem:[%s2 + $0x28] sm:$0xff]
  %v367 = vld [vmem:[%s2 + $0x30] sm:$0xff]
  %v368 = vld [vmem:[%s2 + $0x38] sm:$0xff]
  %v369 = vld [vmem:[%s2 + $0x40] sm:$0xff]
  %v370 = vld [vmem:[%s2 + $0x48] sm:$0xff]
  %v371 = vld [vmem:[%s2 + $0x50] sm:$0xff]
  %v372 = vld [vmem:[%s2 + $0x58] sm:$0xff]
  %v373 = vld [vmem:[%s2 + $0x60] sm:$0xff]
  %v374 = vld [vmem:[%s2 + $0x68] sm:$0xff]
  %v375 = vld [vmem:[%s2 + $0x70] sm:$0xff]
  %v376 = vld [vmem:[%s2 + $0x78] sm:$0xff]
  %v377 = vld [vmem:[%s2 + $0x80] sm:$0xff]
  %v378 = vld [vmem:[%s2 + $0x88] sm:$0xff]
  %v379 = vld [vmem:[%s2 + $0x90] sm:$0xff]
  %v380 = vld [vmem:[%s2 + $0x98] sm:$0xff]
  %v381 = vld [vmem:[%s2 + $0xa0] sm:$0xff]
  %v382 = vld [vmem:[%s2 + $0xa8] sm:$0xff]
  %v383 = vld [vmem:[%s2 + $0xb0] sm:$0xff]
  %v384 = vld [vmem:[%s2 + $0xb8] sm:$0xff]
  %v385 = vld [vmem:[%s2 + $0xc0] sm:$0xff]
  %v386 = vld [vmem:[%s2 + $0xc8] sm:$0xff]
  %v387 = vld [vmem:[%s2 + $0xd0] sm:$0xff]
  %v388 = vld [vmem:[%s2 + $0xd8] sm:$0xff]
  %v389 = vld [vmem:[%s2 + $0xe0] sm:$0xff]
  %v390 = vld [vmem:[%s2 + $0xe8] sm:$0xff]
  %v391 = vld [vmem:[%s2 + $0xf0] sm:$0xff]
  %v392 = vld [vmem:[%s2 + $0xf8] sm:$0xff]
  %v393 = vld [vmem:[%s2 + $0x100] sm:$0xff]
  %v394 = vld [vmem:[%s2 + $0x108] sm:$0xff]
  %v395 = vld [vmem:[%s2 + $0x110] sm:$0xff]
  %v396 = vld [vmem:[%s2 + $0x118] sm:$0xff]
  %v397 = vld [vmem:[%s2 + $0x120] sm:$0xff]
  %v398 = vld [vmem:[%s2 + $0x128] sm:$0xff]
  %v399 = vld [vmem:[%s2 + $0x130] sm:$0xff]
  %v400 = vld [vmem:[%s2 + $0x138] sm:$0xff]
  %v401 = vld [vmem:[%s2 + $0x140] sm:$0xff]
  %v402 = vld [vmem:[%s2 + $0x148] sm:$0xff]
  %v403 = vld [vmem:[%s2 + $0x150] sm:$0xff]
  %v404 = vld [vmem:[%s2 + $0x158] sm:$0xff]
  %v405 = vld [vmem:[%s2 + $0x160] sm:$0xff]
  %v406 = vld [vmem:[%s2 + $0x168] sm:$0xff]
  %v407 = vld [vmem:[%s2 + $0x170] sm:$0xff]
  %v408 = vld [vmem:[%s2 + $0x178] sm:$0xff]
  %v409 = vld [vmem:[%s4] sm:$0x1]
  %s410 = smul.u32 0, 3
  %s411 = smul.addr %s410, 8
  %s412 = scalar_lea.vmem [#allocation2], %s411
  %v413 = vld [vmem:[%s412] sm:$0xff]
  %v414 = vld [vmem:[%s412 + $0x8] sm:$0xff]
  %v415 = vld [vmem:[%s412 + $0x10] sm:$0xff]
  %416 = vmatprep.subr.mxu0 %v362
  %417 = vmatpush1.msra.mxu0 %v361
  %418 = vmatprep.subr.mxu0 %v365
  %419 = vmatpush1.msra.mxu0 %v364
  %420 = vmatprep.subr.mxu0 %v368
  %421 = vmatpush1.msra.mxu0 %v367
  %422 = vmatprep.subr.mxu0 %v371
  %423 = vmatpush1.msra.mxu0 %v370
  %424 = vmatprep.subr.mxu0 %v374
  %425 = vmatpush1.msra.mxu0 %v373
  %426 = vmatprep.subr.mxu0 %v377
  %427 = vmatpush1.msra.mxu0 %v376
  %428 = vmatprep.subr.mxu0 %v380
  %429 = vmatpush1.msra.mxu0 %v379
  %430 = vmatprep.subr.mxu0 %v383
  %431 = vmatpush1.msra.mxu0 %v382
  %432 = vmatprep.subr.mxu0 %v386
  %433 = vmatpush1.msra.mxu0 %v385
  %434 = vmatprep.subr.mxu0 %v389
  %435 = vmatpush1.msra.mxu0 %v388
  %436 = vmatprep.subr.mxu0 %v392
  %437 = vmatpush1.msra.mxu0 %v391
  %438 = vmatprep.subr.mxu0 %v395
  %439 = vmatpush1.msra.mxu0 %v394
  %440 = vmatprep.subr.mxu0 %v398
  %441 = vmatpush1.msra.mxu0 %v397
  %442 = vmatprep.subr.mxu0 %v401
  %443 = vmatpush1.msra.mxu0 %v400
  %444 = vmatprep.subr.mxu0 %v404
  %445 = vmatpush1.msra.mxu0 %v403
  %446 = vmatprep.subr.mxu0 %v407
  %447 = vmatpush1.msra.mxu0 %v406
  %448 = vmatprep.subr.mxu0 0.0
  %449 = vmatpush1.msra.mxu0 0.0
  %450 = vmatprep.subr.mxu0 0.0
  %451 = vmatpush1.msra.mxu0 0.0
  %452 = vmatprep.subr.mxu0 0.0
  %453 = vmatpush1.msra.mxu0 0.0
  %454 = vmatprep.subr.mxu0 0.0
  %455 = vmatpush1.msra.mxu0 0.0
  %456 = vmatprep.subr.mxu0 0.0
  %457 = vmatpush1.msra.mxu0 0.0
  %458 = vmatprep.subr.mxu0 0.0
  %459 = vmatpush1.msra.mxu0 0.0
  %460 = vmatprep.subr.mxu0 0.0
  %461 = vmatpush1.msra.mxu0 0.0
  %462 = vmatprep.subr.mxu0 0.0
  %463 = vmatpush1.msra.mxu0 0.0
  %464 = vmatprep.subr.mxu0 0.0
  %465 = vmatpush1.msra.mxu0 0.0
  %466 = vmatprep.subr.mxu0 0.0
  %467 = vmatpush1.msra.mxu0 0.0
  %468 = vmatprep.subr.mxu0 0.0
  %469 = vmatpush1.msra.mxu0 0.0
  %470 = vmatprep.subr.mxu0 0.0
  %471 = vmatpush1.msra.mxu0 0.0
  %472 = vmatprep.subr.mxu0 0.0
  %473 = vmatpush1.msra.mxu0 0.0
  %474 = vmatprep.subr.mxu0 0.0
  %475 = vmatpush1.msra.mxu0 0.0
  %476 = vmatprep.subr.mxu0 0.0
  %477 = vmatpush1.msra.mxu0 0.0
  %478 = vmatprep.subr.mxu0 0.0
  %479 = vmatpush1.msra.mxu0 0.0
  %480 = vmatprep.mubr.f32.mxu0 0.0
  %481 = vmatmul.mubr.f32.gmra.mrb[0].mxu0 0.0
  %v482 = vpop.f32.mrb[0].mxu0
  %v483 = vadd.f32 0.0, %v482
  %v484 = vpop.f32.mrb[0].mxu0
  %v485 = vadd.f32 0.0, %v484
  %486 = vdwg.mxu0
  %487 = vmatprep.subr.mxu0 0.0
  %488 = vmatpush1.msra.mxu0 %v363
  %489 = vmatprep.subr.mxu0 0.0
  %490 = vmatpush1.msra.mxu0 %v366
  %491 = vmatprep.subr.mxu0 0.0
  %492 = vmatpush1.msra.mxu0 %v369
  %493 = vmatprep.subr.mxu0 0.0
  %494 = vmatpush1.msra.mxu0 %v372
  %495 = vmatprep.subr.mxu0 0.0
  %496 = vmatpush1.msra.mxu0 %v375
  %497 = vmatprep.subr.mxu0 0.0
  %498 = vmatpush1.msra.mxu0 %v378
  %499 = vmatprep.subr.mxu0 0.0
  %500 = vmatpush1.msra.mxu0 %v381
  %501 = vmatprep.subr.mxu0 0.0
  %502 = vmatpush1.msra.mxu0 %v384
  %503 = vmatprep.subr.mxu0 0.0
  %504 = vmatpush1.msra.mxu0 %v387
  %505 = vmatprep.subr.mxu0 0.0
  %506 = vmatpush1.msra.mxu0 %v390
  %507 = vmatprep.subr.mxu0 0.0
  %508 = vmatpush1.msra.mxu0 %v393
  %509 = vmatprep.subr.mxu0 0.0
  %510 = vmatpush1.msra.mxu0 %v396
  %511 = vmatprep.subr.mxu0 0.0
  %512 = vmatpush1.msra.mxu0 %v399
  %513 = vmatprep.subr.mxu0 0.0
  %514 = vmatpush1.msra.mxu0 %v402
  %515 = vmatprep.subr.mxu0 0.0
  %516 = vmatpush1.msra.mxu0 %v405
  %517 = vmatprep.subr.mxu0 0.0
  %518 = vmatpush1.msra.mxu0 %v408
  %519 = vmatprep.subr.mxu0 0.0
  %520 = vmatpush1.msra.mxu0 0.0
  %521 = vmatprep.subr.mxu0 0.0
  %522 = vmatpush1.msra.mxu0 0.0
  %523 = vmatprep.subr.mxu0 0.0
  %524 = vmatpush1.msra.mxu0 0.0
  %525 = vmatprep.subr.mxu0 0.0
  %526 = vmatpush1.msra.mxu0 0.0
  %527 = vmatprep.subr.mxu0 0.0
  %528 = vmatpush1.msra.mxu0 0.0
  %529 = vmatprep.subr.mxu0 0.0
  %530 = vmatpush1.msra.mxu0 0.0
  %531 = vmatprep.subr.mxu0 0.0
  %532 = vmatpush1.msra.mxu0 0.0
  %533 = vmatprep.subr.mxu0 0.0
  %534 = vmatpush1.msra.mxu0 0.0
  %535 = vmatprep.subr.mxu0 0.0
  %536 = vmatpush1.msra.mxu0 0.0
  %537 = vmatprep.subr.mxu0 0.0
  %538 = vmatpush1.msra.mxu0 0.0
  %539 = vmatprep.subr.mxu0 0.0
  %540 = vmatpush1.msra.mxu0 0.0
  %541 = vmatprep.subr.mxu0 0.0
  %542 = vmatpush1.msra.mxu0 0.0
  %543 = vmatprep.subr.mxu0 0.0
  %544 = vmatpush1.msra.mxu0 0.0
  %545 = vmatprep.subr.mxu0 0.0
  %546 = vmatpush1.msra.mxu0 0.0
  %547 = vmatprep.subr.mxu0 0.0
  %548 = vmatpush1.msra.mxu0 0.0
  %549 = vmatprep.subr.mxu0 0.0
  %550 = vmatpush1.msra.mxu0 0.0
  %551 = vmatprep.mubr.f32.mxu0 0.0
  %552 = vmatmul.mubr.f32.gmra.mrb[0].mxu0 0.0
  %v553 = vpop.f32.mrb[0].mxu0
  %v554 = vadd.f32 0.0, %v553
  %v555 = vpop.f32.mrb[0].mxu0
  %556 = vdwg.mxu0
  %v557 = vadd.f32 %v413, %v483
  %v558 = vxor.u32 %v557, 2147483648
  %v559 = vmul.f32 %v558, 1.442695
  %v560 = vpow.pop %v559
  %v561 = vadd.f32 %v560, 1.0
  %v562 = vrcp.pop %v561
  %v563 = vmul.f32 1.0, %v562
  %v564 = vadd.f32 %v414, %v485
  %v565 = vxor.u32 %v564, 2147483648
  %v566 = vmul.f32 %v565, 1.442695
  %v567 = vpow.pop %v566
  %v568 = vadd.f32 %v567, 1.0
  %v569 = vrcp.pop %v568
  %v570 = vmul.f32 1.0, %v569
  %v572 = vlaneseq
  %v573 = vshrl.u32 %v572, 7
  %v574 = vsub.s32 0, %v573
  %v575 = vrot.slane %v409, %v574
  %v577 = vadd.f32 %v554, %v575
  %v578 = vmul.f32 %v563, %v577
  %v579 = vadd.f32 %v415, %v578
  %v580 = vtanh.pop %v579
  %v581 = vsub.f32 1.0, %v570
  %v582 = vmul.f32 %v581, %v580
  %v583 = vmul.f32 %v570, 0.0
  %v584 = vadd.f32 %v582, %v583
  %585 = vst [vmem:[%s13] sm:$0xff] %v584
  %s586 = smul.u32 1, 3
  %s587 = smul.addr %s586, 8
  %s588 = scalar_lea.vmem [#allocation2], %s587
  %v589 = vld [vmem:[%s588] sm:$0xff]
  %v590 = vld [vmem:[%s588 + $0x8] sm:$0xff]
  %v591 = vld [vmem:[%s588 + $0x10] sm:$0xff]
  %592 = vmatprep.subr.mxu0 %v362
  %593 = vmatpush1.msra.mxu0 %v361
  %594 = vmatprep.subr.mxu0 %v365
  %595 = vmatpush1.msra.mxu0 %v364
  %596 = vmatprep.subr.mxu0 %v368
  %597 = vmatpush1.msra.mxu0 %v367
  %598 = vmatprep.subr.mxu0 %v371
  %599 = vmatpush1.msra.mxu0 %v370
  %600 = vmatprep.subr.mxu0 %v374
  %601 = vmatpush1.msra.mxu0 %v373
  %602 = vmatprep.subr.mxu0 %v377
  %603 = vmatpush1.msra.mxu0 %v376
  %604 = vmatprep.subr.mxu0 %v380
  %605 = vmatpush1.msra.mxu0 %v379
  %606 = vmatprep.subr.mxu0 %v383
  %607 = vmatpush1.msra.mxu0 %v382
  %608 = vmatprep.subr.mxu0 %v386
  %609 = vmatpush1.msra.mxu0 %v385
  %610 = vmatprep.subr.mxu0 %v389
  %611 = vmatpush1.msra.mxu0 %v388
  %612 = vmatprep.subr.mxu0 %v392
  %613 = vmatpush1.msra.mxu0 %v391
  %614 = vmatprep.subr.mxu0 %v395
  %615 = vmatpush1.msra.mxu0 %v394
  %616 = vmatprep.subr.mxu0 %v398
  %617 = vmatpush1.msra.mxu0 %v397
  %618 = vmatprep.subr.mxu0 %v401
  %619 = vmatpush1.msra.mxu0 %v400
  %620 = vmatprep.subr.mxu0 %v404
  %621 = vmatpush1.msra.mxu0 %v403
  %622 = vmatprep.subr.mxu0 %v407
  %623 = vmatpush1.msra.mxu0 %v406
  %624 = vmatprep.subr.mxu0 0.0
  %625 = vmatpush1.msra.mxu0 0.0
  %626 = vmatprep.subr.mxu0 0.0
  %627 = vmatpush1.msra.mxu0 0.0
  %628 = vmatprep.subr.mxu0 0.0
  %629 = vmatpush1.msra.mxu0 0.0
  %630 = vmatprep.subr.mxu0 0.0
  %631 = vmatpush1.msra.mxu0 0.0
  %632 = vmatprep.subr.mxu0 0.0
  %633 = vmatpush1.msra.mxu0 0.0
  %634 = vmatprep.subr.mxu0 0.0
  %635 = vmatpush1.msra.mxu0 0.0
  %636 = vmatprep.subr.mxu0 0.0
  %637 = vmatpush1.msra.mxu0 0.0
  %638 = vmatprep.subr.mxu0 0.0
  %639 = vmatpush1.msra.mxu0 0.0
  %640 = vmatprep.subr.mxu0 0.0
  %641 = vmatpush1.msra.mxu0 0.0
  %642 = vmatprep.subr.mxu0 0.0
  %643 = vmatpush1.msra.mxu0 0.0
  %644 = vmatprep.subr.mxu0 0.0
  %645 = vmatpush1.msra.mxu0 0.0
  %646 = vmatprep.subr.mxu0 0.0
  %647 = vmatpush1.msra.mxu0 0.0
  %648 = vmatprep.subr.mxu0 0.0
  %649 = vmatpush1.msra.mxu0 0.0
  %650 = vmatprep.subr.mxu0 0.0
  %651 = vmatpush1.msra.mxu0 0.0
  %652 = vmatprep.subr.mxu0 0.0
  %653 = vmatpush1.msra.mxu0 0.0
  %654 = vmatprep.subr.mxu0 0.0
  %655 = vmatpush1.msra.mxu0 0.0
  %656 = vmatprep.mubr.f32.mxu0 0.0
  %657 = vmatmul.mubr.f32.gmra.mrb[0].mxu0 %v584
  %v658 = vpop.f32.mrb[0].mxu0
  %v659 = vadd.f32 0.0, %v658
  %v660 = vpop.f32.mrb[0].mxu0
  %v661 = vadd.f32 0.0, %v660
  %662 = vdwg.mxu0
  %663 = vmatprep.subr.mxu0 0.0
  %664 = vmatpush1.msra.mxu0 %v363
  %665 = vmatprep.subr.mxu0 0.0
  %666 = vmatpush1.msra.mxu0 %v366
  %667 = vmatprep.subr.mxu0 0.0
  %668 = vmatpush1.msra.mxu0 %v369
  %669 = vmatprep.subr.mxu0 0.0
  %670 = vmatpush1.msra.mxu0 %v372
  %671 = vmatprep.subr.mxu0 0.0
  %672 = vmatpush1.msra.mxu0 %v375
  %673 = vmatprep.subr.mxu0 0.0
  %674 = vmatpush1.msra.mxu0 %v378
  %675 = vmatprep.subr.mxu0 0.0
  %676 = vmatpush1.msra.mxu0 %v381
  %677 = vmatprep.subr.mxu0 0.0
  %678 = vmatpush1.msra.mxu0 %v384
  %679 = vmatprep.subr.mxu0 0.0
  %680 = vmatpush1.msra.mxu0 %v387
  %681 = vmatprep.subr.mxu0 0.0
  %682 = vmatpush1.msra.mxu0 %v390
  %683 = vmatprep.subr.mxu0 0.0
  %684 = vmatpush1.msra.mxu0 %v393
  %685 = vmatprep.subr.mxu0 0.0
  %686 = vmatpush1.msra.mxu0 %v396
  %687 = vmatprep.subr.mxu0 0.0
  %688 = vmatpush1.msra.mxu0 %v399
  %689 = vmatprep.subr.mxu0 0.0
  %690 = vmatpush1.msra.mxu0 %v402
  %691 = vmatprep.subr.mxu0 0.0
  %692 = vmatpush1.msra.mxu0 %v405
  %693 = vmatprep.subr.mxu0 0.0
  %694 = vmatpush1.msra.mxu0 %v408
  %695 = vmatprep.subr.mxu0 0.0
  %696 = vmatpush1.msra.mxu0 0.0
  %697 = vmatprep.subr.mxu0 0.0
  %698 = vmatpush1.msra.mxu0 0.0
  %699 = vmatprep.subr.mxu0 0.0
  %700 = vmatpush1.msra.mxu0 0.0
  %701 = vmatprep.subr.mxu0 0.0
  %702 = vmatpush1.msra.mxu0 0.0
  %703 = vmatprep.subr.mxu0 0.0
  %704 = vmatpush1.msra.mxu0 0.0
  %705 = vmatprep.subr.mxu0 0.0
  %706 = vmatpush1.msra.mxu0 0.0
  %707 = vmatprep.subr.mxu0 0.0
  %708 = vmatpush1.msra.mxu0 0.0
  %709 = vmatprep.subr.mxu0 0.0
  %710 = vmatpush1.msra.mxu0 0.0
  %711 = vmatprep.subr.mxu0 0.0
  %712 = vmatpush1.msra.mxu0 0.0
  %713 = vmatprep.subr.mxu0 0.0
  %714 = vmatpush1.msra.mxu0 0.0
  %715 = vmatprep.subr.mxu0 0.0
  %716 = vmatpush1.msra.mxu0 0.0
  %717 = vmatprep.subr.mxu0 0.0
  %718 = vmatpush1.msra.mxu0 0.0
  %719 = vmatprep.subr.mxu0 0.0
  %720 = vmatpush1.msra.mxu0 0.0
  %721 = vmatprep.subr.mxu0 0.0
  %722 = vmatpush1.msra.mxu0 0.0
  %723 = vmatprep.subr.mxu0 0.0
  %724 = vmatpush1.msra.mxu0 0.0
  %725 = vmatprep.subr.mxu0 0.0
  %726 = vmatpush1.msra.mxu0 0.0
  %727 = vmatprep.mubr.f32.mxu0 0.0
  %728 = vmatmul.mubr.f32.gmra.mrb[0].mxu0 %v584
  %v729 = vpop.f32.mrb[0].mxu0
  %v730 = vadd.f32 0.0, %v729
  %v731 = vpop.f32.mrb[0].mxu0
  %732 = vdwg.mxu0
  %v733 = vadd.f32 %v589, %v659
  %v734 = vxor.u32 %v733, 2147483648
  %v735 = vmul.f32 %v734, 1.442695
  %v736 = vpow.pop %v735
  %v737 = vadd.f32 %v736, 1.0
  %v738 = vrcp.pop %v737
  %v739 = vmul.f32 1.0, %v738
  %v740 = vadd.f32 %v590, %v661
  %v741 = vxor.u32 %v740, 2147483648
  %v742 = vmul.f32 %v741, 1.442695
  %v743 = vpow.pop %v742
  %v744 = vadd.f32 %v743, 1.0
  %v745 = vrcp.pop %v744
  %v746 = vmul.f32 1.0, %v745
  %v747 = vadd.f32 %v730, %v575
  %v748 = vmul.f32 %v739, %v747
  %v749 = vadd.f32 %v591, %v748
  %v750 = vtanh.pop %v749
  %v751 = vsub.f32 1.0, %v746
  %v752 = vmul.f32 %v751, %v750
  %v753 = vmul.f32 %v746, %v584
  %v754 = vadd.f32 %v752, %v753
  %s755 = scalar_lea.vmem %s13, 8
  %756 = vst [vmem:[%s755] sm:$0xff] %v754
  %s757 = smul.u32 2, 3
  %s758 = smul.addr %s757, 8
  %s759 = scalar_lea.vmem [#allocation2], %s758
  %v760 = vld [vmem:[%s759] sm:$0xff]
  %v761 = vld [vmem:[%s759 + $0x8] sm:$0xff]
  %v762 = vld [vmem:[%s759 + $0x10] sm:$0xff]
  %763 = vmatprep.subr.mxu0 %v362
  %764 = vmatpush1.msra.mxu0 %v361
  %765 = vmatprep.subr.mxu0 %v365
  %766 = vmatpush1.msra.mxu0 %v364
  %767 = vmatprep.subr.mxu0 %v368
  %768 = vmatpush1.msra.mxu0 %v367
  %769 = vmatprep.subr.mxu0 %v371
  %770 = vmatpush1.msra.mxu0 %v370
  %771 = vmatprep.subr.mxu0 %v374
  %772 = vmatpush1.msra.mxu0 %v373
  %773 = vmatprep.subr.mxu0 %v377
  %774 = vmatpush1.msra.mxu0 %v376
  %775 = vmatprep.subr.mxu0 %v380
  %776 = vmatpush1.msra.mxu0 %v379
  %777 = vmatprep.subr.mxu0 %v383
  %778 = vmatpush1.msra.mxu0 %v382
  %779 = vmatprep.subr.mxu0 %v386
  %780 = vmatpush1.msra.mxu0 %v385
  %781 = vmatprep.subr.mxu0 %v389
  %782 = vmatpush1.msra.mxu0 %v388
  %783 = vmatprep.subr.mxu0 %v392
  %784 = vmatpush1.msra.mxu0 %v391
  %785 = vmatprep.subr.mxu0 %v395
  %786 = vmatpush1.msra.mxu0 %v394
  %787 = vmatprep.subr.mxu0 %v398
  %788 = vmatpush1.msra.mxu0 %v397
  %789 = vmatprep.subr.mxu0 %v401
  %790 = vmatpush1.msra.mxu0 %v400
  %791 = vmatprep.subr.mxu0 %v404
  %792 = vmatpush1.msra.mxu0 %v403
  %793 = vmatprep.subr.mxu0 %v407
  %794 = vmatpush1.msra.mxu0 %v406
  %795 = vmatprep.subr.mxu0 0.0
  %796 = vmatpush1.msra.mxu0 0.0
  %797 = vmatprep.subr.mxu0 0.0
  %798 = vmatpush1.msra.mxu0 0.0
  %799 = vmatprep.subr.mxu0 0.0
  %800 = vmatpush1.msra.mxu0 0.0
  %801 = vmatprep.subr.mxu0 0.0
  %802 = vmatpush1.msra.mxu0 0.0
  %803 = vmatprep.subr.mxu0 0.0
  %804 = vmatpush1.msra.mxu0 0.0
  %805 = vmatprep.subr.mxu0 0.0
  %806 = vmatpush1.msra.mxu0 0.0
  %807 = vmatprep.subr.mxu0 0.0
  %808 = vmatpush1.msra.mxu0 0.0
  %809 = vmatprep.subr.mxu0 0.0
  %810 = vmatpush1.msra.mxu0 0.0
  %811 = vmatprep.subr.mxu0 0.0
  %812 = vmatpush1.msra.mxu0 0.0
  %813 = vmatprep.subr.mxu0 0.0
  %814 = vmatpush1.msra.mxu0 0.0
  %815 = vmatprep.subr.mxu0 0.0
  %816 = vmatpush1.msra.mxu0 0.0
  %817 = vmatprep.subr.mxu0 0.0
  %818 = vmatpush1.msra.mxu0 0.0
  %819 = vmatprep.subr.mxu0 0.0
  %820 = vmatpush1.msra.mxu0 0.0
  %821 = vmatprep.subr.mxu0 0.0
  %822 = vmatpush1.msra.mxu0 0.0
  %823 = vmatprep.subr.mxu0 0.0
  %824 = vmatpush1.msra.mxu0 0.0
  %825 = vmatprep.subr.mxu0 0.0
  %826 = vmatpush1.msra.mxu0 0.0
  %827 = vmatprep.mubr.f32.mxu0 0.0
  %828 = vmatmul.mubr.f32.gmra.mrb[0].mxu0 %v754
  %v829 = vpop.f32.mrb[0].mxu0
  %v830 = vadd.f32 0.0, %v829
  %v831 = vpop.f32.mrb[0].mxu0
  %v832 = vadd.f32 0.0, %v831
  %833 = vdwg.mxu0
  %834 = vmatprep.subr.mxu0 0.0
  %835 = vmatpush1.msra.mxu0 %v363
  %836 = vmatprep.subr.mxu0 0.0
  %837 = vmatpush1.msra.mxu0 %v366
  %838 = vmatprep.subr.mxu0 0.0
  %839 = vmatpush1.msra.mxu0 %v369
  %840 = vmatprep.subr.mxu0 0.0
  %841 = vmatpush1.msra.mxu0 %v372
  %842 = vmatprep.subr.mxu0 0.0
  %843 = vmatpush1.msra.mxu0 %v375
  %844 = vmatprep.subr.mxu0 0.0
  %845 = vmatpush1.msra.mxu0 %v378
  %846 = vmatprep.subr.mxu0 0.0
  %847 = vmatpush1.msra.mxu0 %v381
  %848 = vmatprep.subr.mxu0 0.0
  %849 = vmatpush1.msra.mxu0 %v384
  %850 = vmatprep.subr.mxu0 0.0
  %851 = vmatpush1.msra.mxu0 %v387
  %852 = vmatprep.subr.mxu0 0.0
  %853 = vmatpush1.msra.mxu0 %v390
  %854 = vmatprep.subr.mxu0 0.0
  %855 = vmatpush1.msra.mxu0 %v393
  %856 = vmatprep.subr.mxu0 0.0
  %857 = vmatpush1.msra.mxu0 %v396
  %858 = vmatprep.subr.mxu0 0.0
  %859 = vmatpush1.msra.mxu0 %v399
  %860 = vmatprep.subr.mxu0 0.0
  %861 = vmatpush1.msra.mxu0 %v402
  %862 = vmatprep.subr.mxu0 0.0
  %863 = vmatpush1.msra.mxu0 %v405
  %864 = vmatprep.subr.mxu0 0.0
  %865 = vmatpush1.msra.mxu0 %v408
  %866 = vmatprep.subr.mxu0 0.0
  %867 = vmatpush1.msra.mxu0 0.0
  %868 = vmatprep.subr.mxu0 0.0
  %869 = vmatpush1.msra.mxu0 0.0
  %870 = vmatprep.subr.mxu0 0.0
  %871 = vmatpush1.msra.mxu0 0.0
  %872 = vmatprep.subr.mxu0 0.0
  %873 = vmatpush1.msra.mxu0 0.0
  %874 = vmatprep.subr.mxu0 0.0
  %875 = vmatpush1.msra.mxu0 0.0
  %876 = vmatprep.subr.mxu0 0.0
  %877 = vmatpush1.msra.mxu0 0.0
  %878 = vmatprep.subr.mxu0 0.0
  %879 = vmatpush1.msra.mxu0 0.0
  %880 = vmatprep.subr.mxu0 0.0
  %881 = vmatpush1.msra.mxu0 0.0
  %882 = vmatprep.subr.mxu0 0.0
  %883 = vmatpush1.msra.mxu0 0.0
  %884 = vmatprep.subr.mxu0 0.0
  %885 = vmatpush1.msra.mxu0 0.0
  %886 = vmatprep.subr.mxu0 0.0
  %887 = vmatpush1.msra.mxu0 0.0
  %888 = vmatprep.subr.mxu0 0.0
  %889 = vmatpush1.msra.mxu0 0.0
  %890 = vmatprep.subr.mxu0 0.0
  %891 = vmatpush1.msra.mxu0 0.0
  %892 = vmatprep.subr.mxu0 0.0
  %893 = vmatpush1.msra.mxu0 0.0
  %894 = vmatprep.subr.mxu0 0.0
  %895 = vmatpush1.msra.mxu0 0.0
  %896 = vmatprep.subr.mxu0 0.0
  %897 = vmatpush1.msra.mxu0 0.0
  %898 = vmatprep.mubr.f32.mxu0 0.0
  %899 = vmatmul.mubr.f32.gmra.mrb[0].mxu0 %v754
  %v900 = vpop.f32.mrb[0].mxu0
  %v901 = vadd.f32 0.0, %v900
  %v902 = vpop.f32.mrb[0].mxu0
  %903 = vdwg.mxu0
  %v904 = vadd.f32 %v760, %v830
  %v905 = vxor.u32 %v904, 2147483648
  %v906 = vmul.f32 %v905, 1.442695
  %v907 = vpow.pop %v906
  %v908 = vadd.f32 %v907, 1.0
  %v909 = vrcp.pop %v908
  %v910 = vmul.f32 1.0, %v909
  %v911 = vadd.f32 %v761, %v832
  %v912 = vxor.u32 %v911, 2147483648
  %v913 = vmul.f32 %v912, 1.442695
  %v914 = vpow.pop %v913
  %v915 = vadd.f32 %v914, 1.0
  %v916 = vrcp.pop %v915
  %v917 = vmul.f32 1.0, %v916
  %v918 = vadd.f32 %v901, %v575
  %v919 = vmul.f32 %v910, %v918
  %v920 = vadd.f32 %v762, %v919
  %v921 = vtanh.pop %v920
  %v922 = vsub.f32 1.0, %v917
  %v923 = vmul.f32 %v922, %v921
  %v924 = vmul.f32 %v917, %v754
  %v925 = vadd.f32 %v923, %v924
  %s926 = scalar_lea.vmem %s13, 16
  %927 = vst [vmem:[%s926] sm:$0xff] %v925
  %s928 = smul.u32 3, 3
  %s929 = smul.addr %s928, 8
  %s930 = scalar_lea.vmem [#allocation2], %s929
  %v931 = vld [vmem:[%s930] sm:$0xff]
  %v932 = vld [vmem:[%s930 + $0x8] sm:$0xff]
  %v933 = vld [vmem:[%s930 + $0x10] sm:$0xff]
  %934 = vmatprep.subr.mxu0 %v362
  %935 = vmatpush1.msra.mxu0 %v361
  %936 = vmatprep.subr.mxu0 %v365
  %937 = vmatpush1.msra.mxu0 %v364
  %938 = vmatprep.subr.mxu0 %v368
  %939 = vmatpush1.msra.mxu0 %v367
  %940 = vmatprep.subr.mxu0 %v371
  %941 = vmatpush1.msra.mxu0 %v370
  %942 = vmatprep.subr.mxu0 %v374
  %943 = vmatpush1.msra.mxu0 %v373
  %944 = vmatprep.subr.mxu0 %v377
  %945 = vmatpush1.msra.mxu0 %v376
  %946 = vmatprep.subr.mxu0 %v380
  %947 = vmatpush1.msra.mxu0 %v379
  %948 = vmatprep.subr.mxu0 %v383
  %949 = vmatpush1.msra.mxu0 %v382
  %950 = vmatprep.subr.mxu0 %v386
  %951 = vmatpush1.msra.mxu0 %v385
  %952 = vmatprep.subr.mxu0 %v389
  %953 = vmatpush1.msra.mxu0 %v388
  %954 = vmatprep.subr.mxu0 %v392
  %955 = vmatpush1.msra.mxu0 %v391
  %956 = vmatprep.subr.mxu0 %v395
  %957 = vmatpush1.msra.mxu0 %v394
  %958 = vmatprep.subr.mxu0 %v398
  %959 = vmatpush1.msra.mxu0 %v397
  %960 = vmatprep.subr.mxu0 %v401
  %961 = vmatpush1.msra.mxu0 %v400
  %962 = vmatprep.subr.mxu0 %v404
  %963 = vmatpush1.msra.mxu0 %v403
  %964 = vmatprep.subr.mxu0 %v407
  %965 = vmatpush1.msra.mxu0 %v406
  %966 = vmatprep.subr.mxu0 0.0
  %967 = vmatpush1.msra.mxu0 0.0
  %968 = vmatprep.subr.mxu0 0.0
  %969 = vmatpush1.msra.mxu0 0.0
  %970 = vmatprep.subr.mxu0 0.0
  %971 = vmatpush1.msra.mxu0 0.0
  %972 = vmatprep.subr.mxu0 0.0
  %973 = vmatpush1.msra.mxu0 0.0
  %974 = vmatprep.subr.mxu0 0.0
  %975 = vmatpush1.msra.mxu0 0.0
  %976 = vmatprep.subr.mxu0 0.0
  %977 = vmatpush1.msra.mxu0 0.0
  %978 = vmatprep.subr.mxu0 0.0
  %979 = vmatpush1.msra.mxu0 0.0
  %980 = vmatprep.subr.mxu0 0.0
  %981 = vmatpush1.msra.mxu0 0.0
  %982 = vmatprep.subr.mxu0 0.0
  %983 = vmatpush1.msra.mxu0 0.0
  %984 = vmatprep.subr.mxu0 0.0
  %985 = vmatpush1.msra.mxu0 0.0
  %986 = vmatprep.subr.mxu0 0.0
  %987 = vmatpush1.msra.mxu0 0.0
  %988 = vmatprep.subr.mxu0 0.0
  %989 = vmatpush1.msra.mxu0 0.0
  %990 = vmatprep.subr.mxu0 0.0
  %991 = vmatpush1.msra.mxu0 0.0
  %992 = vmatprep.subr.mxu0 0.0
  %993 = vmatpush1.msra.mxu0 0.0
  %994 = vmatprep.subr.mxu0 0.0
  %995 = vmatpush1.msra.mxu0 0.0
  %996 = vmatprep.subr.mxu0 0.0
  %997 = vmatpush1.msra.mxu0 0.0
  %998 = vmatprep.mubr.f32.mxu0 0.0
  %999 = vmatmul.mubr.f32.gmra.mrb[0].mxu0 %v925
  %v1000 = vpop.f32.mrb[0].mxu0
  %v1001 = vadd.f32 0.0, %v1000
  %v1002 = vpop.f32.mrb[0].mxu0
  %v1003 = vadd.f32 0.0, %v1002
  %1004 = vdwg.mxu0
  %1005 = vmatprep.subr.mxu0 0.0
  %1006 = vmatpush1.msra.mxu0 %v363
  %1007 = vmatprep.subr.mxu0 0.0
  %1008 = vmatpush1.msra.mxu0 %v366
  %1009 = vmatprep.subr.mxu0 0.0
  %1010 = vmatpush1.msra.mxu0 %v369
  %1011 = vmatprep.subr.mxu0 0.0
  %1012 = vmatpush1.msra.mxu0 %v372
  %1013 = vmatprep.subr.mxu0 0.0
  %1014 = vmatpush1.msra.mxu0 %v375
  %1015 = vmatprep.subr.mxu0 0.0
  %1016 = vmatpush1.msra.mxu0 %v378
  %1017 = vmatprep.subr.mxu0 0.0
  %1018 = vmatpush1.msra.mxu0 %v381
  %1019 = vmatprep.subr.mxu0 0.0
  %1020 = vmatpush1.msra.mxu0 %v384
  %1021 = vmatprep.subr.mxu0 0.0
  %1022 = vmatpush1.msra.mxu0 %v387
  %1023 = vmatprep.subr.mxu0 0.0
  %1024 = vmatpush1.msra.mxu0 %v390
  %1025 = vmatprep.subr.mxu0 0.0
  %1026 = vmatpush1.msra.mxu0 %v393
  %1027 = vmatprep.subr.mxu0 0.0
  %1028 = vmatpush1.msra.mxu0 %v396
  %1029 = vmatprep.subr.mxu0 0.0
  %1030 = vmatpush1.msra.mxu0 %v399
  %1031 = vmatprep.subr.mxu0 0.0
  %1032 = vmatpush1.msra.mxu0 %v402
  %1033 = vmatprep.subr.mxu0 0.0
  %1034 = vmatpush1.msra.mxu0 %v405
  %1035 = vmatprep.subr.mxu0 0.0
  %1036 = vmatpush1.msra.mxu0 %v408
  %1037 = vmatprep.subr.mxu0 0.0
  %1038 = vmatpush1.msra.mxu0 0.0
  %1039 = vmatprep.subr.mxu0 0.0
  %1040 = vmatpush1.msra.mxu0 0.0
  %1041 = vmatprep.subr.mxu0 0.0
  %1042 = vmatpush1.msra.mxu0 0.0
  %1043 = vmatprep.subr.mxu0 0.0
  %1044 = vmatpush1.msra.mxu0 0.0
  %1045 = vmatprep.subr.mxu0 0.0
  %1046 = vmatpush1.msra.mxu0 0.0
  %1047 = vmatprep.subr.mxu0 0.0
  %1048 = vmatpush1.msra.mxu0 0.0
  %1049 = vmatprep.subr.mxu0 0.0
  %1050 = vmatpush1.msra.mxu0 0.0
  %1051 = vmatprep.subr.mxu0 0.0
  %1052 = vmatpush1.msra.mxu0 0.0
  %1053 = vmatprep.subr.mxu0 0.0
  %1054 = vmatpush1.msra.mxu0 0.0
  %1055 = vmatprep.subr.mxu0 0.0
  %1056 = vmatpush1.msra.mxu0 0.0
  %1057 = vmatprep.subr.mxu0 0.0
  %1058 = vmatpush1.msra.mxu0 0.0
  %1059 = vmatprep.subr.mxu0 0.0
  %1060 = vmatpush1.msra.mxu0 0.0
  %1061 = vmatprep.subr.mxu0 0.0
  %1062 = vmatpush1.msra.mxu0 0.0
  %1063 = vmatprep.subr.mxu0 0.0
  %1064 = vmatpush1.msra.mxu0 0.0
  %1065 = vmatprep.subr.mxu0 0.0
  %1066 = vmatpush1.msra.mxu0 0.0
  %1067 = vmatprep.subr.mxu0 0.0
  %1068 = vmatpush1.msra.mxu0 0.0
  %1069 = vmatprep.mubr.f32.mxu0 0.0
  %1070 = vmatmul.mubr.f32.gmra.mrb[0].mxu0 %v925
  %v1071 = vpop.f32.mrb[0].mxu0
  %v1072 = vadd.f32 0.0, %v1071
  %v1073 = vpop.f32.mrb[0].mxu0
  %1074 = vdwg.mxu0
  %v1075 = vadd.f32 %v931, %v1001
  %v1076 = vxor.u32 %v1075, 2147483648
  %v1077 = vmul.f32 %v1076, 1.442695
  %v1078 = vpow.pop %v1077
  %v1079 = vadd.f32 %v1078, 1.0
  %v1080 = vrcp.pop %v1079
  %v1081 = vmul.f32 1.0, %v1080
  %v1082 = vadd.f32 %v932, %v1003
  %v1083 = vxor.u32 %v1082, 2147483648
  %v1084 = vmul.f32 %v1083, 1.442695
  %v1085 = vpow.pop %v1084
  %v1086 = vadd.f32 %v1085, 1.0
  %v1087 = vrcp.pop %v1086
  %v1088 = vmul.f32 1.0, %v1087
  %v1089 = vadd.f32 %v1072, %v575
  %v1090 = vmul.f32 %v1081, %v1089
  %v1091 = vadd.f32 %v933, %v1090
  %v1092 = vtanh.pop %v1091
  %v1093 = vsub.f32 1.0, %v1088
  %v1094 = vmul.f32 %v1093, %v1092
  %v1095 = vmul.f32 %v1088, %v925
  %v1096 = vadd.f32 %v1094, %v1095
  %s1097 = scalar_lea.vmem %s13, 24
  %1098 = vst [vmem:[%s1097] sm:$0xff] %v1096
  %s1099 = smul.u32 4, 3
  %s1100 = smul.addr %s1099, 8
  %s1101 = scalar_lea.vmem [#allocation2], %s1100
  %v1102 = vld [vmem:[%s1101] sm:$0xff]
  %v1103 = vld [vmem:[%s1101 + $0x8] sm:$0xff]
  %v1104 = vld [vmem:[%s1101 + $0x10] sm:$0xff]
  %1105 = vmatprep.subr.mxu0 %v362
  %1106 = vmatpush1.msra.mxu0 %v361
  %1107 = vmatprep.subr.mxu0 %v365
  %1108 = vmatpush1.msra.mxu0 %v364
  %1109 = vmatprep.subr.mxu0 %v368
  %1110 = vmatpush1.msra.mxu0 %v367
  %1111 = vmatprep.subr.mxu0 %v371
  %1112 = vmatpush1.msra.mxu0 %v370
  %1113 = vmatprep.subr.mxu0 %v374
  %1114 = vmatpush1.msra.mxu0 %v373
  %1115 = vmatprep.subr.mxu0 %v377
  %1116 = vmatpush1.msra.mxu0 %v376
  %1117 = vmatprep.subr.mxu0 %v380
  %1118 = vmatpush1.msra.mxu0 %v379
  %1119 = vmatprep.subr.mxu0 %v383
  %1120 = vmatpush1.msra.mxu0 %v382
  %1121 = vmatprep.subr.mxu0 %v386
  %1122 = vmatpush1.msra.mxu0 %v385
  %1123 = vmatprep.subr.mxu0 %v389
  %1124 = vmatpush1.msra.mxu0 %v388
  %1125 = vmatprep.subr.mxu0 %v392
  %1126 = vmatpush1.msra.mxu0 %v391
  %1127 = vmatprep.subr.mxu0 %v395
  %1128 = vmatpush1.msra.mxu0 %v394
  %1129 = vmatprep.subr.mxu0 %v398
  %1130 = vmatpush1.msra.mxu0 %v397
  %1131 = vmatprep.subr.mxu0 %v401
  %1132 = vmatpush1.msra.mxu0 %v400
  %1133 = vmatprep.subr.mxu0 %v404
  %1134 = vmatpush1.msra.mxu0 %v403
  %1135 = vmatprep.subr.mxu0 %v407
  %1136 = vmatpush1.msra.mxu0 %v406
  %1137 = vmatprep.subr.mxu0 0.0
  %1138 = vmatpush1.msra.mxu0 0.0
  %1139 = vmatprep.subr.mxu0 0.0
  %1140 = vmatpush1.msra.mxu0 0.0
  %1141 = vmatprep.subr.mxu0 0.0
  %1142 = vmatpush1.msra.mxu0 0.0
  %1143 = vmatprep.subr.mxu0 0.0
  %1144 = vmatpush1.msra.mxu0 0.0
  %1145 = vmatprep.subr.mxu0 0.0
  %1146 = vmatpush1.msra.mxu0 0.0
  %1147 = vmatprep.subr.mxu0 0.0
  %1148 = vmatpush1.msra.mxu0 0.0
  %1149 = vmatprep.subr.mxu0 0.0
  %1150 = vmatpush1.msra.mxu0 0.0
  %1151 = vmatprep.subr.mxu0 0.0
  %1152 = vmatpush1.msra.mxu0 0.0
  %1153 = vmatprep.subr.mxu0 0.0
  %1154 = vmatpush1.msra.mxu0 0.0
  %1155 = vmatprep.subr.mxu0 0.0
  %1156 = vmatpush1.msra.mxu0 0.0
  %1157 = vmatprep.subr.mxu0 0.0
  %1158 = vmatpush1.msra.mxu0 0.0
  %1159 = vmatprep.subr.mxu0 0.0
  %1160 = vmatpush1.msra.mxu0 0.0
  %1161 = vmatprep.subr.mxu0 0.0
  %1162 = vmatpush1.msra.mxu0 0.0
  %1163 = vmatprep.subr.mxu0 0.0
  %1164 = vmatpush1.msra.mxu0 0.0
  %1165 = vmatprep.subr.mxu0 0.0
  %1166 = vmatpush1.msra.mxu0 0.0
  %1167 = vmatprep.subr.mxu0 0.0
  %1168 = vmatpush1.msra.mxu0 0.0
  %1169 = vmatprep.mubr.f32.mxu0 0.0
  %1170 = vmatmul.mubr.f32.gmra.mrb[0].mxu0 %v1096
  %v1171 = vpop.f32.mrb[0].mxu0
  %v1172 = vadd.f32 0.0, %v1171
  %v1173 = vpop.f32.mrb[0].mxu0
  %v1174 = vadd.f32 0.0, %v1173
  %1175 = vdwg.mxu0
  %1176 = vmatprep.subr.mxu0 0.0
  %1177 = vmatpush1.msra.mxu0 %v363
  %1178 = vmatprep.subr.mxu0 0.0
  %1179 = vmatpush1.msra.mxu0 %v366
  %1180 = vmatprep.subr.mxu0 0.0
  %1181 = vmatpush1.msra.mxu0 %v369
  %1182 = vmatprep.subr.mxu0 0.0
  %1183 = vmatpush1.msra.mxu0 %v372
  %1184 = vmatprep.subr.mxu0 0.0
  %1185 = vmatpush1.msra.mxu0 %v375
  %1186 = vmatprep.subr.mxu0 0.0
  %1187 = vmatpush1.msra.mxu0 %v378
  %1188 = vmatprep.subr.mxu0 0.0
  %1189 = vmatpush1.msra.mxu0 %v381
  %1190 = vmatprep.subr.mxu0 0.0
  %1191 = vmatpush1.msra.mxu0 %v384
  %1192 = vmatprep.subr.mxu0 0.0
  %1193 = vmatpush1.msra.mxu0 %v387
  %1194 = vmatprep.subr.mxu0 0.0
  %1195 = vmatpush1.msra.mxu0 %v390
  %1196 = vmatprep.subr.mxu0 0.0
  %1197 = vmatpush1.msra.mxu0 %v393
  %1198 = vmatprep.subr.mxu0 0.0
  %1199 = vmatpush1.msra.mxu0 %v396
  %1200 = vmatprep.subr.mxu0 0.0
  %1201 = vmatpush1.msra.mxu0 %v399
  %1202 = vmatprep.subr.mxu0 0.0
  %1203 = vmatpush1.msra.mxu0 %v402
  %1204 = vmatprep.subr.mxu0 0.0
  %1205 = vmatpush1.msra.mxu0 %v405
  %1206 = vmatprep.subr.mxu0 0.0
  %1207 = vmatpush1.msra.mxu0 %v408
  %1208 = vmatprep.subr.mxu0 0.0
  %1209 = vmatpush1.msra.mxu0 0.0
  %1210 = vmatprep.subr.mxu0 0.0
  %1211 = vmatpush1.msra.mxu0 0.0
  %1212 = vmatprep.subr.mxu0 0.0
  %1213 = vmatpush1.msra.mxu0 0.0
  %1214 = vmatprep.subr.mxu0 0.0
  %1215 = vmatpush1.msra.mxu0 0.0
  %1216 = vmatprep.subr.mxu0 0.0
  %1217 = vmatpush1.msra.mxu0 0.0
  %1218 = vmatprep.subr.mxu0 0.0
  %1219 = vmatpush1.msra.mxu0 0.0
  %1220 = vmatprep.subr.mxu0 0.0
  %1221 = vmatpush1.msra.mxu0 0.0
  %1222 = vmatprep.subr.mxu0 0.0
  %1223 = vmatpush1.msra.mxu0 0.0
  %1224 = vmatprep.subr.mxu0 0.0
  %1225 = vmatpush1.msra.mxu0 0.0
  %1226 = vmatprep.subr.mxu0 0.0
  %1227 = vmatpush1.msra.mxu0 0.0
  %1228 = vmatprep.subr.mxu0 0.0
  %1229 = vmatpush1.msra.mxu0 0.0
  %1230 = vmatprep.subr.mxu0 0.0
  %1231 = vmatpush1.msra.mxu0 0.0
  %1232 = vmatprep.subr.mxu0 0.0
  %1233 = vmatpush1.msra.mxu0 0.0
  %1234 = vmatprep.subr.mxu0 0.0
  %1235 = vmatpush1.msra.mxu0 0.0
  %1236 = vmatprep.subr.mxu0 0.0
  %1237 = vmatpush1.msra.mxu0 0.0
  %1238 = vmatprep.subr.mxu0 0.0
  %1239 = vmatpush1.msra.mxu0 0.0
  %1240 = vmatprep.mubr.f32.mxu0 0.0
  %1241 = vmatmul.mubr.f32.gmra.mrb[0].mxu0 %v1096
  %v1242 = vpop.f32.mrb[0].mxu0
  %v1243 = vadd.f32 0.0, %v1242
  %v1244 = vpop.f32.mrb[0].mxu0
  %1245 = vdwg.mxu0
  %v1246 = vadd.f32 %v1102, %v1172
  %v1247 = vxor.u32 %v1246, 2147483648
  %v1248 = vmul.f32 %v1247, 1.442695
  %v1249 = vpow.pop %v1248
  %v1250 = vadd.f32 %v1249, 1.0
  %v1251 = vrcp.pop %v1250
  %v1252 = vmul.f32 1.0, %v1251
  %v1253 = vadd.f32 %v1103, %v1174
  %v1254 = vxor.u32 %v1253, 2147483648
  %v1255 = vmul.f32 %v1254, 1.442695
  %v1256 = vpow.pop %v1255
  %v1257 = vadd.f32 %v1256, 1.0
  %v1258 = vrcp.pop %v1257
  %v1259 = vmul.f32 1.0, %v1258
  %v1260 = vadd.f32 %v1243, %v575
  %v1261 = vmul.f32 %v1252, %v1260
  %v1262 = vadd.f32 %v1104, %v1261
  %v1263 = vtanh.pop %v1262
  %v1264 = vsub.f32 1.0, %v1259
  %v1265 = vmul.f32 %v1264, %v1263
  %v1266 = vmul.f32 %v1259, %v1096
  %v1267 = vadd.f32 %v1265, %v1266
  %s1268 = scalar_lea.vmem %s13, 32
  %1269 = vst [vmem:[%s1268] sm:$0xff] %v1267
  %s1270 = smul.u32 5, 3
  %s1271 = smul.addr %s1270, 8
  %s1272 = scalar_lea.vmem [#allocation2], %s1271
  %v1273 = vld [vmem:[%s1272] sm:$0xff]
  %v1274 = vld [vmem:[%s1272 + $0x8] sm:$0xff]
  %v1275 = vld [vmem:[%s1272 + $0x10] sm:$0xff]
  %1276 = vmatprep.subr.mxu0 %v362
  %1277 = vmatpush1.msra.mxu0 %v361
  %1278 = vmatprep.subr.mxu0 %v365
  %1279 = vmatpush1.msra.mxu0 %v364
  %1280 = vmatprep.subr.mxu0 %v368
  %1281 = vmatpush1.msra.mxu0 %v367
  %1282 = vmatprep.subr.mxu0 %v371
  %1283 = vmatpush1.msra.mxu0 %v370
  %1284 = vmatprep.subr.mxu0 %v374
  %1285 = vmatpush1.msra.mxu0 %v373
  %1286 = vmatprep.subr.mxu0 %v377
  %1287 = vmatpush1.msra.mxu0 %v376
  %1288 = vmatprep.subr.mxu0 %v380
  %1289 = vmatpush1.msra.mxu0 %v379
  %1290 = vmatprep.subr.mxu0 %v383
  %1291 = vmatpush1.msra.mxu0 %v382
  %1292 = vmatprep.subr.mxu0 %v386
  %1293 = vmatpush1.msra.mxu0 %v385
  %1294 = vmatprep.subr.mxu0 %v389
  %1295 = vmatpush1.msra.mxu0 %v388
  %1296 = vmatprep.subr.mxu0 %v392
  %1297 = vmatpush1.msra.mxu0 %v391
  %1298 = vmatprep.subr.mxu0 %v395
  %1299 = vmatpush1.msra.mxu0 %v394
  %1300 = vmatprep.subr.mxu0 %v398
  %1301 = vmatpush1.msra.mxu0 %v397
  %1302 = vmatprep.subr.mxu0 %v401
  %1303 = vmatpush1.msra.mxu0 %v400
  %1304 = vmatprep.subr.mxu0 %v404
  %1305 = vmatpush1.msra.mxu0 %v403
  %1306 = vmatprep.subr.mxu0 %v407
  %1307 = vmatpush1.msra.mxu0 %v406
  %1308 = vmatprep.subr.mxu0 0.0
  %1309 = vmatpush1.msra.mxu0 0.0
  %1310 = vmatprep.subr.mxu0 0.0
  %1311 = vmatpush1.msra.mxu0 0.0
  %1312 = vmatprep.subr.mxu0 0.0
  %1313 = vmatpush1.msra.mxu0 0.0
  %1314 = vmatprep.subr.mxu0 0.0
  %1315 = vmatpush1.msra.mxu0 0.0
  %1316 = vmatprep.subr.mxu0 0.0
  %1317 = vmatpush1.msra.mxu0 0.0
  %1318 = vmatprep.subr.mxu0 0.0
  %1319 = vmatpush1.msra.mxu0 0.0
  %1320 = vmatprep.subr.mxu0 0.0
  %1321 = vmatpush1.msra.mxu0 0.0
  %1322 = vmatprep.subr.mxu0 0.0
  %1323 = vmatpush1.msra.mxu0 0.0
  %1324 = vmatprep.subr.mxu0 0.0
  %1325 = vmatpush1.msra.mxu0 0.0
  %1326 = vmatprep.subr.mxu0 0.0
  %1327 = vmatpush1.msra.mxu0 0.0
  %1328 = vmatprep.subr.mxu0 0.0
  %1329 = vmatpush1.msra.mxu0 0.0
  %1330 = vmatprep.subr.mxu0 0.0
  %1331 = vmatpush1.msra.mxu0 0.0
  %1332 = vmatprep.subr.mxu0 0.0
  %1333 = vmatpush1.msra.mxu0 0.0
  %1334 = vmatprep.subr.mxu0 0.0
  %1335 = vmatpush1.msra.mxu0 0.0
  %1336 = vmatprep.subr.mxu0 0.0
  %1337 = vmatpush1.msra.mxu0 0.0
  %1338 = vmatprep.subr.mxu0 0.0
  %1339 = vmatpush1.msra.mxu0 0.0
  %1340 = vmatprep.mubr.f32.mxu0 0.0
  %1341 = vmatmul.mubr.f32.gmra.mrb[0].mxu0 %v1267
  %v1342 = vpop.f32.mrb[0].mxu0
  %v1343 = vadd.f32 0.0, %v1342
  %v1344 = vpop.f32.mrb[0].mxu0
  %v1345 = vadd.f32 0.0, %v1344
  %1346 = vdwg.mxu0
  %1347 = vmatprep.subr.mxu0 0.0
  %1348 = vmatpush1.msra.mxu0 %v363
  %1349 = vmatprep.subr.mxu0 0.0
  %1350 = vmatpush1.msra.mxu0 %v366
  %1351 = vmatprep.subr.mxu0 0.0
  %1352 = vmatpush1.msra.mxu0 %v369
  %1353 = vmatprep.subr.mxu0 0.0
  %1354 = vmatpush1.msra.mxu0 %v372
  %1355 = vmatprep.subr.mxu0 0.0
  %1356 = vmatpush1.msra.mxu0 %v375
  %1357 = vmatprep.subr.mxu0 0.0
  %1358 = vmatpush1.msra.mxu0 %v378
  %1359 = vmatprep.subr.mxu0 0.0
  %1360 = vmatpush1.msra.mxu0 %v381
  %1361 = vmatprep.subr.mxu0 0.0
  %1362 = vmatpush1.msra.mxu0 %v384
  %1363 = vmatprep.subr.mxu0 0.0
  %1364 = vmatpush1.msra.mxu0 %v387
  %1365 = vmatprep.subr.mxu0 0.0
  %1366 = vmatpush1.msra.mxu0 %v390
  %1367 = vmatprep.subr.mxu0 0.0
  %1368 = vmatpush1.msra.mxu0 %v393
  %1369 = vmatprep.subr.mxu0 0.0
  %1370 = vmatpush1.msra.mxu0 %v396
  %1371 = vmatprep.subr.mxu0 0.0
  %1372 = vmatpush1.msra.mxu0 %v399
  %1373 = vmatprep.subr.mxu0 0.0
  %1374 = vmatpush1.msra.mxu0 %v402
  %1375 = vmatprep.subr.mxu0 0.0
  %1376 = vmatpush1.msra.mxu0 %v405
  %1377 = vmatprep.subr.mxu0 0.0
  %1378 = vmatpush1.msra.mxu0 %v408
  %1379 = vmatprep.subr.mxu0 0.0
  %1380 = vmatpush1.msra.mxu0 0.0
  %1381 = vmatprep.subr.mxu0 0.0
  %1382 = vmatpush1.msra.mxu0 0.0
  %1383 = vmatprep.subr.mxu0 0.0
  %1384 = vmatpush1.msra.mxu0 0.0
  %1385 = vmatprep.subr.mxu0 0.0
  %1386 = vmatpush1.msra.mxu0 0.0
  %1387 = vmatprep.subr.mxu0 0.0
  %1388 = vmatpush1.msra.mxu0 0.0
  %1389 = vmatprep.subr.mxu0 0.0
  %1390 = vmatpush1.msra.mxu0 0.0
  %1391 = vmatprep.subr.mxu0 0.0
  %1392 = vmatpush1.msra.mxu0 0.0
  %1393 = vmatprep.subr.mxu0 0.0
  %1394 = vmatpush1.msra.mxu0 0.0
  %1395 = vmatprep.subr.mxu0 0.0
  %1396 = vmatpush1.msra.mxu0 0.0
  %1397 = vmatprep.subr.mxu0 0.0
  %1398 = vmatpush1.msra.mxu0 0.0
  %1399 = vmatprep.subr.mxu0 0.0
  %1400 = vmatpush1.msra.mxu0 0.0
  %1401 = vmatprep.subr.mxu0 0.0
  %1402 = vmatpush1.msra.mxu0 0.0
  %1403 = vmatprep.subr.mxu0 0.0
  %1404 = vmatpush1.msra.mxu0 0.0
  %1405 = vmatprep.subr.mxu0 0.0
  %1406 = vmatpush1.msra.mxu0 0.0
  %1407 = vmatprep.subr.mxu0 0.0
  %1408 = vmatpush1.msra.mxu0 0.0
  %1409 = vmatprep.subr.mxu0 0.0
  %1410 = vmatpush1.msra.mxu0 0.0
  %1411 = vmatprep.mubr.f32.mxu0 0.0
  %1412 = vmatmul.mubr.f32.gmra.mrb[0].mxu0 %v1267
  %v1413 = vpop.f32.mrb[0].mxu0
  %v1414 = vadd.f32 0.0, %v1413
  %v1415 = vpop.f32.mrb[0].mxu0
  %1416 = vdwg.mxu0
  %v1417 = vadd.f32 %v1273, %v1343
  %v1418 = vxor.u32 %v1417, 2147483648
  %v1419 = vmul.f32 %v1418, 1.442695
  %v1420 = vpow.pop %v1419
  %v1421 = vadd.f32 %v1420, 1.0
  %v1422 = vrcp.pop %v1421
  %v1423 = vmul.f32 1.0, %v1422
  %v1424 = vadd.f32 %v1274, %v1345
  %v1425 = vxor.u32 %v1424, 2147483648
  %v1426 = vmul.f32 %v1425, 1.442695
  %v1427 = vpow.pop %v1426
  %v1428 = vadd.f32 %v1427, 1.0
  %v1429 = vrcp.pop %v1428
  %v1430 = vmul.f32 1.0, %v1429
  %v1431 = vadd.f32 %v1414, %v575
  %v1432 = vmul.f32 %v1423, %v1431
  %v1433 = vadd.f32 %v1275, %v1432
  %v1434 = vtanh.pop %v1433
  %v1435 = vsub.f32 1.0, %v1430
  %v1436 = vmul.f32 %v1435, %v1434
  %v1437 = vmul.f32 %v1430, %v1267
  %v1438 = vadd.f32 %v1436, %v1437
  %s1439 = scalar_lea.vmem %s13, 40
  %1440 = vst [vmem:[%s1439] sm:$0xff] %v1438
  %s1441 = smul.u32 6, 3
  %s1442 = smul.addr %s1441, 8
  %s1443 = scalar_lea.vmem [#allocation2], %s1442
  %v1444 = vld [vmem:[%s1443] sm:$0xff]
  %v1445 = vld [vmem:[%s1443 + $0x8] sm:$0xff]
  %v1446 = vld [vmem:[%s1443 + $0x10] sm:$0xff]
  %1447 = vmatprep.subr.mxu0 %v362
  %1448 = vmatpush1.msra.mxu0 %v361
  %1449 = vmatprep.subr.mxu0 %v365
  %1450 = vmatpush1.msra.mxu0 %v364
  %1451 = vmatprep.subr.mxu0 %v368
  %1452 = vmatpush1.msra.mxu0 %v367
  %1453 = vmatprep.subr.mxu0 %v371
  %1454 = vmatpush1.msra.mxu0 %v370
  %1455 = vmatprep.subr.mxu0 %v374
  %1456 = vmatpush1.msra.mxu0 %v373
  %1457 = vmatprep.subr.mxu0 %v377
  %1458 = vmatpush1.msra.mxu0 %v376
  %1459 = vmatprep.subr.mxu0 %v380
  %1460 = vmatpush1.msra.mxu0 %v379
  %1461 = vmatprep.subr.mxu0 %v383
  %1462 = vmatpush1.msra.mxu0 %v382
  %1463 = vmatprep.subr.mxu0 %v386
  %1464 = vmatpush1.msra.mxu0 %v385
  %1465 = vmatprep.subr.mxu0 %v389
  %1466 = vmatpush1.msra.mxu0 %v388
  %1467 = vmatprep.subr.mxu0 %v392
  %1468 = vmatpush1.msra.mxu0 %v391
  %1469 = vmatprep.subr.mxu0 %v395
  %1470 = vmatpush1.msra.mxu0 %v394
  %1471 = vmatprep.subr.mxu0 %v398
  %1472 = vmatpush1.msra.mxu0 %v397
  %1473 = vmatprep.subr.mxu0 %v401
  %1474 = vmatpush1.msra.mxu0 %v400
  %1475 = vmatprep.subr.mxu0 %v404
  %1476 = vmatpush1.msra.mxu0 %v403
  %1477 = vmatprep.subr.mxu0 %v407
  %1478 = vmatpush1.msra.mxu0 %v406
  %1479 = vmatprep.subr.mxu0 0.0
  %1480 = vmatpush1.msra.mxu0 0.0
  %1481 = vmatprep.subr.mxu0 0.0
  %1482 = vmatpush1.msra.mxu0 0.0
  %1483 = vmatprep.subr.mxu0 0.0
  %1484 = vmatpush1.msra.mxu0 0.0
  %1485 = vmatprep.subr.mxu0 0.0
  %1486 = vmatpush1.msra.mxu0 0.0
  %1487 = vmatprep.subr.mxu0 0.0
  %1488 = vmatpush1.msra.mxu0 0.0
  %1489 = vmatprep.subr.mxu0 0.0
  %1490 = vmatpush1.msra.mxu0 0.0
  %1491 = vmatprep.subr.mxu0 0.0
  %1492 = vmatpush1.msra.mxu0 0.0
  %1493 = vmatprep.subr.mxu0 0.0
  %1494 = vmatpush1.msra.mxu0 0.0
  %1495 = vmatprep.subr.mxu0 0.0
  %1496 = vmatpush1.msra.mxu0 0.0
  %1497 = vmatprep.subr.mxu0 0.0
  %1498 = vmatpush1.msra.mxu0 0.0
  %1499 = vmatprep.subr.mxu0 0.0
  %1500 = vmatpush1.msra.mxu0 0.0
  %1501 = vmatprep.subr.mxu0 0.0
  %1502 = vmatpush1.msra.mxu0 0.0
  %1503 = vmatprep.subr.mxu0 0.0
  %1504 = vmatpush1.msra.mxu0 0.0
  %1505 = vmatprep.subr.mxu0 0.0
  %1506 = vmatpush1.msra.mxu0 0.0
  %1507 = vmatprep.subr.mxu0 0.0
  %1508 = vmatpush1.msra.mxu0 0.0
  %1509 = vmatprep.subr.mxu0 0.0
  %1510 = vmatpush1.msra.mxu0 0.0
  %1511 = vmatprep.mubr.f32.mxu0 0.0
  %1512 = vmatmul.mubr.f32.gmra.mrb[0].mxu0 %v1438
  %v1513 = vpop.f32.mrb[0].mxu0
  %v1514 = vadd.f32 0.0, %v1513
  %v1515 = vpop.f32.mrb[0].mxu0
  %v1516 = vadd.f32 0.0, %v1515
  %1517 = vdwg.mxu0
  %1518 = vmatprep.subr.mxu0 0.0
  %1519 = vmatpush1.msra.mxu0 %v363
  %1520 = vmatprep.subr.mxu0 0.0
  %1521 = vmatpush1.msra.mxu0 %v366
  %1522 = vmatprep.subr.mxu0 0.0
  %1523 = vmatpush1.msra.mxu0 %v369
  %1524 = vmatprep.subr.mxu0 0.0
  %1525 = vmatpush1.msra.mxu0 %v372
  %1526 = vmatprep.subr.mxu0 0.0
  %1527 = vmatpush1.msra.mxu0 %v375
  %1528 = vmatprep.subr.mxu0 0.0
  %1529 = vmatpush1.msra.mxu0 %v378
  %1530 = vmatprep.subr.mxu0 0.0
  %1531 = vmatpush1.msra.mxu0 %v381
  %1532 = vmatprep.subr.mxu0 0.0
  %1533 = vmatpush1.msra.mxu0 %v384
  %1534 = vmatprep.subr.mxu0 0.0
  %1535 = vmatpush1.msra.mxu0 %v387
  %1536 = vmatprep.subr.mxu0 0.0
  %1537 = vmatpush1.msra.mxu0 %v390
  %1538 = vmatprep.subr.mxu0 0.0
  %1539 = vmatpush1.msra.mxu0 %v393
  %1540 = vmatprep.subr.mxu0 0.0
  %1541 = vmatpush1.msra.mxu0 %v396
  %1542 = vmatprep.subr.mxu0 0.0
  %1543 = vmatpush1.msra.mxu0 %v399
  %1544 = vmatprep.subr.mxu0 0.0
  %1545 = vmatpush1.msra.mxu0 %v402
  %1546 = vmatprep.subr.mxu0 0.0
  %1547 = vmatpush1.msra.mxu0 %v405
  %1548 = vmatprep.subr.mxu0 0.0
  %1549 = vmatpush1.msra.mxu0 %v408
  %1550 = vmatprep.subr.mxu0 0.0
  %1551 = vmatpush1.msra.mxu0 0.0
  %1552 = vmatprep.subr.mxu0 0.0
  %1553 = vmatpush1.msra.mxu0 0.0
  %1554 = vmatprep.subr.mxu0 0.0
  %1555 = vmatpush1.msra.mxu0 0.0
  %1556 = vmatprep.subr.mxu0 0.0
  %1557 = vmatpush1.msra.mxu0 0.0
  %1558 = vmatprep.subr.mxu0 0.0
  %1559 = vmatpush1.msra.mxu0 0.0
  %1560 = vmatprep.subr.mxu0 0.0
  %1561 = vmatpush1.msra.mxu0 0.0
  %1562 = vmatprep.subr.mxu0 0.0
  %1563 = vmatpush1.msra.mxu0 0.0
  %1564 = vmatprep.subr.mxu0 0.0
  %1565 = vmatpush1.msra.mxu0 0.0
  %1566 = vmatprep.subr.mxu0 0.0
  %1567 = vmatpush1.msra.mxu0 0.0
  %1568 = vmatprep.subr.mxu0 0.0
  %1569 = vmatpush1.msra.mxu0 0.0
  %1570 = vmatprep.subr.mxu0 0.0
  %1571 = vmatpush1.msra.mxu0 0.0
  %1572 = vmatprep.subr.mxu0 0.0
  %1573 = vmatpush1.msra.mxu0 0.0
  %1574 = vmatprep.subr.mxu0 0.0
  %1575 = vmatpush1.msra.mxu0 0.0
  %1576 = vmatprep.subr.mxu0 0.0
  %1577 = vmatpush1.msra.mxu0 0.0
  %1578 = vmatprep.subr.mxu0 0.0
  %1579 = vmatpush1.msra.mxu0 0.0
  %1580 = vmatprep.subr.mxu0 0.0
  %1581 = vmatpush1.msra.mxu0 0.0
  %1582 = vmatprep.mubr.f32.mxu0 0.0
  %1583 = vmatmul.mubr.f32.gmra.mrb[0].mxu0 %v1438
  %v1584 = vpop.f32.mrb[0].mxu0
  %v1585 = vadd.f32 0.0, %v1584
  %v1586 = vpop.f32.mrb[0].mxu0
  %1587 = vdwg.mxu0
  %v1588 = vadd.f32 %v1444, %v1514
  %v1589 = vxor.u32 %v1588, 2147483648
  %v1590 = vmul.f32 %v1589, 1.442695
  %v1591 = vpow.pop %v1590
  %v1592 = vadd.f32 %v1591, 1.0
  %v1593 = vrcp.pop %v1592
  %v1594 = vmul.f32 1.0, %v1593
  %v1595 = vadd.f32 %v1445, %v1516
  %v1596 = vxor.u32 %v1595, 2147483648
  %v1597 = vmul.f32 %v1596, 1.442695
  %v1598 = vpow.pop %v1597
  %v1599 = vadd.f32 %v1598, 1.0
  %v1600 = vrcp.pop %v1599
  %v1601 = vmul.f32 1.0, %v1600
  %v1602 = vadd.f32 %v1585, %v575
  %v1603 = vmul.f32 %v1594, %v1602
  %v1604 = vadd.f32 %v1446, %v1603
  %v1605 = vtanh.pop %v1604
  %v1606 = vsub.f32 1.0, %v1601
  %v1607 = vmul.f32 %v1606, %v1605
  %v1608 = vmul.f32 %v1601, %v1438
  %v1609 = vadd.f32 %v1607, %v1608
  %s1610 = scalar_lea.vmem %s13, 48
  %1611 = vst [vmem:[%s1610] sm:$0xff] %v1609
  %s1612 = smul.u32 7, 3
  %s1613 = smul.addr %s1612, 8
  %s1614 = scalar_lea.vmem [#allocation2], %s1613
  %v1615 = vld [vmem:[%s1614] sm:$0xff]
  %v1616 = vld [vmem:[%s1614 + $0x8] sm:$0xff]
  %v1617 = vld [vmem:[%s1614 + $0x10] sm:$0xff]
  %1618 = vmatprep.subr.mxu0 %v362
  %1619 = vmatpush1.msra.mxu0 %v361
  %1620 = vmatprep.subr.mxu0 %v365
  %1621 = vmatpush1.msra.mxu0 %v364
  %1622 = vmatprep.subr.mxu0 %v368
  %1623 = vmatpush1.msra.mxu0 %v367
  %1624 = vmatprep.subr.mxu0 %v371
  %1625 = vmatpush1.msra.mxu0 %v370
  %1626 = vmatprep.subr.mxu0 %v374
  %1627 = vmatpush1.msra.mxu0 %v373
  %1628 = vmatprep.subr.mxu0 %v377
  %1629 = vmatpush1.msra.mxu0 %v376
  %1630 = vmatprep.subr.mxu0 %v380
  %1631 = vmatpush1.msra.mxu0 %v379
  %1632 = vmatprep.subr.mxu0 %v383
  %1633 = vmatpush1.msra.mxu0 %v382
  %1634 = vmatprep.subr.mxu0 %v386
  %1635 = vmatpush1.msra.mxu0 %v385
  %1636 = vmatprep.subr.mxu0 %v389
  %1637 = vmatpush1.msra.mxu0 %v388
  %1638 = vmatprep.subr.mxu0 %v392
  %1639 = vmatpush1.msra.mxu0 %v391
  %1640 = vmatprep.subr.mxu0 %v395
  %1641 = vmatpush1.msra.mxu0 %v394
  %1642 = vmatprep.subr.mxu0 %v398
  %1643 = vmatpush1.msra.mxu0 %v397
  %1644 = vmatprep.subr.mxu0 %v401
  %1645 = vmatpush1.msra.mxu0 %v400
  %1646 = vmatprep.subr.mxu0 %v404
  %1647 = vmatpush1.msra.mxu0 %v403
  %1648 = vmatprep.subr.mxu0 %v407
  %1649 = vmatpush1.msra.mxu0 %v406
  %1650 = vmatprep.subr.mxu0 0.0
  %1651 = vmatpush1.msra.mxu0 0.0
  %1652 = vmatprep.subr.mxu0 0.0
  %1653 = vmatpush1.msra.mxu0 0.0
  %1654 = vmatprep.subr.mxu0 0.0
  %1655 = vmatpush1.msra.mxu0 0.0
  %1656 = vmatprep.subr.mxu0 0.0
  %1657 = vmatpush1.msra.mxu0 0.0
  %1658 = vmatprep.subr.mxu0 0.0
  %1659 = vmatpush1.msra.mxu0 0.0
  %1660 = vmatprep.subr.mxu0 0.0
  %1661 = vmatpush1.msra.mxu0 0.0
  %1662 = vmatprep.subr.mxu0 0.0
  %1663 = vmatpush1.msra.mxu0 0.0
  %1664 = vmatprep.subr.mxu0 0.0
  %1665 = vmatpush1.msra.mxu0 0.0
  %1666 = vmatprep.subr.mxu0 0.0
  %1667 = vmatpush1.msra.mxu0 0.0
  %1668 = vmatprep.subr.mxu0 0.0
  %1669 = vmatpush1.msra.mxu0 0.0
  %1670 = vmatprep.subr.mxu0 0.0
  %1671 = vmatpush1.msra.mxu0 0.0
  %1672 = vmatprep.subr.mxu0 0.0
  %1673 = vmatpush1.msra.mxu0 0.0
  %1674 = vmatprep.subr.mxu0 0.0
  %1675 = vmatpush1.msra.mxu0 0.0
  %1676 = vmatprep.subr.mxu0 0.0
  %1677 = vmatpush1.msra.mxu0 0.0
  %1678 = vmatprep.subr.mxu0 0.0
  %1679 = vmatpush1.msra.mxu0 0.0
  %1680 = vmatprep.subr.mxu0 0.0
  %1681 = vmatpush1.msra.mxu0 0.0
  %1682 = vmatprep.mubr.f32.mxu0 0.0
  %1683 = vmatmul.mubr.f32.gmra.mrb[0].mxu0 %v1609
  %v1684 = vpop.f32.mrb[0].mxu0
  %v1685 = vadd.f32 0.0, %v1684
  %v1686 = vpop.f32.mrb[0].mxu0
  %v1687 = vadd.f32 0.0, %v1686
  %1688 = vdwg.mxu0
  %1689 = vmatprep.subr.mxu0 0.0
  %1690 = vmatpush1.msra.mxu0 %v363
  %1691 = vmatprep.subr.mxu0 0.0
  %1692 = vmatpush1.msra.mxu0 %v366
  %1693 = vmatprep.subr.mxu0 0.0
  %1694 = vmatpush1.msra.mxu0 %v369
  %1695 = vmatprep.subr.mxu0 0.0
  %1696 = vmatpush1.msra.mxu0 %v372
  %1697 = vmatprep.subr.mxu0 0.0
  %1698 = vmatpush1.msra.mxu0 %v375
  %1699 = vmatprep.subr.mxu0 0.0
  %1700 = vmatpush1.msra.mxu0 %v378
  %1701 = vmatprep.subr.mxu0 0.0
  %1702 = vmatpush1.msra.mxu0 %v381
  %1703 = vmatprep.subr.mxu0 0.0
  %1704 = vmatpush1.msra.mxu0 %v384
  %1705 = vmatprep.subr.mxu0 0.0
  %1706 = vmatpush1.msra.mxu0 %v387
  %1707 = vmatprep.subr.mxu0 0.0
  %1708 = vmatpush1.msra.mxu0 %v390
  %1709 = vmatprep.subr.mxu0 0.0
  %1710 = vmatpush1.msra.mxu0 %v393
  %1711 = vmatprep.subr.mxu0 0.0
  %1712 = vmatpush1.msra.mxu0 %v396
  %1713 = vmatprep.subr.mxu0 0.0
  %1714 = vmatpush1.msra.mxu0 %v399
  %1715 = vmatprep.subr.mxu0 0.0
  %1716 = vmatpush1.msra.mxu0 %v402
  %1717 = vmatprep.subr.mxu0 0.0
  %1718 = vmatpush1.msra.mxu0 %v405
  %1719 = vmatprep.subr.mxu0 0.0
  %1720 = vmatpush1.msra.mxu0 %v408
  %1721 = vmatprep.subr.mxu0 0.0
  %1722 = vmatpush1.msra.mxu0 0.0
  %1723 = vmatprep.subr.mxu0 0.0
  %1724 = vmatpush1.msra.mxu0 0.0
  %1725 = vmatprep.subr.mxu0 0.0
  %1726 = vmatpush1.msra.mxu0 0.0
  %1727 = vmatprep.subr.mxu0 0.0
  %1728 = vmatpush1.msra.mxu0 0.0
  %1729 = vmatprep.subr.mxu0 0.0
  %1730 = vmatpush1.msra.mxu0 0.0
  %1731 = vmatprep.subr.mxu0 0.0
  %1732 = vmatpush1.msra.mxu0 0.0
  %1733 = vmatprep.subr.mxu0 0.0
  %1734 = vmatpush1.msra.mxu0 0.0
  %1735 = vmatprep.subr.mxu0 0.0
  %1736 = vmatpush1.msra.mxu0 0.0
  %1737 = vmatprep.subr.mxu0 0.0
  %1738 = vmatpush1.msra.mxu0 0.0
  %1739 = vmatprep.subr.mxu0 0.0
  %1740 = vmatpush1.msra.mxu0 0.0
  %1741 = vmatprep.subr.mxu0 0.0
  %1742 = vmatpush1.msra.mxu0 0.0
  %1743 = vmatprep.subr.mxu0 0.0
  %1744 = vmatpush1.msra.mxu0 0.0
  %1745 = vmatprep.subr.mxu0 0.0
  %1746 = vmatpush1.msra.mxu0 0.0
  %1747 = vmatprep.subr.mxu0 0.0
  %1748 = vmatpush1.msra.mxu0 0.0
  %1749 = vmatprep.subr.mxu0 0.0
  %1750 = vmatpush1.msra.mxu0 0.0
  %1751 = vmatprep.subr.mxu0 0.0
  %1752 = vmatpush1.msra.mxu0 0.0
  %1753 = vmatprep.mubr.f32.mxu0 0.0
  %1754 = vmatmul.mubr.f32.gmra.mrb[0].mxu0 %v1609
  %v1755 = vpop.f32.mrb[0].mxu0
  %v1756 = vadd.f32 0.0, %v1755
  %v1757 = vpop.f32.mrb[0].mxu0
  %1758 = vdwg.mxu0
  %v1759 = vadd.f32 %v1615, %v1685
  %v1760 = vxor.u32 %v1759, 2147483648
  %v1761 = vmul.f32 %v1760, 1.442695
  %v1762 = vpow.pop %v1761
  %v1763 = vadd.f32 %v1762, 1.0
  %v1764 = vrcp.pop %v1763
  %v1765 = vmul.f32 1.0, %v1764
  %v1766 = vadd.f32 %v1616, %v1687
  %v1767 = vxor.u32 %v1766, 2147483648
  %v1768 = vmul.f32 %v1767, 1.442695
  %v1769 = vpow.pop %v1768
  %v1770 = vadd.f32 %v1769, 1.0
  %v1771 = vrcp.pop %v1770
  %v1772 = vmul.f32 1.0, %v1771
  %v1773 = vadd.f32 %v1756, %v575
  %v1774 = vmul.f32 %v1765, %v1773
  %v1775 = vadd.f32 %v1617, %v1774
  %v1776 = vtanh.pop %v1775
  %v1777 = vsub.f32 1.0, %v1772
  %v1778 = vmul.f32 %v1777, %v1776
  %v1779 = vmul.f32 %v1772, %v1609
  %v1780 = vadd.f32 %v1778, %v1779
  %s1781 = scalar_lea.vmem %s13, 56
  %1782 = vst [vmem:[%s1781] sm:$0xff] %v1780
  %v1783 = vld [vmem:[%s5] sm:$0xff]
  %v1784 = vld [vmem:[%s5 + $0x8] sm:$0xff]
  %v1785 = vld [vmem:[%s5 + $0x10] sm:$0xff]
  %v1786 = vld [vmem:[%s5 + $0x18] sm:$0xff]
  %v1787 = vld [vmem:[%s5 + $0x20] sm:$0xff]
  %v1788 = vld [vmem:[%s5 + $0x28] sm:$0xff]
  %v1789 = vld [vmem:[%s5 + $0x30] sm:$0xff]
  %v1790 = vld [vmem:[%s5 + $0x38] sm:$0xff]
  %v1791 = vld [vmem:[%s5 + $0x40] sm:$0xff]
  %v1792 = vld [vmem:[%s5 + $0x48] sm:$0xff]
  %v1793 = vld [vmem:[%s5 + $0x50] sm:$0xff]
  %v1794 = vld [vmem:[%s5 + $0x58] sm:$0xff]
  %v1795 = vld [vmem:[%s5 + $0x60] sm:$0xff]
  %v1796 = vld [vmem:[%s5 + $0x68] sm:$0xff]
  %v1797 = vld [vmem:[%s5 + $0x70] sm:$0xff]
  %v1798 = vld [vmem:[%s5 + $0x78] sm:$0xff]
  %v1799 = vld [vmem:[%s6] sm:$0x1]
  %v1801 = vlaneseq
  %v1802 = vshrl.u32 %v1801, 7
  %v1803 = vsub.s32 0, %v1802
  %v1804 = vrot.slane %v1799, %v1803
  %1806 = vmatprep.subr.mxu0 0.0
  %1807 = vmatpush1.msra.mxu0 %v1783
  %1808 = vmatprep.subr.mxu0 0.0
  %1809 = vmatpush1.msra.mxu0 %v1784
  %1810 = vmatprep.subr.mxu0 0.0
  %1811 = vmatpush1.msra.mxu0 %v1785
  %1812 = vmatprep.subr.mxu0 0.0
  %1813 = vmatpush1.msra.mxu0 %v1786
  %1814 = vmatprep.subr.mxu0 0.0
  %1815 = vmatpush1.msra.mxu0 %v1787
  %1816 = vmatprep.subr.mxu0 0.0
  %1817 = vmatpush1.msra.mxu0 %v1788
  %1818 = vmatprep.subr.mxu0 0.0
  %1819 = vmatpush1.msra.mxu0 %v1789
  %1820 = vmatprep.subr.mxu0 0.0
  %1821 = vmatpush1.msra.mxu0 %v1790
  %1822 = vmatprep.subr.mxu0 0.0
  %1823 = vmatpush1.msra.mxu0 %v1791
  %1824 = vmatprep.subr.mxu0 0.0
  %1825 = vmatpush1.msra.mxu0 %v1792
  %1826 = vmatprep.subr.mxu0 0.0
  %1827 = vmatpush1.msra.mxu0 %v1793
  %1828 = vmatprep.subr.mxu0 0.0
  %1829 = vmatpush1.msra.mxu0 %v1794
  %1830 = vmatprep.subr.mxu0 0.0
  %1831 = vmatpush1.msra.mxu0 %v1795
  %1832 = vmatprep.subr.mxu0 0.0
  %1833 = vmatpush1.msra.mxu0 %v1796
  %1834 = vmatprep.subr.mxu0 0.0
  %1835 = vmatpush1.msra.mxu0 %v1797
  %1836 = vmatprep.subr.mxu0 0.0
  %1837 = vmatpush1.msra.mxu0 %v1798
  %1838 = vmatprep.subr.mxu0 0.0
  %1839 = vmatpush1.msra.mxu0 0.0
  %1840 = vmatprep.subr.mxu0 0.0
  %1841 = vmatpush1.msra.mxu0 0.0
  %1842 = vmatprep.subr.mxu0 0.0
  %1843 = vmatpush1.msra.mxu0 0.0
  %1844 = vmatprep.subr.mxu0 0.0
  %1845 = vmatpush1.msra.mxu0 0.0
  %1846 = vmatprep.subr.mxu0 0.0
  %1847 = vmatpush1.msra.mxu0 0.0
  %1848 = vmatprep.subr.mxu0 0.0
  %1849 = vmatpush1.msra.mxu0 0.0
  %1850 = vmatprep.subr.mxu0 0.0
  %1851 = vmatpush1.msra.mxu0 0.0
  %1852 = vmatprep.subr.mxu0 0.0
  %1853 = vmatpush1.msra.mxu0 0.0
  %1854 = vmatprep.subr.mxu0 0.0
  %1855 = vmatpush1.msra.mxu0 0.0
  %1856 = vmatprep.subr.mxu0 0.0
  %1857 = vmatpush1.msra.mxu0 0.0
  %1858 = vmatprep.subr.mxu0 0.0
  %1859 = vmatpush1.msra.mxu0 0.0
  %1860 = vmatprep.subr.mxu0 0.0
  %1861 = vmatpush1.msra.mxu0 0.0
  %1862 = vmatprep.subr.mxu0 0.0
  %1863 = vmatpush1.msra.mxu0 0.0
  %1864 = vmatprep.subr.mxu0 0.0
  %1865 = vmatpush1.msra.mxu0 0.0
  %1866 = vmatprep.subr.mxu0 0.0
  %1867 = vmatpush1.msra.mxu0 0.0
  %1868 = vmatprep.subr.mxu0 0.0
  %1869 = vmatpush1.msra.mxu0 0.0
  %1870 = vmatprep.mubr.f32.mxu0 0.0
  %1871 = vmatmul.mubr.f32.gmra.mrb[0].mxu0 %v1780
  %v1872 = vpop.f32.mrb[0].mxu0
  %v1873 = vadd.f32 %v1804, %v1872
  %v1874 = vpop.f32.mrb[0].mxu0
  %1875 = vdwg.mxu0
  %v1876 = vtanh.pop %v1873
  %v1877 = vld [vmem:[%s8] sm:$0xff]
  %v1878 = vld [vmem:[%s8 + $0x8] sm:$0xff]
  %v1879 = vld [vmem:[%s8 + $0x10] sm:$0xff]
  %v1880 = vld [vmem:[%s8 + $0x18] sm:$0xff]
  %v1881 = vld [vmem:[%s8 + $0x20] sm:$0xff]
  %v1882 = vld [vmem:[%s8 + $0x28] sm:$0xff]
  %v1883 = vld [vmem:[%s8 + $0x30] sm:$0xff]
  %v1884 = vld [vmem:[%s8 + $0x38] sm:$0xff]
  %v1885 = vld [vmem:[%s8 + $0x40] sm:$0xff]
  %v1886 = vld [vmem:[%s8 + $0x48] sm:$0xff]
  %v1887 = vld [vmem:[%s8 + $0x50] sm:$0xff]
  %v1888 = vld [vmem:[%s8 + $0x58] sm:$0xff]
  %v1889 = vld [vmem:[%s8 + $0x60] sm:$0xff]
  %v1890 = vld [vmem:[%s8 + $0x68] sm:$0xff]
  %v1891 = vld [vmem:[%s8 + $0x70] sm:$0xff]
  %v1892 = vld [vmem:[%s8 + $0x78] sm:$0xff]
  %v1893 = vld [vmem:[%s8 + $0x80] sm:$0xff]
  %v1894 = vld [vmem:[%s8 + $0x88] sm:$0xff]
  %v1895 = vld [vmem:[%s8 + $0x90] sm:$0xff]
  %v1896 = vld [vmem:[%s8 + $0x98] sm:$0xff]
  %v1897 = vld [vmem:[%s8 + $0xa0] sm:$0xff]
  %v1898 = vld [vmem:[%s8 + $0xa8] sm:$0xff]
  %v1899 = vld [vmem:[%s8 + $0xb0] sm:$0xff]
  %v1900 = vld [vmem:[%s8 + $0xb8] sm:$0xff]
  %v1901 = vld [vmem:[%s8 + $0xc0] sm:$0xff]
  %v1902 = vld [vmem:[%s8 + $0xc8] sm:$0xff]
  %v1903 = vld [vmem:[%s8 + $0xd0] sm:$0xff]
  %v1904 = vld [vmem:[%s8 + $0xd8] sm:$0xff]
  %v1905 = vld [vmem:[%s8 + $0xe0] sm:$0xff]
  %v1906 = vld [vmem:[%s8 + $0xe8] sm:$0xff]
  %v1907 = vld [vmem:[%s8 + $0xf0] sm:$0xff]
  %v1908 = vld [vmem:[%s8 + $0xf8] sm:$0xff]
  %v1909 = vld [vmem:[%s8 + $0x100] sm:$0xff]
  %v1910 = vld [vmem:[%s8 + $0x108] sm:$0xff]
  %v1911 = vld [vmem:[%s8 + $0x110] sm:$0xff]
  %v1912 = vld [vmem:[%s8 + $0x118] sm:$0xff]
  %v1913 = vld [vmem:[%s8 + $0x120] sm:$0xff]
  %v1914 = vld [vmem:[%s8 + $0x128] sm:$0xff]
  %v1915 = vld [vmem:[%s8 + $0x130] sm:$0xff]
  %v1916 = vld [vmem:[%s8 + $0x138] sm:$0xff]
  %v1917 = vld [vmem:[%s8 + $0x140] sm:$0xff]
  %v1918 = vld [vmem:[%s8 + $0x148] sm:$0xff]
  %v1919 = vld [vmem:[%s8 + $0x150] sm:$0xff]
  %v1920 = vld [vmem:[%s8 + $0x158] sm:$0xff]
  %v1921 = vld [vmem:[%s8 + $0x160] sm:$0xff]
  %v1922 = vld [vmem:[%s8 + $0x168] sm:$0xff]
  %v1923 = vld [vmem:[%s8 + $0x170] sm:$0xff]
  %v1924 = vld [vmem:[%s8 + $0x178] sm:$0xff]
  %v1925 = vld [vmem:[%s10] sm:$0x1]
  %v1926 = vld [vmem:[%s11] sm:$0xff]
  %v1927 = vld [vmem:[%s11 + $0x8] sm:$0xff]
  %v1928 = vld [vmem:[%s11 + $0x10] sm:$0xff]
  %v1929 = vld [vmem:[%s11 + $0x18] sm:$0xff]
  %v1930 = vld [vmem:[%s11 + $0x20] sm:$0xff]
  %v1931 = vld [vmem:[%s11 + $0x28] sm:$0xff]
  %v1932 = vld [vmem:[%s11 + $0x30] sm:$0xff]
  %v1933 = vld [vmem:[%s11 + $0x38] sm:$0xff]
  %v1934 = vld [vmem:[%s11 + $0x40] sm:$0xff]
  %v1935 = vld [vmem:[%s11 + $0x48] sm:$0xff]
  %v1936 = vld [vmem:[%s11 + $0x50] sm:$0xff]
  %v1937 = vld [vmem:[%s11 + $0x58] sm:$0xff]
  %v1938 = vld [vmem:[%s11 + $0x60] sm:$0xff]
  %v1939 = vld [vmem:[%s11 + $0x68] sm:$0xff]
  %v1940 = vld [vmem:[%s11 + $0x70] sm:$0xff]
  %v1941 = vld [vmem:[%s11 + $0x78] sm:$0xff]
  %v1942 = vld [vmem:[%s11 + $0x80] sm:$0xff]
  %v1943 = vld [vmem:[%s11 + $0x88] sm:$0xff]
  %v1944 = vld [vmem:[%s11 + $0x90] sm:$0xff]
  %v1945 = vld [vmem:[%s11 + $0x98] sm:$0xff]
  %v1946 = vld [vmem:[%s11 + $0xa0] sm:$0xff]
  %v1947 = vld [vmem:[%s11 + $0xa8] sm:$0xff]
  %v1948 = vld [vmem:[%s11 + $0xb0] sm:$0xff]
  %v1949 = vld [vmem:[%s11 + $0xb8] sm:$0xff]
  %v1950 = vld [vmem:[%s11 + $0xc0] sm:$0xff]
  %v1951 = vld [vmem:[%s11 + $0xc8] sm:$0xff]
  %v1952 = vld [vmem:[%s11 + $0xd0] sm:$0xff]
  %v1953 = vld [vmem:[%s11 + $0xd8] sm:$0xff]
  %v1954 = vld [vmem:[%s11 + $0xe0] sm:$0xff]
  %v1955 = vld [vmem:[%s11 + $0xe8] sm:$0xff]
  %v1956 = vld [vmem:[%s11 + $0xf0] sm:$0xff]
  %v1957 = vld [vmem:[%s11 + $0xf8] sm:$0xff]
  %v1958 = vld [vmem:[%s11 + $0x100] sm:$0xff]
  %v1959 = vld [vmem:[%s11 + $0x108] sm:$0xff]
  %v1960 = vld [vmem:[%s11 + $0x110] sm:$0xff]
  %v1961 = vld [vmem:[%s11 + $0x118] sm:$0xff]
  %v1962 = vld [vmem:[%s11 + $0x120] sm:$0xff]
  %v1963 = vld [vmem:[%s11 + $0x128] sm:$0xff]
  %v1964 = vld [vmem:[%s11 + $0x130] sm:$0xff]
  %v1965 = vld [vmem:[%s11 + $0x138] sm:$0xff]
  %v1966 = vld [vmem:[%s11 + $0x140] sm:$0xff]
  %v1967 = vld [vmem:[%s11 + $0x148] sm:$0xff]
  %v1968 = vld [vmem:[%s11 + $0x150] sm:$0xff]
  %v1969 = vld [vmem:[%s11 + $0x158] sm:$0xff]
  %v1970 = vld [vmem:[%s11 + $0x160] sm:$0xff]
  %v1971 = vld [vmem:[%s11 + $0x168] sm:$0xff]
  %v1972 = vld [vmem:[%s11 + $0x170] sm:$0xff]
  %v1973 = vld [vmem:[%s11 + $0x178] sm:$0xff]
  %v1974 = vld [vmem:[%s11 + $0x180] sm:$0xff]
  %v1975 = vld [vmem:[%s11 + $0x188] sm:$0xff]
  %v1976 = vld [vmem:[%s11 + $0x190] sm:$0xff]
  %v1977 = vld [vmem:[%s11 + $0x198] sm:$0xff]
  %v1978 = vld [vmem:[%s11 + $0x1a0] sm:$0xff]
  %v1979 = vld [vmem:[%s11 + $0x1a8] sm:$0xff]
  %v1980 = vld [vmem:[%s11 + $0x1b0] sm:$0xff]
  %v1981 = vld [vmem:[%s11 + $0x1b8] sm:$0xff]
  %v1982 = vld [vmem:[%s11 + $0x1c0] sm:$0xff]
  %v1983 = vld [vmem:[%s11 + $0x1c8] sm:$0xff]
  %v1984 = vld [vmem:[%s11 + $0x1d0] sm:$0xff]
  %v1985 = vld [vmem:[%s11 + $0x1d8] sm:$0xff]
  %v1986 = vld [vmem:[%s11 + $0x1e0] sm:$0xff]
  %v1987 = vld [vmem:[%s11 + $0x1e8] sm:$0xff]
  %v1988 = vld [vmem:[%s11 + $0x1f0] sm:$0xff]
  %v1989 = vld [vmem:[%s11 + $0x1f8] sm:$0xff]
  %v1990 = vld [vmem:[%s12] sm:$0xf]
  %v1991 = vld [vmem:[%s7] sm:$0xff]
  %v1992 = vld [vmem:[%s7 + $0x8] sm:$0xff]
  %v1993 = vld [vmem:[%s7 + $0x10] sm:$0xff]
  %v1994 = vld [vmem:[%s7 + $0x18] sm:$0xff]
  %v1995 = vld [vmem:[%s7 + $0x20] sm:$0xff]
  %v1996 = vld [vmem:[%s7 + $0x28] sm:$0xff]
  %v1997 = vld [vmem:[%s7 + $0x30] sm:$0xff]
  %v1998 = vld [vmem:[%s7 + $0x38] sm:$0xff]
  %v1999 = vld [vmem:[%s7 + $0x40] sm:$0xff]
  %v2000 = vld [vmem:[%s7 + $0x48] sm:$0xff]
  %v2001 = vld [vmem:[%s7 + $0x50] sm:$0xff]
  %v2002 = vld [vmem:[%s7 + $0x58] sm:$0xff]
  %v2003 = vld [vmem:[%s7 + $0x60] sm:$0xff]
  %v2004 = vld [vmem:[%s7 + $0x68] sm:$0xff]
  %v2005 = vld [vmem:[%s7 + $0x70] sm:$0xff]
  %v2006 = vld [vmem:[%s7 + $0x78] sm:$0xff]
  %v2007 = vld [vmem:[%s7 + $0x80] sm:$0xff]
  %v2008 = vld [vmem:[%s7 + $0x88] sm:$0xff]
  %v2009 = vld [vmem:[%s7 + $0x90] sm:$0xff]
  %v2010 = vld [vmem:[%s7 + $0x98] sm:$0xff]
  %v2011 = vld [vmem:[%s7 + $0xa0] sm:$0xff]
  %v2012 = vld [vmem:[%s7 + $0xa8] sm:$0xff]
  %v2013 = vld [vmem:[%s7 + $0xb0] sm:$0xff]
  %v2014 = vld [vmem:[%s7 + $0xb8] sm:$0xff]
  %v2015 = vld [vmem:[%s7 + $0xc0] sm:$0xff]
  %v2016 = vld [vmem:[%s7 + $0xc8] sm:$0xff]
  %v2017 = vld [vmem:[%s7 + $0xd0] sm:$0xff]
  %v2018 = vld [vmem:[%s7 + $0xd8] sm:$0xff]
  %v2019 = vld [vmem:[%s7 + $0xe0] sm:$0xff]
  %v2020 = vld [vmem:[%s7 + $0xe8] sm:$0xff]
  %v2021 = vld [vmem:[%s7 + $0xf0] sm:$0xff]
  %v2022 = vld [vmem:[%s7 + $0xf8] sm:$0xff]
  %v2023 = vld [vmem:[%s7 + $0x100] sm:$0xff]
  %v2024 = vld [vmem:[%s7 + $0x108] sm:$0xff]
  %v2025 = vld [vmem:[%s7 + $0x110] sm:$0xff]
  %v2026 = vld [vmem:[%s7 + $0x118] sm:$0xff]
  %v2027 = vld [vmem:[%s7 + $0x120] sm:$0xff]
  %v2028 = vld [vmem:[%s7 + $0x128] sm:$0xff]
  %v2029 = vld [vmem:[%s7 + $0x130] sm:$0xff]
  %v2030 = vld [vmem:[%s7 + $0x138] sm:$0xff]
  %v2031 = vld [vmem:[%s7 + $0x140] sm:$0xff]
  %v2032 = vld [vmem:[%s7 + $0x148] sm:$0xff]
  %v2033 = vld [vmem:[%s7 + $0x150] sm:$0xff]
  %v2034 = vld [vmem:[%s7 + $0x158] sm:$0xff]
  %v2035 = vld [vmem:[%s7 + $0x160] sm:$0xff]
  %v2036 = vld [vmem:[%s7 + $0x168] sm:$0xff]
  %v2037 = vld [vmem:[%s7 + $0x170] sm:$0xff]
  %v2038 = vld [vmem:[%s7 + $0x178] sm:$0xff]
  %v2039 = vld [vmem:[%s9] sm:$0x7]
  %v2041 = vlaneseq
  %v2042 = vshrl.u32 %v2041, 7
  %v2043 = vsub.s32 0, %v2042
  %v2044 = vrot.slane %v2039, %v2043
  %v2045 = vlaneseq
  %v2046 = vshrl.u32 %v2045, 7
  %v2047 = vsub.s32 1, %v2046
  %v2048 = vrot.slane %v2039, %v2047
  %v2049 = vlaneseq
  %v2050 = vshrl.u32 %v2049, 7
  %v2051 = vsub.s32 2, %v2050
  %v2052 = vrot.slane %v2039, %v2051
  %2056 = vmatprep.subr.mxu0 %v1992
  %2057 = vmatpush1.msra.mxu0 %v1991
  %2058 = vmatprep.subr.mxu0 %v1995
  %2059 = vmatpush1.msra.mxu0 %v1994
  %2060 = vmatprep.subr.mxu0 %v1998
  %2061 = vmatpush1.msra.mxu0 %v1997
  %2062 = vmatprep.subr.mxu0 %v2001
  %2063 = vmatpush1.msra.mxu0 %v2000
  %2064 = vmatprep.subr.mxu0 %v2004
  %2065 = vmatpush1.msra.mxu0 %v2003
  %2066 = vmatprep.subr.mxu0 %v2007
  %2067 = vmatpush1.msra.mxu0 %v2006
  %2068 = vmatprep.subr.mxu0 %v2010
  %2069 = vmatpush1.msra.mxu0 %v2009
  %2070 = vmatprep.subr.mxu0 %v2013
  %2071 = vmatpush1.msra.mxu0 %v2012
  %2072 = vmatprep.subr.mxu0 %v2016
  %2073 = vmatpush1.msra.mxu0 %v2015
  %2074 = vmatprep.subr.mxu0 %v2019
  %2075 = vmatpush1.msra.mxu0 %v2018
  %2076 = vmatprep.subr.mxu0 %v2022
  %2077 = vmatpush1.msra.mxu0 %v2021
  %2078 = vmatprep.subr.mxu0 %v2025
  %2079 = vmatpush1.msra.mxu0 %v2024
  %2080 = vmatprep.subr.mxu0 %v2028
  %2081 = vmatpush1.msra.mxu0 %v2027
  %2082 = vmatprep.subr.mxu0 %v2031
  %2083 = vmatpush1.msra.mxu0 %v2030
  %2084 = vmatprep.subr.mxu0 %v2034
  %2085 = vmatpush1.msra.mxu0 %v2033
  %2086 = vmatprep.subr.mxu0 %v2037
  %2087 = vmatpush1.msra.mxu0 %v2036
  %2088 = vmatprep.subr.mxu0 0.0
  %2089 = vmatpush1.msra.mxu0 0.0
  %2090 = vmatprep.subr.mxu0 0.0
  %2091 = vmatpush1.msra.mxu0 0.0
  %2092 = vmatprep.subr.mxu0 0.0
  %2093 = vmatpush1.msra.mxu0 0.0
  %2094 = vmatprep.subr.mxu0 0.0
  %2095 = vmatpush1.msra.mxu0 0.0
  %2096 = vmatprep.subr.mxu0 0.0
  %2097 = vmatpush1.msra.mxu0 0.0
  %2098 = vmatprep.subr.mxu0 0.0
  %2099 = vmatpush1.msra.mxu0 0.0
  %2100 = vmatprep.subr.mxu0 0.0
  %2101 = vmatpush1.msra.mxu0 0.0
  %2102 = vmatprep.subr.mxu0 0.0
  %2103 = vmatpush1.msra.mxu0 0.0
  %2104 = vmatprep.subr.mxu0 0.0
  %2105 = vmatpush1.msra.mxu0 0.0
  %2106 = vmatprep.subr.mxu0 0.0
  %2107 = vmatpush1.msra.mxu0 0.0
  %2108 = vmatprep.subr.mxu0 0.0
  %2109 = vmatpush1.msra.mxu0 0.0
  %2110 = vmatprep.subr.mxu0 0.0
  %2111 = vmatpush1.msra.mxu0 0.0
  %2112 = vmatprep.subr.mxu0 0.0
  %2113 = vmatpush1.msra.mxu0 0.0
  %2114 = vmatprep.subr.mxu0 0.0
  %2115 = vmatpush1.msra.mxu0 0.0
  %2116 = vmatprep.subr.mxu0 0.0
  %2117 = vmatpush1.msra.mxu0 0.0
  %2118 = vmatprep.subr.mxu0 0.0
  %2119 = vmatpush1.msra.mxu0 0.0
  %2120 = vmatprep.mubr.f32.mxu0 0.0
  %2121 = vmatmul.mubr.f32.gmra.mrb[0].mxu0 %v1876
  %v2122 = vpop.f32.mrb[0].mxu0
  %v2123 = vadd.f32 %v2044, %v2122
  %v2124 = vpop.f32.mrb[0].mxu0
  %v2125 = vadd.f32 %v2048, %v2124
  %2126 = vdwg.mxu0
  %2127 = vmatprep.subr.mxu0 0.0
  %2128 = vmatpush1.msra.mxu0 %v1993
  %2129 = vmatprep.subr.mxu0 0.0
  %2130 = vmatpush1.msra.mxu0 %v1996
  %2131 = vmatprep.subr.mxu0 0.0
  %2132 = vmatpush1.msra.mxu0 %v1999
  %2133 = vmatprep.subr.mxu0 0.0
  %2134 = vmatpush1.msra.mxu0 %v2002
  %2135 = vmatprep.subr.mxu0 0.0
  %2136 = vmatpush1.msra.mxu0 %v2005
  %2137 = vmatprep.subr.mxu0 0.0
  %2138 = vmatpush1.msra.mxu0 %v2008
  %2139 = vmatprep.subr.mxu0 0.0
  %2140 = vmatpush1.msra.mxu0 %v2011
  %2141 = vmatprep.subr.mxu0 0.0
  %2142 = vmatpush1.msra.mxu0 %v2014
  %2143 = vmatprep.subr.mxu0 0.0
  %2144 = vmatpush1.msra.mxu0 %v2017
  %2145 = vmatprep.subr.mxu0 0.0
  %2146 = vmatpush1.msra.mxu0 %v2020
  %2147 = vmatprep.subr.mxu0 0.0
  %2148 = vmatpush1.msra.mxu0 %v2023
  %2149 = vmatprep.subr.mxu0 0.0
  %2150 = vmatpush1.msra.mxu0 %v2026
  %2151 = vmatprep.subr.mxu0 0.0
  %2152 = vmatpush1.msra.mxu0 %v2029
  %2153 = vmatprep.subr.mxu0 0.0
  %2154 = vmatpush1.msra.mxu0 %v2032
  %2155 = vmatprep.subr.mxu0 0.0
  %2156 = vmatpush1.msra.mxu0 %v2035
  %2157 = vmatprep.subr.mxu0 0.0
  %2158 = vmatpush1.msra.mxu0 %v2038
  %2159 = vmatprep.subr.mxu0 0.0
  %2160 = vmatpush1.msra.mxu0 0.0
  %2161 = vmatprep.subr.mxu0 0.0
  %2162 = vmatpush1.msra.mxu0 0.0
  %2163 = vmatprep.subr.mxu0 0.0
  %2164 = vmatpush1.msra.mxu0 0.0
  %2165 = vmatprep.subr.mxu0 0.0
  %2166 = vmatpush1.msra.mxu0 0.0
  %2167 = vmatprep.subr.mxu0 0.0
  %2168 = vmatpush1.msra.mxu0 0.0
  %2169 = vmatprep.subr.mxu0 0.0
  %2170 = vmatpush1.msra.mxu0 0.0
  %2171 = vmatprep.subr.mxu0 0.0
  %2172 = vmatpush1.msra.mxu0 0.0
  %2173 = vmatprep.subr.mxu0 0.0
  %2174 = vmatpush1.msra.mxu0 0.0
  %2175 = vmatprep.subr.mxu0 0.0
  %2176 = vmatpush1.msra.mxu0 0.0
  %2177 = vmatprep.subr.mxu0 0.0
  %2178 = vmatpush1.msra.mxu0 0.0
  %2179 = vmatprep.subr.mxu0 0.0
  %2180 = vmatpush1.msra.mxu0 0.0
  %2181 = vmatprep.subr.mxu0 0.0
  %2182 = vmatpush1.msra.mxu0 0.0
  %2183 = vmatprep.subr.mxu0 0.0
  %2184 = vmatpush1.msra.mxu0 0.0
  %2185 = vmatprep.subr.mxu0 0.0
  %2186 = vmatpush1.msra.mxu0 0.0
  %2187 = vmatprep.subr.mxu0 0.0
  %2188 = vmatpush1.msra.mxu0 0.0
  %2189 = vmatprep.subr.mxu0 0.0
  %2190 = vmatpush1.msra.mxu0 0.0
  %2191 = vmatprep.mubr.f32.mxu0 0.0
  %2192 = vmatmul.mubr.f32.gmra.mrb[0].mxu0 %v1876
  %v2193 = vpop.f32.mrb[0].mxu0
  %v2194 = vadd.f32 %v2052, %v2193
  %v2195 = vpop.f32.mrb[0].mxu0
  %2196 = vdwg.mxu0
  %2197 = vmatprep.subr.mxu0 %v1878
  %2198 = vmatpush1.msra.mxu0 %v1877
  %2199 = vmatprep.subr.mxu0 %v1881
  %2200 = vmatpush1.msra.mxu0 %v1880
  %2201 = vmatprep.subr.mxu0 %v1884
  %2202 = vmatpush1.msra.mxu0 %v1883
  %2203 = vmatprep.subr.mxu0 %v1887
  %2204 = vmatpush1.msra.mxu0 %v1886
  %2205 = vmatprep.subr.mxu0 %v1890
  %2206 = vmatpush1.msra.mxu0 %v1889
  %2207 = vmatprep.subr.mxu0 %v1893
  %2208 = vmatpush1.msra.mxu0 %v1892
  %2209 = vmatprep.subr.mxu0 %v1896
  %2210 = vmatpush1.msra.mxu0 %v1895
  %2211 = vmatprep.subr.mxu0 %v1899
  %2212 = vmatpush1.msra.mxu0 %v1898
  %2213 = vmatprep.subr.mxu0 %v1902
  %2214 = vmatpush1.msra.mxu0 %v1901
  %2215 = vmatprep.subr.mxu0 %v1905
  %2216 = vmatpush1.msra.mxu0 %v1904
  %2217 = vmatprep.subr.mxu0 %v1908
  %2218 = vmatpush1.msra.mxu0 %v1907
  %2219 = vmatprep.subr.mxu0 %v1911
  %2220 = vmatpush1.msra.mxu0 %v1910
  %2221 = vmatprep.subr.mxu0 %v1914
  %2222 = vmatpush1.msra.mxu0 %v1913
  %2223 = vmatprep.subr.mxu0 %v1917
  %2224 = vmatpush1.msra.mxu0 %v1916
  %2225 = vmatprep.subr.mxu0 %v1920
  %2226 = vmatpush1.msra.mxu0 %v1919
  %2227 = vmatprep.subr.mxu0 %v1923
  %2228 = vmatpush1.msra.mxu0 %v1922
  %2229 = vmatprep.subr.mxu0 0.0
  %2230 = vmatpush1.msra.mxu0 0.0
  %2231 = vmatprep.subr.mxu0 0.0
  %2232 = vmatpush1.msra.mxu0 0.0
  %2233 = vmatprep.subr.mxu0 0.0
  %2234 = vmatpush1.msra.mxu0 0.0
  %2235 = vmatprep.subr.mxu0 0.0
  %2236 = vmatpush1.msra.mxu0 0.0
  %2237 = vmatprep.subr.mxu0 0.0
  %2238 = vmatpush1.msra.mxu0 0.0
  %2239 = vmatprep.subr.mxu0 0.0
  %2240 = vmatpush1.msra.mxu0 0.0
  %2241 = vmatprep.subr.mxu0 0.0
  %2242 = vmatpush1.msra.mxu0 0.0
  %2243 = vmatprep.subr.mxu0 0.0
  %2244 = vmatpush1.msra.mxu0 0.0
  %2245 = vmatprep.subr.mxu0 0.0
  %2246 = vmatpush1.msra.mxu0 0.0
  %2247 = vmatprep.subr.mxu0 0.0
  %2248 = vmatpush1.msra.mxu0 0.0
  %2249 = vmatprep.subr.mxu0 0.0
  %2250 = vmatpush1.msra.mxu0 0.0
  %2251 = vmatprep.subr.mxu0 0.0
  %2252 = vmatpush1.msra.mxu0 0.0
  %2253 = vmatprep.subr.mxu0 0.0
  %2254 = vmatpush1.msra.mxu0 0.0
  %2255 = vmatprep.subr.mxu0 0.0
  %2256 = vmatpush1.msra.mxu0 0.0
  %2257 = vmatprep.subr.mxu0 0.0
  %2258 = vmatpush1.msra.mxu0 0.0
  %2259 = vmatprep.subr.mxu0 0.0
  %2260 = vmatpush1.msra.mxu0 0.0
  %2261 = vmatprep.mubr.f32.mxu0 0.0
  %2262 = vmatmul.mubr.f32.gmra.mrb[0].mxu0 %v1780
  %v2263 = vpop.f32.mrb[0].mxu0
  %v2264 = vadd.f32 0.0, %v2263
  %v2265 = vpop.f32.mrb[0].mxu0
  %v2266 = vadd.f32 0.0, %v2265
  %2267 = vdwg.mxu0
  %2268 = vmatprep.subr.mxu0 0.0
  %2269 = vmatpush1.msra.mxu0 %v1879
  %2270 = vmatprep.subr.mxu0 0.0
  %2271 = vmatpush1.msra.mxu0 %v1882
  %2272 = vmatprep.subr.mxu0 0.0
  %2273 = vmatpush1.msra.mxu0 %v1885
  %2274 = vmatprep.subr.mxu0 0.0
  %2275 = vmatpush1.msra.mxu0 %v1888
  %2276 = vmatprep.subr.mxu0 0.0
  %2277 = vmatpush1.msra.mxu0 %v1891
  %2278 = vmatprep.subr.mxu0 0.0
  %2279 = vmatpush1.msra.mxu0 %v1894
  %2280 = vmatprep.subr.mxu0 0.0
  %2281 = vmatpush1.msra.mxu0 %v1897
  %2282 = vmatprep.subr.mxu0 0.0
  %2283 = vmatpush1.msra.mxu0 %v1900
  %2284 = vmatprep.subr.mxu0 0.0
  %2285 = vmatpush1.msra.mxu0 %v1903
  %2286 = vmatprep.subr.mxu0 0.0
  %2287 = vmatpush1.msra.mxu0 %v1906
  %2288 = vmatprep.subr.mxu0 0.0
  %2289 = vmatpush1.msra.mxu0 %v1909
  %2290 = vmatprep.subr.mxu0 0.0
  %2291 = vmatpush1.msra.mxu0 %v1912
  %2292 = vmatprep.subr.mxu0 0.0
  %2293 = vmatpush1.msra.mxu0 %v1915
  %2294 = vmatprep.subr.mxu0 0.0
  %2295 = vmatpush1.msra.mxu0 %v1918
  %2296 = vmatprep.subr.mxu0 0.0
  %2297 = vmatpush1.msra.mxu0 %v1921
  %2298 = vmatprep.subr.mxu0 0.0
  %2299 = vmatpush1.msra.mxu0 %v1924
  %2300 = vmatprep.subr.mxu0 0.0
  %2301 = vmatpush1.msra.mxu0 0.0
  %2302 = vmatprep.subr.mxu0 0.0
  %2303 = vmatpush1.msra.mxu0 0.0
  %2304 = vmatprep.subr.mxu0 0.0
  %2305 = vmatpush1.msra.mxu0 0.0
  %2306 = vmatprep.subr.mxu0 0.0
  %2307 = vmatpush1.msra.mxu0 0.0
  %2308 = vmatprep.subr.mxu0 0.0
  %2309 = vmatpush1.msra.mxu0 0.0
  %2310 = vmatprep.subr.mxu0 0.0
  %2311 = vmatpush1.msra.mxu0 0.0
  %2312 = vmatprep.subr.mxu0 0.0
  %2313 = vmatpush1.msra.mxu0 0.0
  %2314 = vmatprep.subr.mxu0 0.0
  %2315 = vmatpush1.msra.mxu0 0.0
  %2316 = vmatprep.subr.mxu0 0.0
  %2317 = vmatpush1.msra.mxu0 0.0
  %2318 = vmatprep.subr.mxu0 0.0
  %2319 = vmatpush1.msra.mxu0 0.0
  %2320 = vmatprep.subr.mxu0 0.0
  %2321 = vmatpush1.msra.mxu0 0.0
  %2322 = vmatprep.subr.mxu0 0.0
  %2323 = vmatpush1.msra.mxu0 0.0
  %2324 = vmatprep.subr.mxu0 0.0
  %2325 = vmatpush1.msra.mxu0 0.0
  %2326 = vmatprep.subr.mxu0 0.0
  %2327 = vmatpush1.msra.mxu0 0.0
  %2328 = vmatprep.subr.mxu0 0.0
  %2329 = vmatpush1.msra.mxu0 0.0
  %2330 = vmatprep.subr.mxu0 0.0
  %2331 = vmatpush1.msra.mxu0 0.0
  %2332 = vmatprep.mubr.f32.mxu0 0.0
  %2333 = vmatmul.mubr.f32.gmra.mrb[0].mxu0 %v1780
  %v2334 = vpop.f32.mrb[0].mxu0
  %v2335 = vadd.f32 0.0, %v2334
  %v2336 = vpop.f32.mrb[0].mxu0
  %2337 = vdwg.mxu0
  %v2338 = vadd.f32 %v2123, %v2264
  %v2339 = vxor.u32 %v2338, 2147483648
  %v2340 = vmul.f32 %v2339, 1.442695
  %v2341 = vpow.pop %v2340
  %v2342 = vadd.f32 %v2341, 1.0
  %v2343 = vrcp.pop %v2342
  %v2344 = vmul.f32 1.0, %v2343
  %v2345 = vadd.f32 %v2125, %v2266
  %v2346 = vxor.u32 %v2345, 2147483648
  %v2347 = vmul.f32 %v2346, 1.442695
  %v2348 = vpow.pop %v2347
  %v2349 = vadd.f32 %v2348, 1.0
  %v2350 = vrcp.pop %v2349
  %v2351 = vmul.f32 1.0, %v2350
  %v2353 = vlaneseq
  %v2354 = vshrl.u32 %v2353, 7
  %v2355 = vsub.s32 0, %v2354
  %v2356 = vrot.slane %v1925, %v2355
  %v2358 = vadd.f32 %v2335, %v2356
  %v2359 = vmul.f32 %v2344, %v2358
  %v2360 = vadd.f32 %v2194, %v2359
  %v2361 = vtanh.pop %v2360
  %v2362 = vsub.f32 1.0, %v2351
  %v2363 = vmul.f32 %v2362, %v2361
  %v2364 = vmul.f32 %v2351, %v1780
  %v2365 = vadd.f32 %v2363, %v2364
  %v2367 = vlaneseq
  %v2368 = vshrl.u32 %v2367, 7
  %v2369 = vsub.s32 0, %v2368
  %v2370 = vrot.slane %v1990, %v2369
  %v2371 = vlaneseq
  %v2372 = vshrl.u32 %v2371, 7
  %v2373 = vsub.s32 1, %v2372
  %v2374 = vrot.slane %v1990, %v2373
  %v2375 = vlaneseq
  %v2376 = vshrl.u32 %v2375, 7
  %v2377 = vsub.s32 2, %v2376
  %v2378 = vrot.slane %v1990, %v2377
  %v2379 = vlaneseq
  %v2380 = vshrl.u32 %v2379, 7
  %v2381 = vsub.s32 3, %v2380
  %v2382 = vrot.slane %v1990, %v2381
  %2387 = vmatprep.subr.mxu0 %v1927
  %2388 = vmatpush1.msra.mxu0 %v1926
  %2389 = vmatprep.subr.mxu0 %v1931
  %2390 = vmatpush1.msra.mxu0 %v1930
  %2391 = vmatprep.subr.mxu0 %v1935
  %2392 = vmatpush1.msra.mxu0 %v1934
  %2393 = vmatprep.subr.mxu0 %v1939
  %2394 = vmatpush1.msra.mxu0 %v1938
  %2395 = vmatprep.subr.mxu0 %v1943
  %2396 = vmatpush1.msra.mxu0 %v1942
  %2397 = vmatprep.subr.mxu0 %v1947
  %2398 = vmatpush1.msra.mxu0 %v1946
  %2399 = vmatprep.subr.mxu0 %v1951
  %2400 = vmatpush1.msra.mxu0 %v1950
  %2401 = vmatprep.subr.mxu0 %v1955
  %2402 = vmatpush1.msra.mxu0 %v1954
  %2403 = vmatprep.subr.mxu0 %v1959
  %2404 = vmatpush1.msra.mxu0 %v1958
  %2405 = vmatprep.subr.mxu0 %v1963
  %2406 = vmatpush1.msra.mxu0 %v1962
  %2407 = vmatprep.subr.mxu0 %v1967
  %2408 = vmatpush1.msra.mxu0 %v1966
  %2409 = vmatprep.subr.mxu0 %v1971
  %2410 = vmatpush1.msra.mxu0 %v1970
  %2411 = vmatprep.subr.mxu0 %v1975
  %2412 = vmatpush1.msra.mxu0 %v1974
  %2413 = vmatprep.subr.mxu0 %v1979
  %2414 = vmatpush1.msra.mxu0 %v1978
  %2415 = vmatprep.subr.mxu0 %v1983
  %2416 = vmatpush1.msra.mxu0 %v1982
  %2417 = vmatprep.subr.mxu0 %v1987
  %2418 = vmatpush1.msra.mxu0 %v1986
  %2419 = vmatprep.subr.mxu0 0.0
  %2420 = vmatpush1.msra.mxu0 0.0
  %2421 = vmatprep.subr.mxu0 0.0
  %2422 = vmatpush1.msra.mxu0 0.0
  %2423 = vmatprep.subr.mxu0 0.0
  %2424 = vmatpush1.msra.mxu0 0.0
  %2425 = vmatprep.subr.mxu0 0.0
  %2426 = vmatpush1.msra.mxu0 0.0
  %2427 = vmatprep.subr.mxu0 0.0
  %2428 = vmatpush1.msra.mxu0 0.0
  %2429 = vmatprep.subr.mxu0 0.0
  %2430 = vmatpush1.msra.mxu0 0.0
  %2431 = vmatprep.subr.mxu0 0.0
  %2432 = vmatpush1.msra.mxu0 0.0
  %2433 = vmatprep.subr.mxu0 0.0
  %2434 = vmatpush1.msra.mxu0 0.0
  %2435 = vmatprep.subr.mxu0 0.0
  %2436 = vmatpush1.msra.mxu0 0.0
  %2437 = vmatprep.subr.mxu0 0.0
  %2438 = vmatpush1.msra.mxu0 0.0
  %2439 = vmatprep.subr.mxu0 0.0
  %2440 = vmatpush1.msra.mxu0 0.0
  %2441 = vmatprep.subr.mxu0 0.0
  %2442 = vmatpush1.msra.mxu0 0.0
  %2443 = vmatprep.subr.mxu0 0.0
  %2444 = vmatpush1.msra.mxu0 0.0
  %2445 = vmatprep.subr.mxu0 0.0
  %2446 = vmatpush1.msra.mxu0 0.0
  %2447 = vmatprep.subr.mxu0 0.0
  %2448 = vmatpush1.msra.mxu0 0.0
  %2449 = vmatprep.subr.mxu0 0.0
  %2450 = vmatpush1.msra.mxu0 0.0
  %2451 = vmatprep.mubr.f32.mxu0 0.0
  %2452 = vmatmul.mubr.f32.gmra.mrb[0].mxu0 %v2365
  %v2453 = vpop.f32.mrb[0].mxu0
  %v2454 = vadd.f32 %v2370, %v2453
  %v2455 = vpop.f32.mrb[0].mxu0
  %v2456 = vadd.f32 %v2374, %v2455
  %2457 = vdwg.mxu0
  %2458 = vmatprep.subr.mxu0 %v1929
  %2459 = vmatpush1.msra.mxu0 %v1928
  %2460 = vmatprep.subr.mxu0 %v1933
  %2461 = vmatpush1.msra.mxu0 %v1932
  %2462 = vmatprep.subr.mxu0 %v1937
  %2463 = vmatpush1.msra.mxu0 %v1936
  %2464 = vmatprep.subr.mxu0 %v1941
  %2465 = vmatpush1.msra.mxu0 %v1940
  %2466 = vmatprep.subr.mxu0 %v1945
  %2467 = vmatpush1.msra.mxu0 %v1944
  %2468 = vmatprep.subr.mxu0 %v1949
  %2469 = vmatpush1.msra.mxu0 %v1948
  %2470 = vmatprep.subr.mxu0 %v1953
  %2471 = vmatpush1.msra.mxu0 %v1952
  %2472 = vmatprep.subr.mxu0 %v1957
  %2473 = vmatpush1.msra.mxu0 %v1956
  %2474 = vmatprep.subr.mxu0 %v1961
  %2475 = vmatpush1.msra.mxu0 %v1960
  %2476 = vmatprep.subr.mxu0 %v1965
  %2477 = vmatpush1.msra.mxu0 %v1964
  %2478 = vmatprep.subr.mxu0 %v1969
  %2479 = vmatpush1.msra.mxu0 %v1968
  %2480 = vmatprep.subr.mxu0 %v1973
  %2481 = vmatpush1.msra.mxu0 %v1972
  %2482 = vmatprep.subr.mxu0 %v1977
  %2483 = vmatpush1.msra.mxu0 %v1976
  %2484 = vmatprep.subr.mxu0 %v1981
  %2485 = vmatpush1.msra.mxu0 %v1980
  %2486 = vmatprep.subr.mxu0 %v1985
  %2487 = vmatpush1.msra.mxu0 %v1984
  %2488 = vmatprep.subr.mxu0 %v1989
  %2489 = vmatpush1.msra.mxu0 %v1988
  %2490 = vmatprep.subr.mxu0 0.0
  %2491 = vmatpush1.msra.mxu0 0.0
  %2492 = vmatprep.subr.mxu0 0.0
  %2493 = vmatpush1.msra.mxu0 0.0
  %2494 = vmatprep.subr.mxu0 0.0
  %2495 = vmatpush1.msra.mxu0 0.0
  %2496 = vmatprep.subr.mxu0 0.0
  %2497 = vmatpush1.msra.mxu0 0.0
  %2498 = vmatprep.subr.mxu0 0.0
  %2499 = vmatpush1.msra.mxu0 0.0
  %2500 = vmatprep.subr.mxu0 0.0
  %2501 = vmatpush1.msra.mxu0 0.0
  %2502 = vmatprep.subr.mxu0 0.0
  %2503 = vmatpush1.msra.mxu0 0.0
  %2504 = vmatprep.subr.mxu0 0.0
  %2505 = vmatpush1.msra.mxu0 0.0
  %2506 = vmatprep.subr.mxu0 0.0
  %2507 = vmatpush1.msra.mxu0 0.0
  %2508 = vmatprep.subr.mxu0 0.0
  %2509 = vmatpush1.msra.mxu0 0.0
  %2510 = vmatprep.subr.mxu0 0.0
  %2511 = vmatpush1.msra.mxu0 0.0
  %2512 = vmatprep.subr.mxu0 0.0
  %2513 = vmatpush1.msra.mxu0 0.0
  %2514 = vmatprep.subr.mxu0 0.0
  %2515 = vmatpush1.msra.mxu0 0.0
  %2516 = vmatprep.subr.mxu0 0.0
  %2517 = vmatpush1.msra.mxu0 0.0
  %2518 = vmatprep.subr.mxu0 0.0
  %2519 = vmatpush1.msra.mxu0 0.0
  %2520 = vmatprep.subr.mxu0 0.0
  %2521 = vmatpush1.msra.mxu0 0.0
  %2522 = vmatprep.mubr.f32.mxu0 0.0
  %2523 = vmatmul.mubr.f32.gmra.mrb[0].mxu0 %v2365
  %v2524 = vpop.f32.mrb[0].mxu0
  %v2525 = vadd.f32 %v2378, %v2524
  %v2526 = vpop.f32.mrb[0].mxu0
  %v2527 = vadd.f32 %v2382, %v2526
  %2528 = vdwg.mxu0
  %2529 = vst [vmem:[%s14] sm:$0xff] %v2454
  %2530 = vmatprep.subr.mxu0 %v1878
  %2531 = vmatpush1.msra.mxu0 %v1877
  %2532 = vmatprep.subr.mxu0 %v1881
  %2533 = vmatpush1.msra.mxu0 %v1880
  %2534 = vmatprep.subr.mxu0 %v1884
  %2535 = vmatpush1.msra.mxu0 %v1883
  %2536 = vmatprep.subr.mxu0 %v1887
  %2537 = vmatpush1.msra.mxu0 %v1886
  %2538 = vmatprep.subr.mxu0 %v1890
  %2539 = vmatpush1.msra.mxu0 %v1889
  %2540 = vmatprep.subr.mxu0 %v1893
  %2541 = vmatpush1.msra.mxu0 %v1892
  %2542 = vmatprep.subr.mxu0 %v1896
  %2543 = vmatpush1.msra.mxu0 %v1895
  %2544 = vmatprep.subr.mxu0 %v1899
  %2545 = vmatpush1.msra.mxu0 %v1898
  %2546 = vmatprep.subr.mxu0 %v1902
  %2547 = vmatpush1.msra.mxu0 %v1901
  %2548 = vmatprep.subr.mxu0 %v1905
  %2549 = vmatpush1.msra.mxu0 %v1904
  %2550 = vmatprep.subr.mxu0 %v1908
  %2551 = vmatpush1.msra.mxu0 %v1907
  %2552 = vmatprep.subr.mxu0 %v1911
  %2553 = vmatpush1.msra.mxu0 %v1910
  %2554 = vmatprep.subr.mxu0 %v1914
  %2555 = vmatpush1.msra.mxu0 %v1913
  %2556 = vmatprep.subr.mxu0 %v1917
  %2557 = vmatpush1.msra.mxu0 %v1916
  %2558 = vmatprep.subr.mxu0 %v1920
  %2559 = vmatpush1.msra.mxu0 %v1919
  %2560 = vmatprep.subr.mxu0 %v1923
  %2561 = vmatpush1.msra.mxu0 %v1922
  %2562 = vmatprep.subr.mxu0 0.0
  %2563 = vmatpush1.msra.mxu0 0.0
  %2564 = vmatprep.subr.mxu0 0.0
  %2565 = vmatpush1.msra.mxu0 0.0
  %2566 = vmatprep.subr.mxu0 0.0
  %2567 = vmatpush1.msra.mxu0 0.0
  %2568 = vmatprep.subr.mxu0 0.0
  %2569 = vmatpush1.msra.mxu0 0.0
  %2570 = vmatprep.subr.mxu0 0.0
  %2571 = vmatpush1.msra.mxu0 0.0
  %2572 = vmatprep.subr.mxu0 0.0
  %2573 = vmatpush1.msra.mxu0 0.0
  %2574 = vmatprep.subr.mxu0 0.0
  %2575 = vmatpush1.msra.mxu0 0.0
  %2576 = vmatprep.subr.mxu0 0.0
  %2577 = vmatpush1.msra.mxu0 0.0
  %2578 = vmatprep.subr.mxu0 0.0
  %2579 = vmatpush1.msra.mxu0 0.0
  %2580 = vmatprep.subr.mxu0 0.0
  %2581 = vmatpush1.msra.mxu0 0.0
  %2582 = vmatprep.subr.mxu0 0.0
  %2583 = vmatpush1.msra.mxu0 0.0
  %2584 = vmatprep.subr.mxu0 0.0
  %2585 = vmatpush1.msra.mxu0 0.0
  %2586 = vmatprep.subr.mxu0 0.0
  %2587 = vmatpush1.msra.mxu0 0.0
  %2588 = vmatprep.subr.mxu0 0.0
  %2589 = vmatpush1.msra.mxu0 0.0
  %2590 = vmatprep.subr.mxu0 0.0
  %2591 = vmatpush1.msra.mxu0 0.0
  %2592 = vmatprep.subr.mxu0 0.0
  %2593 = vmatpush1.msra.mxu0 0.0
  %2594 = vmatprep.mubr.f32.mxu0 0.0
  %2595 = vmatmul.mubr.f32.gmra.mrb[0].mxu0 %v2365
  %v2596 = vpop.f32.mrb[0].mxu0
  %v2597 = vadd.f32 0.0, %v2596
  %v2598 = vpop.f32.mrb[0].mxu0
  %v2599 = vadd.f32 0.0, %v2598
  %2600 = vdwg.mxu0
  %2601 = vmatprep.subr.mxu0 0.0
  %2602 = vmatpush1.msra.mxu0 %v1879
  %2603 = vmatprep.subr.mxu0 0.0
  %2604 = vmatpush1.msra.mxu0 %v1882
  %2605 = vmatprep.subr.mxu0 0.0
  %2606 = vmatpush1.msra.mxu0 %v1885
  %2607 = vmatprep.subr.mxu0 0.0
  %2608 = vmatpush1.msra.mxu0 %v1888
  %2609 = vmatprep.subr.mxu0 0.0
  %2610 = vmatpush1.msra.mxu0 %v1891
  %2611 = vmatprep.subr.mxu0 0.0
  %2612 = vmatpush1.msra.mxu0 %v1894
  %2613 = vmatprep.subr.mxu0 0.0
  %2614 = vmatpush1.msra.mxu0 %v1897
  %2615 = vmatprep.subr.mxu0 0.0
  %2616 = vmatpush1.msra.mxu0 %v1900
  %2617 = vmatprep.subr.mxu0 0.0
  %2618 = vmatpush1.msra.mxu0 %v1903
  %2619 = vmatprep.subr.mxu0 0.0
  %2620 = vmatpush1.msra.mxu0 %v1906
  %2621 = vmatprep.subr.mxu0 0.0
  %2622 = vmatpush1.msra.mxu0 %v1909
  %2623 = vmatprep.subr.mxu0 0.0
  %2624 = vmatpush1.msra.mxu0 %v1912
  %2625 = vmatprep.subr.mxu0 0.0
  %2626 = vmatpush1.msra.mxu0 %v1915
  %2627 = vmatprep.subr.mxu0 0.0
  %2628 = vmatpush1.msra.mxu0 %v1918
  %2629 = vmatprep.subr.mxu0 0.0
  %2630 = vmatpush1.msra.mxu0 %v1921
  %2631 = vmatprep.subr.mxu0 0.0
  %2632 = vmatpush1.msra.mxu0 %v1924
  %2633 = vmatprep.subr.mxu0 0.0
  %2634 = vmatpush1.msra.mxu0 0.0
  %2635 = vmatprep.subr.mxu0 0.0
  %2636 = vmatpush1.msra.mxu0 0.0
  %2637 = vmatprep.subr.mxu0 0.0
  %2638 = vmatpush1.msra.mxu0 0.0
  %2639 = vmatprep.subr.mxu0 0.0
  %2640 = vmatpush1.msra.mxu0 0.0
  %2641 = vmatprep.subr.mxu0 0.0
  %2642 = vmatpush1.msra.mxu0 0.0
  %2643 = vmatprep.subr.mxu0 0.0
  %2644 = vmatpush1.msra.mxu0 0.0
  %2645 = vmatprep.subr.mxu0 0.0
  %2646 = vmatpush1.msra.mxu0 0.0
  %2647 = vmatprep.subr.mxu0 0.0
  %2648 = vmatpush1.msra.mxu0 0.0
  %2649 = vmatprep.subr.mxu0 0.0
  %2650 = vmatpush1.msra.mxu0 0.0
  %2651 = vmatprep.subr.mxu0 0.0
  %2652 = vmatpush1.msra.mxu0 0.0
  %2653 = vmatprep.subr.mxu0 0.0
  %2654 = vmatpush1.msra.mxu0 0.0
  %2655 = vmatprep.subr.mxu0 0.0
  %2656 = vmatpush1.msra.mxu0 0.0
  %2657 = vmatprep.subr.mxu0 0.0
  %2658 = vmatpush1.msra.mxu0 0.0
  %2659 = vmatprep.subr.mxu0 0.0
  %2660 = vmatpush1.msra.mxu0 0.0
  %2661 = vmatprep.subr.mxu0 0.0
  %2662 = vmatpush1.msra.mxu0 0.0
  %2663 = vmatprep.subr.mxu0 0.0
  %2664 = vmatpush1.msra.mxu0 0.0
  %2665 = vmatprep.mubr.f32.mxu0 0.0
  %2666 = vmatmul.mubr.f32.gmra.mrb[0].mxu0 %v2365
  %v2667 = vpop.f32.mrb[0].mxu0
  %v2668 = vadd.f32 0.0, %v2667
  %v2669 = vpop.f32.mrb[0].mxu0
  %2670 = vdwg.mxu0
  %v2671 = vadd.f32 %v2456, %v2597
  %v2672 = vxor.u32 %v2671, 2147483648
  %v2673 = vmul.f32 %v2672, 1.442695
  %v2674 = vpow.pop %v2673
  %v2675 = vadd.f32 %v2674, 1.0
  %v2676 = vrcp.pop %v2675
  %v2677 = vmul.f32 1.0, %v2676
  %v2678 = vadd.f32 %v2525, %v2599
  %v2679 = vxor.u32 %v2678, 2147483648
  %v2680 = vmul.f32 %v2679, 1.442695
  %v2681 = vpow.pop %v2680
  %v2682 = vadd.f32 %v2681, 1.0
  %v2683 = vrcp.pop %v2682
  %v2684 = vmul.f32 1.0, %v2683
  %v2685 = vadd.f32 %v2668, %v2356
  %v2686 = vmul.f32 %v2677, %v2685
  %v2687 = vadd.f32 %v2527, %v2686
  %v2688 = vtanh.pop %v2687
  %v2689 = vsub.f32 1.0, %v2684
  %v2690 = vmul.f32 %v2689, %v2688
  %v2691 = vmul.f32 %v2684, %v2365
  %v2692 = vadd.f32 %v2690, %v2691
  %2693 = vmatprep.subr.mxu0 %v1927
  %2694 = vmatpush1.msra.mxu0 %v1926
  %2695 = vmatprep.subr.mxu0 %v1931
  %2696 = vmatpush1.msra.mxu0 %v1930
  %2697 = vmatprep.subr.mxu0 %v1935
  %2698 = vmatpush1.msra.mxu0 %v1934
  %2699 = vmatprep.subr.mxu0 %v1939
  %2700 = vmatpush1.msra.mxu0 %v1938
  %2701 = vmatprep.subr.mxu0 %v1943
  %2702 = vmatpush1.msra.mxu0 %v1942
  %2703 = vmatprep.subr.mxu0 %v1947
  %2704 = vmatpush1.msra.mxu0 %v1946
  %2705 = vmatprep.subr.mxu0 %v1951
  %2706 = vmatpush1.msra.mxu0 %v1950
  %2707 = vmatprep.subr.mxu0 %v1955
  %2708 = vmatpush1.msra.mxu0 %v1954
  %2709 = vmatprep.subr.mxu0 %v1959
  %2710 = vmatpush1.msra.mxu0 %v1958
  %2711 = vmatprep.subr.mxu0 %v1963
  %2712 = vmatpush1.msra.mxu0 %v1962
  %2713 = vmatprep.subr.mxu0 %v1967
  %2714 = vmatpush1.msra.mxu0 %v1966
  %2715 = vmatprep.subr.mxu0 %v1971
  %2716 = vmatpush1.msra.mxu0 %v1970
  %2717 = vmatprep.subr.mxu0 %v1975
  %2718 = vmatpush1.msra.mxu0 %v1974
  %2719 = vmatprep.subr.mxu0 %v1979
  %2720 = vmatpush1.msra.mxu0 %v1978
  %2721 = vmatprep.subr.mxu0 %v1983
  %2722 = vmatpush1.msra.mxu0 %v1982
  %2723 = vmatprep.subr.mxu0 %v1987
  %2724 = vmatpush1.msra.mxu0 %v1986
  %2725 = vmatprep.subr.mxu0 0.0
  %2726 = vmatpush1.msra.mxu0 0.0
  %2727 = vmatprep.subr.mxu0 0.0
  %2728 = vmatpush1.msra.mxu0 0.0
  %2729 = vmatprep.subr.mxu0 0.0
  %2730 = vmatpush1.msra.mxu0 0.0
  %2731 = vmatprep.subr.mxu0 0.0
  %2732 = vmatpush1.msra.mxu0 0.0
  %2733 = vmatprep.subr.mxu0 0.0
  %2734 = vmatpush1.msra.mxu0 0.0
  %2735 = vmatprep.subr.mxu0 0.0
  %2736 = vmatpush1.msra.mxu0 0.0
  %2737 = vmatprep.subr.mxu0 0.0
  %2738 = vmatpush1.msra.mxu0 0.0
  %2739 = vmatprep.subr.mxu0 0.0
  %2740 = vmatpush1.msra.mxu0 0.0
  %2741 = vmatprep.subr.mxu0 0.0
  %2742 = vmatpush1.msra.mxu0 0.0
  %2743 = vmatprep.subr.mxu0 0.0
  %2744 = vmatpush1.msra.mxu0 0.0
  %2745 = vmatprep.subr.mxu0 0.0
  %2746 = vmatpush1.msra.mxu0 0.0
  %2747 = vmatprep.subr.mxu0 0.0
  %2748 = vmatpush1.msra.mxu0 0.0
  %2749 = vmatprep.subr.mxu0 0.0
  %2750 = vmatpush1.msra.mxu0 0.0
  %2751 = vmatprep.subr.mxu0 0.0
  %2752 = vmatpush1.msra.mxu0 0.0
  %2753 = vmatprep.subr.mxu0 0.0
  %2754 = vmatpush1.msra.mxu0 0.0
  %2755 = vmatprep.subr.mxu0 0.0
  %2756 = vmatpush1.msra.mxu0 0.0
  %2757 = vmatprep.mubr.f32.mxu0 0.0
  %2758 = vmatmul.mubr.f32.gmra.mrb[0].mxu0 %v2692
  %v2759 = vpop.f32.mrb[0].mxu0
  %v2760 = vadd.f32 %v2370, %v2759
  %v2761 = vpop.f32.mrb[0].mxu0
  %v2762 = vadd.f32 %v2374, %v2761
  %2763 = vdwg.mxu0
  %2764 = vmatprep.subr.mxu0 %v1929
  %2765 = vmatpush1.msra.mxu0 %v1928
  %2766 = vmatprep.subr.mxu0 %v1933
  %2767 = vmatpush1.msra.mxu0 %v1932
  %2768 = vmatprep.subr.mxu0 %v1937
  %2769 = vmatpush1.msra.mxu0 %v1936
  %2770 = vmatprep.subr.mxu0 %v1941
  %2771 = vmatpush1.msra.mxu0 %v1940
  %2772 = vmatprep.subr.mxu0 %v1945
  %2773 = vmatpush1.msra.mxu0 %v1944
  %2774 = vmatprep.subr.mxu0 %v1949
  %2775 = vmatpush1.msra.mxu0 %v1948
  %2776 = vmatprep.subr.mxu0 %v1953
  %2777 = vmatpush1.msra.mxu0 %v1952
  %2778 = vmatprep.subr.mxu0 %v1957
  %2779 = vmatpush1.msra.mxu0 %v1956
  %2780 = vmatprep.subr.mxu0 %v1961
  %2781 = vmatpush1.msra.mxu0 %v1960
  %2782 = vmatprep.subr.mxu0 %v1965
  %2783 = vmatpush1.msra.mxu0 %v1964
  %2784 = vmatprep.subr.mxu0 %v1969
  %2785 = vmatpush1.msra.mxu0 %v1968
  %2786 = vmatprep.subr.mxu0 %v1973
  %2787 = vmatpush1.msra.mxu0 %v1972
  %2788 = vmatprep.subr.mxu0 %v1977
  %2789 = vmatpush1.msra.mxu0 %v1976
  %2790 = vmatprep.subr.mxu0 %v1981
  %2791 = vmatpush1.msra.mxu0 %v1980
  %2792 = vmatprep.subr.mxu0 %v1985
  %2793 = vmatpush1.msra.mxu0 %v1984
  %2794 = vmatprep.subr.mxu0 %v1989
  %2795 = vmatpush1.msra.mxu0 %v1988
  %2796 = vmatprep.subr.mxu0 0.0
  %2797 = vmatpush1.msra.mxu0 0.0
  %2798 = vmatprep.subr.mxu0 0.0
  %2799 = vmatpush1.msra.mxu0 0.0
  %2800 = vmatprep.subr.mxu0 0.0
  %2801 = vmatpush1.msra.mxu0 0.0
  %2802 = vmatprep.subr.mxu0 0.0
  %2803 = vmatpush1.msra.mxu0 0.0
  %2804 = vmatprep.subr.mxu0 0.0
  %2805 = vmatpush1.msra.mxu0 0.0
  %2806 = vmatprep.subr.mxu0 0.0
  %2807 = vmatpush1.msra.mxu0 0.0
  %2808 = vmatprep.subr.mxu0 0.0
  %2809 = vmatpush1.msra.mxu0 0.0
  %2810 = vmatprep.subr.mxu0 0.0
  %2811 = vmatpush1.msra.mxu0 0.0
  %2812 = vmatprep.subr.mxu0 0.0
  %2813 = vmatpush1.msra.mxu0 0.0
  %2814 = vmatprep.subr.mxu0 0.0
  %2815 = vmatpush1.msra.mxu0 0.0
  %2816 = vmatprep.subr.mxu0 0.0
  %2817 = vmatpush1.msra.mxu0 0.0
  %2818 = vmatprep.subr.mxu0 0.0
  %2819 = vmatpush1.msra.mxu0 0.0
  %2820 = vmatprep.subr.mxu0 0.0
  %2821 = vmatpush1.msra.mxu0 0.0
  %2822 = vmatprep.subr.mxu0 0.0
  %2823 = vmatpush1.msra.mxu0 0.0
  %2824 = vmatprep.subr.mxu0 0.0
  %2825 = vmatpush1.msra.mxu0 0.0
  %2826 = vmatprep.subr.mxu0 0.0
  %2827 = vmatpush1.msra.mxu0 0.0
  %2828 = vmatprep.mubr.f32.mxu0 0.0
  %2829 = vmatmul.mubr.f32.gmra.mrb[0].mxu0 %v2692
  %v2830 = vpop.f32.mrb[0].mxu0
  %v2831 = vadd.f32 %v2378, %v2830
  %v2832 = vpop.f32.mrb[0].mxu0
  %v2833 = vadd.f32 %v2382, %v2832
  %2834 = vdwg.mxu0
  %s2835 = scalar_lea.vmem %s14, 8
  %2836 = vst [vmem:[%s2835] sm:$0xff] %v2760
  %2837 = vmatprep.subr.mxu0 %v1878
  %2838 = vmatpush1.msra.mxu0 %v1877
  %2839 = vmatprep.subr.mxu0 %v1881
  %2840 = vmatpush1.msra.mxu0 %v1880
  %2841 = vmatprep.subr.mxu0 %v1884
  %2842 = vmatpush1.msra.mxu0 %v1883
  %2843 = vmatprep.subr.mxu0 %v1887
  %2844 = vmatpush1.msra.mxu0 %v1886
  %2845 = vmatprep.subr.mxu0 %v1890
  %2846 = vmatpush1.msra.mxu0 %v1889
  %2847 = vmatprep.subr.mxu0 %v1893
  %2848 = vmatpush1.msra.mxu0 %v1892
  %2849 = vmatprep.subr.mxu0 %v1896
  %2850 = vmatpush1.msra.mxu0 %v1895
  %2851 = vmatprep.subr.mxu0 %v1899
  %2852 = vmatpush1.msra.mxu0 %v1898
  %2853 = vmatprep.subr.mxu0 %v1902
  %2854 = vmatpush1.msra.mxu0 %v1901
  %2855 = vmatprep.subr.mxu0 %v1905
  %2856 = vmatpush1.msra.mxu0 %v1904
  %2857 = vmatprep.subr.mxu0 %v1908
  %2858 = vmatpush1.msra.mxu0 %v1907
  %2859 = vmatprep.subr.mxu0 %v1911
  %2860 = vmatpush1.msra.mxu0 %v1910
  %2861 = vmatprep.subr.mxu0 %v1914
  %2862 = vmatpush1.msra.mxu0 %v1913
  %2863 = vmatprep.subr.mxu0 %v1917
  %2864 = vmatpush1.msra.mxu0 %v1916
  %2865 = vmatprep.subr.mxu0 %v1920
  %2866 = vmatpush1.msra.mxu0 %v1919
  %2867 = vmatprep.subr.mxu0 %v1923
  %2868 = vmatpush1.msra.mxu0 %v1922
  %2869 = vmatprep.subr.mxu0 0.0
  %2870 = vmatpush1.msra.mxu0 0.0
  %2871 = vmatprep.subr.mxu0 0.0
  %2872 = vmatpush1.msra.mxu0 0.0
  %2873 = vmatprep.subr.mxu0 0.0
  %2874 = vmatpush1.msra.mxu0 0.0
  %2875 = vmatprep.subr.mxu0 0.0
  %2876 = vmatpush1.msra.mxu0 0.0
  %2877 = vmatprep.subr.mxu0 0.0
  %2878 = vmatpush1.msra.mxu0 0.0
  %2879 = vmatprep.subr.mxu0 0.0
  %2880 = vmatpush1.msra.mxu0 0.0
  %2881 = vmatprep.subr.mxu0 0.0
  %2882 = vmatpush1.msra.mxu0 0.0
  %2883 = vmatprep.subr.mxu0 0.0
  %2884 = vmatpush1.msra.mxu0 0.0
  %2885 = vmatprep.subr.mxu0 0.0
  %2886 = vmatpush1.msra.mxu0 0.0
  %2887 = vmatprep.subr.mxu0 0.0
  %2888 = vmatpush1.msra.mxu0 0.0
  %2889 = vmatprep.subr.mxu0 0.0
  %2890 = vmatpush1.msra.mxu0 0.0
  %2891 = vmatprep.subr.mxu0 0.0
  %2892 = vmatpush1.msra.mxu0 0.0
  %2893 = vmatprep.subr.mxu0 0.0
  %2894 = vmatpush1.msra.mxu0 0.0
  %2895 = vmatprep.subr.mxu0 0.0
  %2896 = vmatpush1.msra.mxu0 0.0
  %2897 = vmatprep.subr.mxu0 0.0
  %2898 = vmatpush1.msra.mxu0 0.0
  %2899 = vmatprep.subr.mxu0 0.0
  %2900 = vmatpush1.msra.mxu0 0.0
  %2901 = vmatprep.mubr.f32.mxu0 0.0
  %2902 = vmatmul.mubr.f32.gmra.mrb[0].mxu0 %v2692
  %v2903 = vpop.f32.mrb[0].mxu0
  %v2904 = vadd.f32 0.0, %v2903
  %v2905 = vpop.f32.mrb[0].mxu0
  %v2906 = vadd.f32 0.0, %v2905
  %2907 = vdwg.mxu0
  %2908 = vmatprep.subr.mxu0 0.0
  %2909 = vmatpush1.msra.mxu0 %v1879
  %2910 = vmatprep.subr.mxu0 0.0
  %2911 = vmatpush1.msra.mxu0 %v1882
  %2912 = vmatprep.subr.mxu0 0.0
  %2913 = vmatpush1.msra.mxu0 %v1885
  %2914 = vmatprep.subr.mxu0 0.0
  %2915 = vmatpush1.msra.mxu0 %v1888
  %2916 = vmatprep.subr.mxu0 0.0
  %2917 = vmatpush1.msra.mxu0 %v1891
  %2918 = vmatprep.subr.mxu0 0.0
  %2919 = vmatpush1.msra.mxu0 %v1894
  %2920 = vmatprep.subr.mxu0 0.0
  %2921 = vmatpush1.msra.mxu0 %v1897
  %2922 = vmatprep.subr.mxu0 0.0
  %2923 = vmatpush1.msra.mxu0 %v1900
  %2924 = vmatprep.subr.mxu0 0.0
  %2925 = vmatpush1.msra.mxu0 %v1903
  %2926 = vmatprep.subr.mxu0 0.0
  %2927 = vmatpush1.msra.mxu0 %v1906
  %2928 = vmatprep.subr.mxu0 0.0
  %2929 = vmatpush1.msra.mxu0 %v1909
  %2930 = vmatprep.subr.mxu0 0.0
  %2931 = vmatpush1.msra.mxu0 %v1912
  %2932 = vmatprep.subr.mxu0 0.0
  %2933 = vmatpush1.msra.mxu0 %v1915
  %2934 = vmatprep.subr.mxu0 0.0
  %2935 = vmatpush1.msra.mxu0 %v1918
  %2936 = vmatprep.subr.mxu0 0.0
  %2937 = vmatpush1.msra.mxu0 %v1921
  %2938 = vmatprep.subr.mxu0 0.0
  %2939 = vmatpush1.msra.mxu0 %v1924
  %2940 = vmatprep.subr.mxu0 0.0
  %2941 = vmatpush1.msra.mxu0 0.0
  %2942 = vmatprep.subr.mxu0 0.0
  %2943 = vmatpush1.msra.mxu0 0.0
  %2944 = vmatprep.subr.mxu0 0.0
  %2945 = vmatpush1.msra.mxu0 0.0
  %2946 = vmatprep.subr.mxu0 0.0
  %2947 = vmatpush1.msra.mxu0 0.0
  %2948 = vmatprep.subr.mxu0 0.0
  %2949 = vmatpush1.msra.mxu0 0.0
  %2950 = vmatprep.subr.mxu0 0.0
  %2951 = vmatpush1.msra.mxu0 0.0
  %2952 = vmatprep.subr.mxu0 0.0
  %2953 = vmatpush1.msra.mxu0 0.0
  %2954 = vmatprep.subr.mxu0 0.0
  %2955 = vmatpush1.msra.mxu0 0.0
  %2956 = vmatprep.subr.mxu0 0.0
  %2957 = vmatpush1.msra.mxu0 0.0
  %2958 = vmatprep.subr.mxu0 0.0
  %2959 = vmatpush1.msra.mxu0 0.0
  %2960 = vmatprep.subr.mxu0 0.0
  %2961 = vmatpush1.msra.mxu0 0.0
  %2962 = vmatprep.subr.mxu0 0.0
  %2963 = vmatpush1.msra.mxu0 0.0
  %2964 = vmatprep.subr.mxu0 0.0
  %2965 = vmatpush1.msra.mxu0 0.0
  %2966 = vmatprep.subr.mxu0 0.0
  %2967 = vmatpush1.msra.mxu0 0.0
  %2968 = vmatprep.subr.mxu0 0.0
  %2969 = vmatpush1.msra.mxu0 0.0
  %2970 = vmatprep.subr.mxu0 0.0
  %2971 = vmatpush1.msra.mxu0 0.0
  %2972 = vmatprep.mubr.f32.mxu0 0.0
  %2973 = vmatmul.mubr.f32.gmra.mrb[0].mxu0 %v2692
  %v2974 = vpop.f32.mrb[0].mxu0
  %v2975 = vadd.f32 0.0, %v2974
  %v2976 = vpop.f32.mrb[0].mxu0
  %2977 = vdwg.mxu0
  %v2978 = vadd.f32 %v2762, %v2904
  %v2979 = vxor.u32 %v2978, 2147483648
  %v2980 = vmul.f32 %v2979, 1.442695
  %v2981 = vpow.pop %v2980
  %v2982 = vadd.f32 %v2981, 1.0
  %v2983 = vrcp.pop %v2982
  %v2984 = vmul.f32 1.0, %v2983
  %v2985 = vadd.f32 %v2831, %v2906
  %v2986 = vxor.u32 %v2985, 2147483648
  %v2987 = vmul.f32 %v2986, 1.442695
  %v2988 = vpow.pop %v2987
  %v2989 = vadd.f32 %v2988, 1.0
  %v2990 = vrcp.pop %v2989
  %v2991 = vmul.f32 1.0, %v2990
  %v2992 = vadd.f32 %v2975, %v2356
  %v2993 = vmul.f32 %v2984, %v2992
  %v2994 = vadd.f32 %v2833, %v2993
  %v2995 = vtanh.pop %v2994
  %v2996 = vsub.f32 1.0, %v2991
  %v2997 = vmul.f32 %v2996, %v2995
  %v2998 = vmul.f32 %v2991, %v2692
  %v2999 = vadd.f32 %v2997, %v2998
  %3000 = vmatprep.subr.mxu0 %v1927
  %3001 = vmatpush1.msra.mxu0 %v1926
  %3002 = vmatprep.subr.mxu0 %v1931
  %3003 = vmatpush1.msra.mxu0 %v1930
  %3004 = vmatprep.subr.mxu0 %v1935
  %3005 = vmatpush1.msra.mxu0 %v1934
  %3006 = vmatprep.subr.mxu0 %v1939
  %3007 = vmatpush1.msra.mxu0 %v1938
  %3008 = vmatprep.subr.mxu0 %v1943
  %3009 = vmatpush1.msra.mxu0 %v1942
  %3010 = vmatprep.subr.mxu0 %v1947
  %3011 = vmatpush1.msra.mxu0 %v1946
  %3012 = vmatprep.subr.mxu0 %v1951
  %3013 = vmatpush1.msra.mxu0 %v1950
  %3014 = vmatprep.subr.mxu0 %v1955
  %3015 = vmatpush1.msra.mxu0 %v1954
  %3016 = vmatprep.subr.mxu0 %v1959
  %3017 = vmatpush1.msra.mxu0 %v1958
  %3018 = vmatprep.subr.mxu0 %v1963
  %3019 = vmatpush1.msra.mxu0 %v1962
  %3020 = vmatprep.subr.mxu0 %v1967
  %3021 = vmatpush1.msra.mxu0 %v1966
  %3022 = vmatprep.subr.mxu0 %v1971
  %3023 = vmatpush1.msra.mxu0 %v1970
  %3024 = vmatprep.subr.mxu0 %v1975
  %3025 = vmatpush1.msra.mxu0 %v1974
  %3026 = vmatprep.subr.mxu0 %v1979
  %3027 = vmatpush1.msra.mxu0 %v1978
  %3028 = vmatprep.subr.mxu0 %v1983
  %3029 = vmatpush1.msra.mxu0 %v1982
  %3030 = vmatprep.subr.mxu0 %v1987
  %3031 = vmatpush1.msra.mxu0 %v1986
  %3032 = vmatprep.subr.mxu0 0.0
  %3033 = vmatpush1.msra.mxu0 0.0
  %3034 = vmatprep.subr.mxu0 0.0
  %3035 = vmatpush1.msra.mxu0 0.0
  %3036 = vmatprep.subr.mxu0 0.0
  %3037 = vmatpush1.msra.mxu0 0.0
  %3038 = vmatprep.subr.mxu0 0.0
  %3039 = vmatpush1.msra.mxu0 0.0
  %3040 = vmatprep.subr.mxu0 0.0
  %3041 = vmatpush1.msra.mxu0 0.0
  %3042 = vmatprep.subr.mxu0 0.0
  %3043 = vmatpush1.msra.mxu0 0.0
  %3044 = vmatprep.subr.mxu0 0.0
  %3045 = vmatpush1.msra.mxu0 0.0
  %3046 = vmatprep.subr.mxu0 0.0
  %3047 = vmatpush1.msra.mxu0 0.0
  %3048 = vmatprep.subr.mxu0 0.0
  %3049 = vmatpush1.msra.mxu0 0.0
  %3050 = vmatprep.subr.mxu0 0.0
  %3051 = vmatpush1.msra.mxu0 0.0
  %3052 = vmatprep.subr.mxu0 0.0
  %3053 = vmatpush1.msra.mxu0 0.0
  %3054 = vmatprep.subr.mxu0 0.0
  %3055 = vmatpush1.msra.mxu0 0.0
  %3056 = vmatprep.subr.mxu0 0.0
  %3057 = vmatpush1.msra.mxu0 0.0
  %3058 = vmatprep.subr.mxu0 0.0
  %3059 = vmatpush1.msra.mxu0 0.0
  %3060 = vmatprep.subr.mxu0 0.0
  %3061 = vmatpush1.msra.mxu0 0.0
  %3062 = vmatprep.subr.mxu0 0.0
  %3063 = vmatpush1.msra.mxu0 0.0
  %3064 = vmatprep.mubr.f32.mxu0 0.0
  %3065 = vmatmul.mubr.f32.gmra.mrb[0].mxu0 %v2999
  %v3066 = vpop.f32.mrb[0].mxu0
  %v3067 = vadd.f32 %v2370, %v3066
  %v3068 = vpop.f32.mrb[0].mxu0
  %v3069 = vadd.f32 %v2374, %v3068
  %3070 = vdwg.mxu0
  %3071 = vmatprep.subr.mxu0 %v1929
  %3072 = vmatpush1.msra.mxu0 %v1928
  %3073 = vmatprep.subr.mxu0 %v1933
  %3074 = vmatpush1.msra.mxu0 %v1932
  %3075 = vmatprep.subr.mxu0 %v1937
  %3076 = vmatpush1.msra.mxu0 %v1936
  %3077 = vmatprep.subr.mxu0 %v1941
  %3078 = vmatpush1.msra.mxu0 %v1940
  %3079 = vmatprep.subr.mxu0 %v1945
  %3080 = vmatpush1.msra.mxu0 %v1944
  %3081 = vmatprep.subr.mxu0 %v1949
  %3082 = vmatpush1.msra.mxu0 %v1948
  %3083 = vmatprep.subr.mxu0 %v1953
  %3084 = vmatpush1.msra.mxu0 %v1952
  %3085 = vmatprep.subr.mxu0 %v1957
  %3086 = vmatpush1.msra.mxu0 %v1956
  %3087 = vmatprep.subr.mxu0 %v1961
  %3088 = vmatpush1.msra.mxu0 %v1960
  %3089 = vmatprep.subr.mxu0 %v1965
  %3090 = vmatpush1.msra.mxu0 %v1964
  %3091 = vmatprep.subr.mxu0 %v1969
  %3092 = vmatpush1.msra.mxu0 %v1968
  %3093 = vmatprep.subr.mxu0 %v1973
  %3094 = vmatpush1.msra.mxu0 %v1972
  %3095 = vmatprep.subr.mxu0 %v1977
  %3096 = vmatpush1.msra.mxu0 %v1976
  %3097 = vmatprep.subr.mxu0 %v1981
  %3098 = vmatpush1.msra.mxu0 %v1980
  %3099 = vmatprep.subr.mxu0 %v1985
  %3100 = vmatpush1.msra.mxu0 %v1984
  %3101 = vmatprep.subr.mxu0 %v1989
  %3102 = vmatpush1.msra.mxu0 %v1988
  %3103 = vmatprep.subr.mxu0 0.0
  %3104 = vmatpush1.msra.mxu0 0.0
  %3105 = vmatprep.subr.mxu0 0.0
  %3106 = vmatpush1.msra.mxu0 0.0
  %3107 = vmatprep.subr.mxu0 0.0
  %3108 = vmatpush1.msra.mxu0 0.0
  %3109 = vmatprep.subr.mxu0 0.0
  %3110 = vmatpush1.msra.mxu0 0.0
  %3111 = vmatprep.subr.mxu0 0.0
  %3112 = vmatpush1.msra.mxu0 0.0
  %3113 = vmatprep.subr.mxu0 0.0
  %3114 = vmatpush1.msra.mxu0 0.0
  %3115 = vmatprep.subr.mxu0 0.0
  %3116 = vmatpush1.msra.mxu0 0.0
  %3117 = vmatprep.subr.mxu0 0.0
  %3118 = vmatpush1.msra.mxu0 0.0
  %3119 = vmatprep.subr.mxu0 0.0
  %3120 = vmatpush1.msra.mxu0 0.0
  %3121 = vmatprep.subr.mxu0 0.0
  %3122 = vmatpush1.msra.mxu0 0.0
  %3123 = vmatprep.subr.mxu0 0.0
  %3124 = vmatpush1.msra.mxu0 0.0
  %3125 = vmatprep.subr.mxu0 0.0
  %3126 = vmatpush1.msra.mxu0 0.0
  %3127 = vmatprep.subr.mxu0 0.0
  %3128 = vmatpush1.msra.mxu0 0.0
  %3129 = vmatprep.subr.mxu0 0.0
  %3130 = vmatpush1.msra.mxu0 0.0
  %3131 = vmatprep.subr.mxu0 0.0
  %3132 = vmatpush1.msra.mxu0 0.0
  %3133 = vmatprep.subr.mxu0 0.0
  %3134 = vmatpush1.msra.mxu0 0.0
  %3135 = vmatprep.mubr.f32.mxu0 0.0
  %3136 = vmatmul.mubr.f32.gmra.mrb[0].mxu0 %v2999
  %v3137 = vpop.f32.mrb[0].mxu0
  %v3138 = vadd.f32 %v2378, %v3137
  %v3139 = vpop.f32.mrb[0].mxu0
  %v3140 = vadd.f32 %v2382, %v3139
  %3141 = vdwg.mxu0
  %s3142 = scalar_lea.vmem %s14, 16
  %3143 = vst [vmem:[%s3142] sm:$0xff] %v3067
  %3144 = vmatprep.subr.mxu0 %v1878
  %3145 = vmatpush1.msra.mxu0 %v1877
  %3146 = vmatprep.subr.mxu0 %v1881
  %3147 = vmatpush1.msra.mxu0 %v1880
  %3148 = vmatprep.subr.mxu0 %v1884
  %3149 = vmatpush1.msra.mxu0 %v1883
  %3150 = vmatprep.subr.mxu0 %v1887
  %3151 = vmatpush1.msra.mxu0 %v1886
  %3152 = vmatprep.subr.mxu0 %v1890
  %3153 = vmatpush1.msra.mxu0 %v1889
  %3154 = vmatprep.subr.mxu0 %v1893
  %3155 = vmatpush1.msra.mxu0 %v1892
  %3156 = vmatprep.subr.mxu0 %v1896
  %3157 = vmatpush1.msra.mxu0 %v1895
  %3158 = vmatprep.subr.mxu0 %v1899
  %3159 = vmatpush1.msra.mxu0 %v1898
  %3160 = vmatprep.subr.mxu0 %v1902
  %3161 = vmatpush1.msra.mxu0 %v1901
  %3162 = vmatprep.subr.mxu0 %v1905
  %3163 = vmatpush1.msra.mxu0 %v1904
  %3164 = vmatprep.subr.mxu0 %v1908
  %3165 = vmatpush1.msra.mxu0 %v1907
  %3166 = vmatprep.subr.mxu0 %v1911
  %3167 = vmatpush1.msra.mxu0 %v1910
  %3168 = vmatprep.subr.mxu0 %v1914
  %3169 = vmatpush1.msra.mxu0 %v1913
  %3170 = vmatprep.subr.mxu0 %v1917
  %3171 = vmatpush1.msra.mxu0 %v1916
  %3172 = vmatprep.subr.mxu0 %v1920
  %3173 = vmatpush1.msra.mxu0 %v1919
  %3174 = vmatprep.subr.mxu0 %v1923
  %3175 = vmatpush1.msra.mxu0 %v1922
  %3176 = vmatprep.subr.mxu0 0.0
  %3177 = vmatpush1.msra.mxu0 0.0
  %3178 = vmatprep.subr.mxu0 0.0
  %3179 = vmatpush1.msra.mxu0 0.0
  %3180 = vmatprep.subr.mxu0 0.0
  %3181 = vmatpush1.msra.mxu0 0.0
  %3182 = vmatprep.subr.mxu0 0.0
  %3183 = vmatpush1.msra.mxu0 0.0
  %3184 = vmatprep.subr.mxu0 0.0
  %3185 = vmatpush1.msra.mxu0 0.0
  %3186 = vmatprep.subr.mxu0 0.0
  %3187 = vmatpush1.msra.mxu0 0.0
  %3188 = vmatprep.subr.mxu0 0.0
  %3189 = vmatpush1.msra.mxu0 0.0
  %3190 = vmatprep.subr.mxu0 0.0
  %3191 = vmatpush1.msra.mxu0 0.0
  %3192 = vmatprep.subr.mxu0 0.0
  %3193 = vmatpush1.msra.mxu0 0.0
  %3194 = vmatprep.subr.mxu0 0.0
  %3195 = vmatpush1.msra.mxu0 0.0
  %3196 = vmatprep.subr.mxu0 0.0
  %3197 = vmatpush1.msra.mxu0 0.0
  %3198 = vmatprep.subr.mxu0 0.0
  %3199 = vmatpush1.msra.mxu0 0.0
  %3200 = vmatprep.subr.mxu0 0.0
  %3201 = vmatpush1.msra.mxu0 0.0
  %3202 = vmatprep.subr.mxu0 0.0
  %3203 = vmatpush1.msra.mxu0 0.0
  %3204 = vmatprep.subr.mxu0 0.0
  %3205 = vmatpush1.msra.mxu0 0.0
  %3206 = vmatprep.subr.mxu0 0.0
  %3207 = vmatpush1.msra.mxu0 0.0
  %3208 = vmatprep.mubr.f32.mxu0 0.0
  %3209 = vmatmul.mubr.f32.gmra.mrb[0].mxu0 %v2999
  %v3210 = vpop.f32.mrb[0].mxu0
  %v3211 = vadd.f32 0.0, %v3210
  %v3212 = vpop.f32.mrb[0].mxu0
  %v3213 = vadd.f32 0.0, %v3212
  %3214 = vdwg.mxu0
  %3215 = vmatprep.subr.mxu0 0.0
  %3216 = vmatpush1.msra.mxu0 %v1879
  %3217 = vmatprep.subr.mxu0 0.0
  %3218 = vmatpush1.msra.mxu0 %v1882
  %3219 = vmatprep.subr.mxu0 0.0
  %3220 = vmatpush1.msra.mxu0 %v1885
  %3221 = vmatprep.subr.mxu0 0.0
  %3222 = vmatpush1.msra.mxu0 %v1888
  %3223 = vmatprep.subr.mxu0 0.0
  %3224 = vmatpush1.msra.mxu0 %v1891
  %3225 = vmatprep.subr.mxu0 0.0
  %3226 = vmatpush1.msra.mxu0 %v1894
  %3227 = vmatprep.subr.mxu0 0.0
  %3228 = vmatpush1.msra.mxu0 %v1897
  %3229 = vmatprep.subr.mxu0 0.0
  %3230 = vmatpush1.msra.mxu0 %v1900
  %3231 = vmatprep.subr.mxu0 0.0
  %3232 = vmatpush1.msra.mxu0 %v1903
  %3233 = vmatprep.subr.mxu0 0.0
  %3234 = vmatpush1.msra.mxu0 %v1906
  %3235 = vmatprep.subr.mxu0 0.0
  %3236 = vmatpush1.msra.mxu0 %v1909
  %3237 = vmatprep.subr.mxu0 0.0
  %3238 = vmatpush1.msra.mxu0 %v1912
  %3239 = vmatprep.subr.mxu0 0.0
  %3240 = vmatpush1.msra.mxu0 %v1915
  %3241 = vmatprep.subr.mxu0 0.0
  %3242 = vmatpush1.msra.mxu0 %v1918
  %3243 = vmatprep.subr.mxu0 0.0
  %3244 = vmatpush1.msra.mxu0 %v1921
  %3245 = vmatprep.subr.mxu0 0.0
  %3246 = vmatpush1.msra.mxu0 %v1924
  %3247 = vmatprep.subr.mxu0 0.0
  %3248 = vmatpush1.msra.mxu0 0.0
  %3249 = vmatprep.subr.mxu0 0.0
  %3250 = vmatpush1.msra.mxu0 0.0
  %3251 = vmatprep.subr.mxu0 0.0
  %3252 = vmatpush1.msra.mxu0 0.0
  %3253 = vmatprep.subr.mxu0 0.0
  %3254 = vmatpush1.msra.mxu0 0.0
  %3255 = vmatprep.subr.mxu0 0.0
  %3256 = vmatpush1.msra.mxu0 0.0
  %3257 = vmatprep.subr.mxu0 0.0
  %3258 = vmatpush1.msra.mxu0 0.0
  %3259 = vmatprep.subr.mxu0 0.0
  %3260 = vmatpush1.msra.mxu0 0.0
  %3261 = vmatprep.subr.mxu0 0.0
  %3262 = vmatpush1.msra.mxu0 0.0
  %3263 = vmatprep.subr.mxu0 0.0
  %3264 = vmatpush1.msra.mxu0 0.0
  %3265 = vmatprep.subr.mxu0 0.0
  %3266 = vmatpush1.msra.mxu0 0.0
  %3267 = vmatprep.subr.mxu0 0.0
  %3268 = vmatpush1.msra.mxu0 0.0
  %3269 = vmatprep.subr.mxu0 0.0
  %3270 = vmatpush1.msra.mxu0 0.0
  %3271 = vmatprep.subr.mxu0 0.0
  %3272 = vmatpush1.msra.mxu0 0.0
  %3273 = vmatprep.subr.mxu0 0.0
  %3274 = vmatpush1.msra.mxu0 0.0
  %3275 = vmatprep.subr.mxu0 0.0
  %3276 = vmatpush1.msra.mxu0 0.0
  %3277 = vmatprep.subr.mxu0 0.0
  %3278 = vmatpush1.msra.mxu0 0.0
  %3279 = vmatprep.mubr.f32.mxu0 0.0
  %3280 = vmatmul.mubr.f32.gmra.mrb[0].mxu0 %v2999
  %v3281 = vpop.f32.mrb[0].mxu0
  %v3282 = vadd.f32 0.0, %v3281
  %v3283 = vpop.f32.mrb[0].mxu0
  %3284 = vdwg.mxu0
  %v3285 = vadd.f32 %v3069, %v3211
  %v3286 = vxor.u32 %v3285, 2147483648
  %v3287 = vmul.f32 %v3286, 1.442695
  %v3288 = vpow.pop %v3287
  %v3289 = vadd.f32 %v3288, 1.0
  %v3290 = vrcp.pop %v3289
  %v3291 = vmul.f32 1.0, %v3290
  %v3292 = vadd.f32 %v3138, %v3213
  %v3293 = vxor.u32 %v3292, 2147483648
  %v3294 = vmul.f32 %v3293, 1.442695
  %v3295 = vpow.pop %v3294
  %v3296 = vadd.f32 %v3295, 1.0
  %v3297 = vrcp.pop %v3296
  %v3298 = vmul.f32 1.0, %v3297
  %v3299 = vadd.f32 %v3282, %v2356
  %v3300 = vmul.f32 %v3291, %v3299
  %v3301 = vadd.f32 %v3140, %v3300
  %v3302 = vtanh.pop %v3301
  %v3303 = vsub.f32 1.0, %v3298
  %v3304 = vmul.f32 %v3303, %v3302
  %v3305 = vmul.f32 %v3298, %v2999
  %v3306 = vadd.f32 %v3304, %v3305
  %3307 = vmatprep.subr.mxu0 %v1927
  %3308 = vmatpush1.msra.mxu0 %v1926
  %3309 = vmatprep.subr.mxu0 %v1931
  %3310 = vmatpush1.msra.mxu0 %v1930
  %3311 = vmatprep.subr.mxu0 %v1935
  %3312 = vmatpush1.msra.mxu0 %v1934
  %3313 = vmatprep.subr.mxu0 %v1939
  %3314 = vmatpush1.msra.mxu0 %v1938
  %3315 = vmatprep.subr.mxu0 %v1943
  %3316 = vmatpush1.msra.mxu0 %v1942
  %3317 = vmatprep.subr.mxu0 %v1947
  %3318 = vmatpush1.msra.mxu0 %v1946
  %3319 = vmatprep.subr.mxu0 %v1951
  %3320 = vmatpush1.msra.mxu0 %v1950
  %3321 = vmatprep.subr.mxu0 %v1955
  %3322 = vmatpush1.msra.mxu0 %v1954
  %3323 = vmatprep.subr.mxu0 %v1959
  %3324 = vmatpush1.msra.mxu0 %v1958
  %3325 = vmatprep.subr.mxu0 %v1963
  %3326 = vmatpush1.msra.mxu0 %v1962
  %3327 = vmatprep.subr.mxu0 %v1967
  %3328 = vmatpush1.msra.mxu0 %v1966
  %3329 = vmatprep.subr.mxu0 %v1971
  %3330 = vmatpush1.msra.mxu0 %v1970
  %3331 = vmatprep.subr.mxu0 %v1975
  %3332 = vmatpush1.msra.mxu0 %v1974
  %3333 = vmatprep.subr.mxu0 %v1979
  %3334 = vmatpush1.msra.mxu0 %v1978
  %3335 = vmatprep.subr.mxu0 %v1983
  %3336 = vmatpush1.msra.mxu0 %v1982
  %3337 = vmatprep.subr.mxu0 %v1987
  %3338 = vmatpush1.msra.mxu0 %v1986
  %3339 = vmatprep.subr.mxu0 0.0
  %3340 = vmatpush1.msra.mxu0 0.0
  %3341 = vmatprep.subr.mxu0 0.0
  %3342 = vmatpush1.msra.mxu0 0.0
  %3343 = vmatprep.subr.mxu0 0.0
  %3344 = vmatpush1.msra.mxu0 0.0
  %3345 = vmatprep.subr.mxu0 0.0
  %3346 = vmatpush1.msra.mxu0 0.0
  %3347 = vmatprep.subr.mxu0 0.0
  %3348 = vmatpush1.msra.mxu0 0.0
  %3349 = vmatprep.subr.mxu0 0.0
  %3350 = vmatpush1.msra.mxu0 0.0
  %3351 = vmatprep.subr.mxu0 0.0
  %3352 = vmatpush1.msra.mxu0 0.0
  %3353 = vmatprep.subr.mxu0 0.0
  %3354 = vmatpush1.msra.mxu0 0.0
  %3355 = vmatprep.subr.mxu0 0.0
  %3356 = vmatpush1.msra.mxu0 0.0
  %3357 = vmatprep.subr.mxu0 0.0
  %3358 = vmatpush1.msra.mxu0 0.0
  %3359 = vmatprep.subr.mxu0 0.0
  %3360 = vmatpush1.msra.mxu0 0.0
  %3361 = vmatprep.subr.mxu0 0.0
  %3362 = vmatpush1.msra.mxu0 0.0
  %3363 = vmatprep.subr.mxu0 0.0
  %3364 = vmatpush1.msra.mxu0 0.0
  %3365 = vmatprep.subr.mxu0 0.0
  %3366 = vmatpush1.msra.mxu0 0.0
  %3367 = vmatprep.subr.mxu0 0.0
  %3368 = vmatpush1.msra.mxu0 0.0
  %3369 = vmatprep.subr.mxu0 0.0
  %3370 = vmatpush1.msra.mxu0 0.0
  %3371 = vmatprep.mubr.f32.mxu0 0.0
  %3372 = vmatmul.mubr.f32.gmra.mrb[0].mxu0 %v3306
  %v3373 = vpop.f32.mrb[0].mxu0
  %v3374 = vadd.f32 %v2370, %v3373
  %v3375 = vpop.f32.mrb[0].mxu0
  %v3376 = vadd.f32 %v2374, %v3375
  %3377 = vdwg.mxu0
  %3378 = vmatprep.subr.mxu0 %v1929
  %3379 = vmatpush1.msra.mxu0 %v1928
  %3380 = vmatprep.subr.mxu0 %v1933
  %3381 = vmatpush1.msra.mxu0 %v1932
  %3382 = vmatprep.subr.mxu0 %v1937
  %3383 = vmatpush1.msra.mxu0 %v1936
  %3384 = vmatprep.subr.mxu0 %v1941
  %3385 = vmatpush1.msra.mxu0 %v1940
  %3386 = vmatprep.subr.mxu0 %v1945
  %3387 = vmatpush1.msra.mxu0 %v1944
  %3388 = vmatprep.subr.mxu0 %v1949
  %3389 = vmatpush1.msra.mxu0 %v1948
  %3390 = vmatprep.subr.mxu0 %v1953
  %3391 = vmatpush1.msra.mxu0 %v1952
  %3392 = vmatprep.subr.mxu0 %v1957
  %3393 = vmatpush1.msra.mxu0 %v1956
  %3394 = vmatprep.subr.mxu0 %v1961
  %3395 = vmatpush1.msra.mxu0 %v1960
  %3396 = vmatprep.subr.mxu0 %v1965
  %3397 = vmatpush1.msra.mxu0 %v1964
  %3398 = vmatprep.subr.mxu0 %v1969
  %3399 = vmatpush1.msra.mxu0 %v1968
  %3400 = vmatprep.subr.mxu0 %v1973
  %3401 = vmatpush1.msra.mxu0 %v1972
  %3402 = vmatprep.subr.mxu0 %v1977
  %3403 = vmatpush1.msra.mxu0 %v1976
  %3404 = vmatprep.subr.mxu0 %v1981
  %3405 = vmatpush1.msra.mxu0 %v1980
  %3406 = vmatprep.subr.mxu0 %v1985
  %3407 = vmatpush1.msra.mxu0 %v1984
  %3408 = vmatprep.subr.mxu0 %v1989
  %3409 = vmatpush1.msra.mxu0 %v1988
  %3410 = vmatprep.subr.mxu0 0.0
  %3411 = vmatpush1.msra.mxu0 0.0
  %3412 = vmatprep.subr.mxu0 0.0
  %3413 = vmatpush1.msra.mxu0 0.0
  %3414 = vmatprep.subr.mxu0 0.0
  %3415 = vmatpush1.msra.mxu0 0.0
  %3416 = vmatprep.subr.mxu0 0.0
  %3417 = vmatpush1.msra.mxu0 0.0
  %3418 = vmatprep.subr.mxu0 0.0
  %3419 = vmatpush1.msra.mxu0 0.0
  %3420 = vmatprep.subr.mxu0 0.0
  %3421 = vmatpush1.msra.mxu0 0.0
  %3422 = vmatprep.subr.mxu0 0.0
  %3423 = vmatpush1.msra.mxu0 0.0
  %3424 = vmatprep.subr.mxu0 0.0
  %3425 = vmatpush1.msra.mxu0 0.0
  %3426 = vmatprep.subr.mxu0 0.0
  %3427 = vmatpush1.msra.mxu0 0.0
  %3428 = vmatprep.subr.mxu0 0.0
  %3429 = vmatpush1.msra.mxu0 0.0
  %3430 = vmatprep.subr.mxu0 0.0
  %3431 = vmatpush1.msra.mxu0 0.0
  %3432 = vmatprep.subr.mxu0 0.0
  %3433 = vmatpush1.msra.mxu0 0.0
  %3434 = vmatprep.subr.mxu0 0.0
  %3435 = vmatpush1.msra.mxu0 0.0
  %3436 = vmatprep.subr.mxu0 0.0
  %3437 = vmatpush1.msra.mxu0 0.0
  %3438 = vmatprep.subr.mxu0 0.0
  %3439 = vmatpush1.msra.mxu0 0.0
  %3440 = vmatprep.subr.mxu0 0.0
  %3441 = vmatpush1.msra.mxu0 0.0
  %3442 = vmatprep.mubr.f32.mxu0 0.0
  %3443 = vmatmul.mubr.f32.gmra.mrb[0].mxu0 %v3306
  %v3444 = vpop.f32.mrb[0].mxu0
  %v3445 = vadd.f32 %v2378, %v3444
  %v3446 = vpop.f32.mrb[0].mxu0
  %v3447 = vadd.f32 %v2382, %v3446
  %3448 = vdwg.mxu0
  %s3449 = scalar_lea.vmem %s14, 24
  %3450 = vst [vmem:[%s3449] sm:$0xff] %v3374
  %3451 = vmatprep.subr.mxu0 %v1878
  %3452 = vmatpush1.msra.mxu0 %v1877
  %3453 = vmatprep.subr.mxu0 %v1881
  %3454 = vmatpush1.msra.mxu0 %v1880
  %3455 = vmatprep.subr.mxu0 %v1884
  %3456 = vmatpush1.msra.mxu0 %v1883
  %3457 = vmatprep.subr.mxu0 %v1887
  %3458 = vmatpush1.msra.mxu0 %v1886
  %3459 = vmatprep.subr.mxu0 %v1890
  %3460 = vmatpush1.msra.mxu0 %v1889
  %3461 = vmatprep.subr.mxu0 %v1893
  %3462 = vmatpush1.msra.mxu0 %v1892
  %3463 = vmatprep.subr.mxu0 %v1896
  %3464 = vmatpush1.msra.mxu0 %v1895
  %3465 = vmatprep.subr.mxu0 %v1899
  %3466 = vmatpush1.msra.mxu0 %v1898
  %3467 = vmatprep.subr.mxu0 %v1902
  %3468 = vmatpush1.msra.mxu0 %v1901
  %3469 = vmatprep.subr.mxu0 %v1905
  %3470 = vmatpush1.msra.mxu0 %v1904
  %3471 = vmatprep.subr.mxu0 %v1908
  %3472 = vmatpush1.msra.mxu0 %v1907
  %3473 = vmatprep.subr.mxu0 %v1911
  %3474 = vmatpush1.msra.mxu0 %v1910
  %3475 = vmatprep.subr.mxu0 %v1914
  %3476 = vmatpush1.msra.mxu0 %v1913
  %3477 = vmatprep.subr.mxu0 %v1917
  %3478 = vmatpush1.msra.mxu0 %v1916
  %3479 = vmatprep.subr.mxu0 %v1920
  %3480 = vmatpush1.msra.mxu0 %v1919
  %3481 = vmatprep.subr.mxu0 %v1923
  %3482 = vmatpush1.msra.mxu0 %v1922
  %3483 = vmatprep.subr.mxu0 0.0
  %3484 = vmatpush1.msra.mxu0 0.0
  %3485 = vmatprep.subr.mxu0 0.0
  %3486 = vmatpush1.msra.mxu0 0.0
  %3487 = vmatprep.subr.mxu0 0.0
  %3488 = vmatpush1.msra.mxu0 0.0
  %3489 = vmatprep.subr.mxu0 0.0
  %3490 = vmatpush1.msra.mxu0 0.0
  %3491 = vmatprep.subr.mxu0 0.0
  %3492 = vmatpush1.msra.mxu0 0.0
  %3493 = vmatprep.subr.mxu0 0.0
  %3494 = vmatpush1.msra.mxu0 0.0
  %3495 = vmatprep.subr.mxu0 0.0
  %3496 = vmatpush1.msra.mxu0 0.0
  %3497 = vmatprep.subr.mxu0 0.0
  %3498 = vmatpush1.msra.mxu0 0.0
  %3499 = vmatprep.subr.mxu0 0.0
  %3500 = vmatpush1.msra.mxu0 0.0
  %3501 = vmatprep.subr.mxu0 0.0
  %3502 = vmatpush1.msra.mxu0 0.0
  %3503 = vmatprep.subr.mxu0 0.0
  %3504 = vmatpush1.msra.mxu0 0.0
  %3505 = vmatprep.subr.mxu0 0.0
  %3506 = vmatpush1.msra.mxu0 0.0
  %3507 = vmatprep.subr.mxu0 0.0
  %3508 = vmatpush1.msra.mxu0 0.0
  %3509 = vmatprep.subr.mxu0 0.0
  %3510 = vmatpush1.msra.mxu0 0.0
  %3511 = vmatprep.subr.mxu0 0.0
  %3512 = vmatpush1.msra.mxu0 0.0
  %3513 = vmatprep.subr.mxu0 0.0
  %3514 = vmatpush1.msra.mxu0 0.0
  %3515 = vmatprep.mubr.f32.mxu0 0.0
  %3516 = vmatmul.mubr.f32.gmra.mrb[0].mxu0 %v3306
  %v3517 = vpop.f32.mrb[0].mxu0
  %v3518 = vadd.f32 0.0, %v3517
  %v3519 = vpop.f32.mrb[0].mxu0
  %v3520 = vadd.f32 0.0, %v3519
  %3521 = vdwg.mxu0
  %3522 = vmatprep.subr.mxu0 0.0
  %3523 = vmatpush1.msra.mxu0 %v1879
  %3524 = vmatprep.subr.mxu0 0.0
  %3525 = vmatpush1.msra.mxu0 %v1882
  %3526 = vmatprep.subr.mxu0 0.0
  %3527 = vmatpush1.msra.mxu0 %v1885
  %3528 = vmatprep.subr.mxu0 0.0
  %3529 = vmatpush1.msra.mxu0 %v1888
  %3530 = vmatprep.subr.mxu0 0.0
  %3531 = vmatpush1.msra.mxu0 %v1891
  %3532 = vmatprep.subr.mxu0 0.0
  %3533 = vmatpush1.msra.mxu0 %v1894
  %3534 = vmatprep.subr.mxu0 0.0
  %3535 = vmatpush1.msra.mxu0 %v1897
  %3536 = vmatprep.subr.mxu0 0.0
  %3537 = vmatpush1.msra.mxu0 %v1900
  %3538 = vmatprep.subr.mxu0 0.0
  %3539 = vmatpush1.msra.mxu0 %v1903
  %3540 = vmatprep.subr.mxu0 0.0
  %3541 = vmatpush1.msra.mxu0 %v1906
  %3542 = vmatprep.subr.mxu0 0.0
  %3543 = vmatpush1.msra.mxu0 %v1909
  %3544 = vmatprep.subr.mxu0 0.0
  %3545 = vmatpush1.msra.mxu0 %v1912
  %3546 = vmatprep.subr.mxu0 0.0
  %3547 = vmatpush1.msra.mxu0 %v1915
  %3548 = vmatprep.subr.mxu0 0.0
  %3549 = vmatpush1.msra.mxu0 %v1918
  %3550 = vmatprep.subr.mxu0 0.0
  %3551 = vmatpush1.msra.mxu0 %v1921
  %3552 = vmatprep.subr.mxu0 0.0
  %3553 = vmatpush1.msra.mxu0 %v1924
  %3554 = vmatprep.subr.mxu0 0.0
  %3555 = vmatpush1.msra.mxu0 0.0
  %3556 = vmatprep.subr.mxu0 0.0
  %3557 = vmatpush1.msra.mxu0 0.0
  %3558 = vmatprep.subr.mxu0 0.0
  %3559 = vmatpush1.msra.mxu0 0.0
  %3560 = vmatprep.subr.mxu0 0.0
  %3561 = vmatpush1.msra.mxu0 0.0
  %3562 = vmatprep.subr.mxu0 0.0
  %3563 = vmatpush1.msra.mxu0 0.0
  %3564 = vmatprep.subr.mxu0 0.0
  %3565 = vmatpush1.msra.mxu0 0.0
  %3566 = vmatprep.subr.mxu0 0.0
  %3567 = vmatpush1.msra.mxu0 0.0
  %3568 = vmatprep.subr.mxu0 0.0
  %3569 = vmatpush1.msra.mxu0 0.0
  %3570 = vmatprep.subr.mxu0 0.0
  %3571 = vmatpush1.msra.mxu0 0.0
  %3572 = vmatprep.subr.mxu0 0.0
  %3573 = vmatpush1.msra.mxu0 0.0
  %3574 = vmatprep.subr.mxu0 0.0
  %3575 = vmatpush1.msra.mxu0 0.0
  %3576 = vmatprep.subr.mxu0 0.0
  %3577 = vmatpush1.msra.mxu0 0.0
  %3578 = vmatprep.subr.mxu0 0.0
  %3579 = vmatpush1.msra.mxu0 0.0
  %3580 = vmatprep.subr.mxu0 0.0
  %3581 = vmatpush1.msra.mxu0 0.0
  %3582 = vmatprep.subr.mxu0 0.0
  %3583 = vmatpush1.msra.mxu0 0.0
  %3584 = vmatprep.subr.mxu0 0.0
  %3585 = vmatpush1.msra.mxu0 0.0
  %3586 = vmatprep.mubr.f32.mxu0 0.0
  %3587 = vmatmul.mubr.f32.gmra.mrb[0].mxu0 %v3306
  %v3588 = vpop.f32.mrb[0].mxu0
  %v3589 = vadd.f32 0.0, %v3588
  %v3590 = vpop.f32.mrb[0].mxu0
  %3591 = vdwg.mxu0
  %v3592 = vadd.f32 %v3376, %v3518
  %v3593 = vxor.u32 %v3592, 2147483648
  %v3594 = vmul.f32 %v3593, 1.442695
  %v3595 = vpow.pop %v3594
  %v3596 = vadd.f32 %v3595, 1.0
  %v3597 = vrcp.pop %v3596
  %v3598 = vmul.f32 1.0, %v3597
  %v3599 = vadd.f32 %v3445, %v3520
  %v3600 = vxor.u32 %v3599, 2147483648
  %v3601 = vmul.f32 %v3600, 1.442695
  %v3602 = vpow.pop %v3601
  %v3603 = vadd.f32 %v3602, 1.0
  %v3604 = vrcp.pop %v3603
  %v3605 = vmul.f32 1.0, %v3604
  %v3606 = vadd.f32 %v3589, %v2356
  %v3607 = vmul.f32 %v3598, %v3606
  %v3608 = vadd.f32 %v3447, %v3607
  %v3609 = vtanh.pop %v3608
  %v3610 = vsub.f32 1.0, %v3605
  %v3611 = vmul.f32 %v3610, %v3609
  %v3612 = vmul.f32 %v3605, %v3306
  %v3613 = vadd.f32 %v3611, %v3612
  %3614 = vmatprep.subr.mxu0 %v1927
  %3615 = vmatpush1.msra.mxu0 %v1926
  %3616 = vmatprep.subr.mxu0 %v1931
  %3617 = vmatpush1.msra.mxu0 %v1930
  %3618 = vmatprep.subr.mxu0 %v1935
  %3619 = vmatpush1.msra.mxu0 %v1934
  %3620 = vmatprep.subr.mxu0 %v1939
  %3621 = vmatpush1.msra.mxu0 %v1938
  %3622 = vmatprep.subr.mxu0 %v1943
  %3623 = vmatpush1.msra.mxu0 %v1942
  %3624 = vmatprep.subr.mxu0 %v1947
  %3625 = vmatpush1.msra.mxu0 %v1946
  %3626 = vmatprep.subr.mxu0 %v1951
  %3627 = vmatpush1.msra.mxu0 %v1950
  %3628 = vmatprep.subr.mxu0 %v1955
  %3629 = vmatpush1.msra.mxu0 %v1954
  %3630 = vmatprep.subr.mxu0 %v1959
  %3631 = vmatpush1.msra.mxu0 %v1958
  %3632 = vmatprep.subr.mxu0 %v1963
  %3633 = vmatpush1.msra.mxu0 %v1962
  %3634 = vmatprep.subr.mxu0 %v1967
  %3635 = vmatpush1.msra.mxu0 %v1966
  %3636 = vmatprep.subr.mxu0 %v1971
  %3637 = vmatpush1.msra.mxu0 %v1970
  %3638 = vmatprep.subr.mxu0 %v1975
  %3639 = vmatpush1.msra.mxu0 %v1974
  %3640 = vmatprep.subr.mxu0 %v1979
  %3641 = vmatpush1.msra.mxu0 %v1978
  %3642 = vmatprep.subr.mxu0 %v1983
  %3643 = vmatpush1.msra.mxu0 %v1982
  %3644 = vmatprep.subr.mxu0 %v1987
  %3645 = vmatpush1.msra.mxu0 %v1986
  %3646 = vmatprep.subr.mxu0 0.0
  %3647 = vmatpush1.msra.mxu0 0.0
  %3648 = vmatprep.subr.mxu0 0.0
  %3649 = vmatpush1.msra.mxu0 0.0
  %3650 = vmatprep.subr.mxu0 0.0
  %3651 = vmatpush1.msra.mxu0 0.0
  %3652 = vmatprep.subr.mxu0 0.0
  %3653 = vmatpush1.msra.mxu0 0.0
  %3654 = vmatprep.subr.mxu0 0.0
  %3655 = vmatpush1.msra.mxu0 0.0
  %3656 = vmatprep.subr.mxu0 0.0
  %3657 = vmatpush1.msra.mxu0 0.0
  %3658 = vmatprep.subr.mxu0 0.0
  %3659 = vmatpush1.msra.mxu0 0.0
  %3660 = vmatprep.subr.mxu0 0.0
  %3661 = vmatpush1.msra.mxu0 0.0
  %3662 = vmatprep.subr.mxu0 0.0
  %3663 = vmatpush1.msra.mxu0 0.0
  %3664 = vmatprep.subr.mxu0 0.0
  %3665 = vmatpush1.msra.mxu0 0.0
  %3666 = vmatprep.subr.mxu0 0.0
  %3667 = vmatpush1.msra.mxu0 0.0
  %3668 = vmatprep.subr.mxu0 0.0
  %3669 = vmatpush1.msra.mxu0 0.0
  %3670 = vmatprep.subr.mxu0 0.0
  %3671 = vmatpush1.msra.mxu0 0.0
  %3672 = vmatprep.subr.mxu0 0.0
  %3673 = vmatpush1.msra.mxu0 0.0
  %3674 = vmatprep.subr.mxu0 0.0
  %3675 = vmatpush1.msra.mxu0 0.0
  %3676 = vmatprep.subr.mxu0 0.0
  %3677 = vmatpush1.msra.mxu0 0.0
  %3678 = vmatprep.mubr.f32.mxu0 0.0
  %3679 = vmatmul.mubr.f32.gmra.mrb[0].mxu0 %v3613
  %v3680 = vpop.f32.mrb[0].mxu0
  %v3681 = vadd.f32 %v2370, %v3680
  %v3682 = vpop.f32.mrb[0].mxu0
  %v3683 = vadd.f32 %v2374, %v3682
  %3684 = vdwg.mxu0
  %3685 = vmatprep.subr.mxu0 %v1929
  %3686 = vmatpush1.msra.mxu0 %v1928
  %3687 = vmatprep.subr.mxu0 %v1933
  %3688 = vmatpush1.msra.mxu0 %v1932
  %3689 = vmatprep.subr.mxu0 %v1937
  %3690 = vmatpush1.msra.mxu0 %v1936
  %3691 = vmatprep.subr.mxu0 %v1941
  %3692 = vmatpush1.msra.mxu0 %v1940
  %3693 = vmatprep.subr.mxu0 %v1945
  %3694 = vmatpush1.msra.mxu0 %v1944
  %3695 = vmatprep.subr.mxu0 %v1949
  %3696 = vmatpush1.msra.mxu0 %v1948
  %3697 = vmatprep.subr.mxu0 %v1953
  %3698 = vmatpush1.msra.mxu0 %v1952
  %3699 = vmatprep.subr.mxu0 %v1957
  %3700 = vmatpush1.msra.mxu0 %v1956
  %3701 = vmatprep.subr.mxu0 %v1961
  %3702 = vmatpush1.msra.mxu0 %v1960
  %3703 = vmatprep.subr.mxu0 %v1965
  %3704 = vmatpush1.msra.mxu0 %v1964
  %3705 = vmatprep.subr.mxu0 %v1969
  %3706 = vmatpush1.msra.mxu0 %v1968
  %3707 = vmatprep.subr.mxu0 %v1973
  %3708 = vmatpush1.msra.mxu0 %v1972
  %3709 = vmatprep.subr.mxu0 %v1977
  %3710 = vmatpush1.msra.mxu0 %v1976
  %3711 = vmatprep.subr.mxu0 %v1981
  %3712 = vmatpush1.msra.mxu0 %v1980
  %3713 = vmatprep.subr.mxu0 %v1985
  %3714 = vmatpush1.msra.mxu0 %v1984
  %3715 = vmatprep.subr.mxu0 %v1989
  %3716 = vmatpush1.msra.mxu0 %v1988
  %3717 = vmatprep.subr.mxu0 0.0
  %3718 = vmatpush1.msra.mxu0 0.0
  %3719 = vmatprep.subr.mxu0 0.0
  %3720 = vmatpush1.msra.mxu0 0.0
  %3721 = vmatprep.subr.mxu0 0.0
  %3722 = vmatpush1.msra.mxu0 0.0
  %3723 = vmatprep.subr.mxu0 0.0
  %3724 = vmatpush1.msra.mxu0 0.0
  %3725 = vmatprep.subr.mxu0 0.0
  %3726 = vmatpush1.msra.mxu0 0.0
  %3727 = vmatprep.subr.mxu0 0.0
  %3728 = vmatpush1.msra.mxu0 0.0
  %3729 = vmatprep.subr.mxu0 0.0
  %3730 = vmatpush1.msra.mxu0 0.0
  %3731 = vmatprep.subr.mxu0 0.0
  %3732 = vmatpush1.msra.mxu0 0.0
  %3733 = vmatprep.subr.mxu0 0.0
  %3734 = vmatpush1.msra.mxu0 0.0
  %3735 = vmatprep.subr.mxu0 0.0
  %3736 = vmatpush1.msra.mxu0 0.0
  %3737 = vmatprep.subr.mxu0 0.0
  %3738 = vmatpush1.msra.mxu0 0.0
  %3739 = vmatprep.subr.mxu0 0.0
  %3740 = vmatpush1.msra.mxu0 0.0
  %3741 = vmatprep.subr.mxu0 0.0
  %3742 = vmatpush1.msra.mxu0 0.0
  %3743 = vmatprep.subr.mxu0 0.0
  %3744 = vmatpush1.msra.mxu0 0.0
  %3745 = vmatprep.subr.mxu0 0.0
  %3746 = vmatpush1.msra.mxu0 0.0
  %3747 = vmatprep.subr.mxu0 0.0
  %3748 = vmatpush1.msra.mxu0 0.0
  %3749 = vmatprep.mubr.f32.mxu0 0.0
  %3750 = vmatmul.mubr.f32.gmra.mrb[0].mxu0 %v3613
  %v3751 = vpop.f32.mrb[0].mxu0
  %v3752 = vadd.f32 %v2378, %v3751
  %v3753 = vpop.f32.mrb[0].mxu0
  %v3754 = vadd.f32 %v2382, %v3753
  %3755 = vdwg.mxu0
  %s3756 = scalar_lea.vmem %s14, 32
  %3757 = vst [vmem:[%s3756] sm:$0xff] %v3681
  %3758 = vmatprep.subr.mxu0 %v1878
  %3759 = vmatpush1.msra.mxu0 %v1877
  %3760 = vmatprep.subr.mxu0 %v1881
  %3761 = vmatpush1.msra.mxu0 %v1880
  %3762 = vmatprep.subr.mxu0 %v1884
  %3763 = vmatpush1.msra.mxu0 %v1883
  %3764 = vmatprep.subr.mxu0 %v1887
  %3765 = vmatpush1.msra.mxu0 %v1886
  %3766 = vmatprep.subr.mxu0 %v1890
  %3767 = vmatpush1.msra.mxu0 %v1889
  %3768 = vmatprep.subr.mxu0 %v1893
  %3769 = vmatpush1.msra.mxu0 %v1892
  %3770 = vmatprep.subr.mxu0 %v1896
  %3771 = vmatpush1.msra.mxu0 %v1895
  %3772 = vmatprep.subr.mxu0 %v1899
  %3773 = vmatpush1.msra.mxu0 %v1898
  %3774 = vmatprep.subr.mxu0 %v1902
  %3775 = vmatpush1.msra.mxu0 %v1901
  %3776 = vmatprep.subr.mxu0 %v1905
  %3777 = vmatpush1.msra.mxu0 %v1904
  %3778 = vmatprep.subr.mxu0 %v1908
  %3779 = vmatpush1.msra.mxu0 %v1907
  %3780 = vmatprep.subr.mxu0 %v1911
  %3781 = vmatpush1.msra.mxu0 %v1910
  %3782 = vmatprep.subr.mxu0 %v1914
  %3783 = vmatpush1.msra.mxu0 %v1913
  %3784 = vmatprep.subr.mxu0 %v1917
  %3785 = vmatpush1.msra.mxu0 %v1916
  %3786 = vmatprep.subr.mxu0 %v1920
  %3787 = vmatpush1.msra.mxu0 %v1919
  %3788 = vmatprep.subr.mxu0 %v1923
  %3789 = vmatpush1.msra.mxu0 %v1922
  %3790 = vmatprep.subr.mxu0 0.0
  %3791 = vmatpush1.msra.mxu0 0.0
  %3792 = vmatprep.subr.mxu0 0.0
  %3793 = vmatpush1.msra.mxu0 0.0
  %3794 = vmatprep.subr.mxu0 0.0
  %3795 = vmatpush1.msra.mxu0 0.0
  %3796 = vmatprep.subr.mxu0 0.0
  %3797 = vmatpush1.msra.mxu0 0.0
  %3798 = vmatprep.subr.mxu0 0.0
  %3799 = vmatpush1.msra.mxu0 0.0
  %3800 = vmatprep.subr.mxu0 0.0
  %3801 = vmatpush1.msra.mxu0 0.0
  %3802 = vmatprep.subr.mxu0 0.0
  %3803 = vmatpush1.msra.mxu0 0.0
  %3804 = vmatprep.subr.mxu0 0.0
  %3805 = vmatpush1.msra.mxu0 0.0
  %3806 = vmatprep.subr.mxu0 0.0
  %3807 = vmatpush1.msra.mxu0 0.0
  %3808 = vmatprep.subr.mxu0 0.0
  %3809 = vmatpush1.msra.mxu0 0.0
  %3810 = vmatprep.subr.mxu0 0.0
  %3811 = vmatpush1.msra.mxu0 0.0
  %3812 = vmatprep.subr.mxu0 0.0
  %3813 = vmatpush1.msra.mxu0 0.0
  %3814 = vmatprep.subr.mxu0 0.0
  %3815 = vmatpush1.msra.mxu0 0.0
  %3816 = vmatprep.subr.mxu0 0.0
  %3817 = vmatpush1.msra.mxu0 0.0
  %3818 = vmatprep.subr.mxu0 0.0
  %3819 = vmatpush1.msra.mxu0 0.0
  %3820 = vmatprep.subr.mxu0 0.0
  %3821 = vmatpush1.msra.mxu0 0.0
  %3822 = vmatprep.mubr.f32.mxu0 0.0
  %3823 = vmatmul.mubr.f32.gmra.mrb[0].mxu0 %v3613
  %v3824 = vpop.f32.mrb[0].mxu0
  %v3825 = vadd.f32 0.0, %v3824
  %v3826 = vpop.f32.mrb[0].mxu0
  %v3827 = vadd.f32 0.0, %v3826
  %3828 = vdwg.mxu0
  %3829 = vmatprep.subr.mxu0 0.0
  %3830 = vmatpush1.msra.mxu0 %v1879
  %3831 = vmatprep.subr.mxu0 0.0
  %3832 = vmatpush1.msra.mxu0 %v1882
  %3833 = vmatprep.subr.mxu0 0.0
  %3834 = vmatpush1.msra.mxu0 %v1885
  %3835 = vmatprep.subr.mxu0 0.0
  %3836 = vmatpush1.msra.mxu0 %v1888
  %3837 = vmatprep.subr.mxu0 0.0
  %3838 = vmatpush1.msra.mxu0 %v1891
  %3839 = vmatprep.subr.mxu0 0.0
  %3840 = vmatpush1.msra.mxu0 %v1894
  %3841 = vmatprep.subr.mxu0 0.0
  %3842 = vmatpush1.msra.mxu0 %v1897
  %3843 = vmatprep.subr.mxu0 0.0
  %3844 = vmatpush1.msra.mxu0 %v1900
  %3845 = vmatprep.subr.mxu0 0.0
  %3846 = vmatpush1.msra.mxu0 %v1903
  %3847 = vmatprep.subr.mxu0 0.0
  %3848 = vmatpush1.msra.mxu0 %v1906
  %3849 = vmatprep.subr.mxu0 0.0
  %3850 = vmatpush1.msra.mxu0 %v1909
  %3851 = vmatprep.subr.mxu0 0.0
  %3852 = vmatpush1.msra.mxu0 %v1912
  %3853 = vmatprep.subr.mxu0 0.0
  %3854 = vmatpush1.msra.mxu0 %v1915
  %3855 = vmatprep.subr.mxu0 0.0
  %3856 = vmatpush1.msra.mxu0 %v1918
  %3857 = vmatprep.subr.mxu0 0.0
  %3858 = vmatpush1.msra.mxu0 %v1921
  %3859 = vmatprep.subr.mxu0 0.0
  %3860 = vmatpush1.msra.mxu0 %v1924
  %3861 = vmatprep.subr.mxu0 0.0
  %3862 = vmatpush1.msra.mxu0 0.0
  %3863 = vmatprep.subr.mxu0 0.0
  %3864 = vmatpush1.msra.mxu0 0.0
  %3865 = vmatprep.subr.mxu0 0.0
  %3866 = vmatpush1.msra.mxu0 0.0
  %3867 = vmatprep.subr.mxu0 0.0
  %3868 = vmatpush1.msra.mxu0 0.0
  %3869 = vmatprep.subr.mxu0 0.0
  %3870 = vmatpush1.msra.mxu0 0.0
  %3871 = vmatprep.subr.mxu0 0.0
  %3872 = vmatpush1.msra.mxu0 0.0
  %3873 = vmatprep.subr.mxu0 0.0
  %3874 = vmatpush1.msra.mxu0 0.0
  %3875 = vmatprep.subr.mxu0 0.0
  %3876 = vmatpush1.msra.mxu0 0.0
  %3877 = vmatprep.subr.mxu0 0.0
  %3878 = vmatpush1.msra.mxu0 0.0
  %3879 = vmatprep.subr.mxu0 0.0
  %3880 = vmatpush1.msra.mxu0 0.0
  %3881 = vmatprep.subr.mxu0 0.0
  %3882 = vmatpush1.msra.mxu0 0.0
  %3883 = vmatprep.subr.mxu0 0.0
  %3884 = vmatpush1.msra.mxu0 0.0
  %3885 = vmatprep.subr.mxu0 0.0
  %3886 = vmatpush1.msra.mxu0 0.0
  %3887 = vmatprep.subr.mxu0 0.0
  %3888 = vmatpush1.msra.mxu0 0.0
  %3889 = vmatprep.subr.mxu0 0.0
  %3890 = vmatpush1.msra.mxu0 0.0
  %3891 = vmatprep.subr.mxu0 0.0
  %3892 = vmatpush1.msra.mxu0 0.0
  %3893 = vmatprep.mubr.f32.mxu0 0.0
  %3894 = vmatmul.mubr.f32.gmra.mrb[0].mxu0 %v3613
  %v3895 = vpop.f32.mrb[0].mxu0
  %v3896 = vadd.f32 0.0, %v3895
  %v3897 = vpop.f32.mrb[0].mxu0
  %3898 = vdwg.mxu0
  %v3899 = vadd.f32 %v3683, %v3825
  %v3900 = vxor.u32 %v3899, 2147483648
  %v3901 = vmul.f32 %v3900, 1.442695
  %v3902 = vpow.pop %v3901
  %v3903 = vadd.f32 %v3902, 1.0
  %v3904 = vrcp.pop %v3903
  %v3905 = vmul.f32 1.0, %v3904
  %v3906 = vadd.f32 %v3752, %v3827
  %v3907 = vxor.u32 %v3906, 2147483648
  %v3908 = vmul.f32 %v3907, 1.442695
  %v3909 = vpow.pop %v3908
  %v3910 = vadd.f32 %v3909, 1.0
  %v3911 = vrcp.pop %v3910
  %v3912 = vmul.f32 1.0, %v3911
  %v3913 = vadd.f32 %v3896, %v2356
  %v3914 = vmul.f32 %v3905, %v3913
  %v3915 = vadd.f32 %v3754, %v3914
  %v3916 = vtanh.pop %v3915
  %v3917 = vsub.f32 1.0, %v3912
  %v3918 = vmul.f32 %v3917, %v3916
  %v3919 = vmul.f32 %v3912, %v3613
  %v3920 = vadd.f32 %v3918, %v3919
  %3921 = vmatprep.subr.mxu0 %v1927
  %3922 = vmatpush1.msra.mxu0 %v1926
  %3923 = vmatprep.subr.mxu0 %v1931
  %3924 = vmatpush1.msra.mxu0 %v1930
  %3925 = vmatprep.subr.mxu0 %v1935
  %3926 = vmatpush1.msra.mxu0 %v1934
  %3927 = vmatprep.subr.mxu0 %v1939
  %3928 = vmatpush1.msra.mxu0 %v1938
  %3929 = vmatprep.subr.mxu0 %v1943
  %3930 = vmatpush1.msra.mxu0 %v1942
  %3931 = vmatprep.subr.mxu0 %v1947
  %3932 = vmatpush1.msra.mxu0 %v1946
  %3933 = vmatprep.subr.mxu0 %v1951
  %3934 = vmatpush1.msra.mxu0 %v1950
  %3935 = vmatprep.subr.mxu0 %v1955
  %3936 = vmatpush1.msra.mxu0 %v1954
  %3937 = vmatprep.subr.mxu0 %v1959
  %3938 = vmatpush1.msra.mxu0 %v1958
  %3939 = vmatprep.subr.mxu0 %v1963
  %3940 = vmatpush1.msra.mxu0 %v1962
  %3941 = vmatprep.subr.mxu0 %v1967
  %3942 = vmatpush1.msra.mxu0 %v1966
  %3943 = vmatprep.subr.mxu0 %v1971
  %3944 = vmatpush1.msra.mxu0 %v1970
  %3945 = vmatprep.subr.mxu0 %v1975
  %3946 = vmatpush1.msra.mxu0 %v1974
  %3947 = vmatprep.subr.mxu0 %v1979
  %3948 = vmatpush1.msra.mxu0 %v1978
  %3949 = vmatprep.subr.mxu0 %v1983
  %3950 = vmatpush1.msra.mxu0 %v1982
  %3951 = vmatprep.subr.mxu0 %v1987
  %3952 = vmatpush1.msra.mxu0 %v1986
  %3953 = vmatprep.subr.mxu0 0.0
  %3954 = vmatpush1.msra.mxu0 0.0
  %3955 = vmatprep.subr.mxu0 0.0
  %3956 = vmatpush1.msra.mxu0 0.0
  %3957 = vmatprep.subr.mxu0 0.0
  %3958 = vmatpush1.msra.mxu0 0.0
  %3959 = vmatprep.subr.mxu0 0.0
  %3960 = vmatpush1.msra.mxu0 0.0
  %3961 = vmatprep.subr.mxu0 0.0
  %3962 = vmatpush1.msra.mxu0 0.0
  %3963 = vmatprep.subr.mxu0 0.0
  %3964 = vmatpush1.msra.mxu0 0.0
  %3965 = vmatprep.subr.mxu0 0.0
  %3966 = vmatpush1.msra.mxu0 0.0
  %3967 = vmatprep.subr.mxu0 0.0
  %3968 = vmatpush1.msra.mxu0 0.0
  %3969 = vmatprep.subr.mxu0 0.0
  %3970 = vmatpush1.msra.mxu0 0.0
  %3971 = vmatprep.subr.mxu0 0.0
  %3972 = vmatpush1.msra.mxu0 0.0
  %3973 = vmatprep.subr.mxu0 0.0
  %3974 = vmatpush1.msra.mxu0 0.0
  %3975 = vmatprep.subr.mxu0 0.0
  %3976 = vmatpush1.msra.mxu0 0.0
  %3977 = vmatprep.subr.mxu0 0.0
  %3978 = vmatpush1.msra.mxu0 0.0
  %3979 = vmatprep.subr.mxu0 0.0
  %3980 = vmatpush1.msra.mxu0 0.0
  %3981 = vmatprep.subr.mxu0 0.0
  %3982 = vmatpush1.msra.mxu0 0.0
  %3983 = vmatprep.subr.mxu0 0.0
  %3984 = vmatpush1.msra.mxu0 0.0
  %3985 = vmatprep.mubr.f32.mxu0 0.0
  %3986 = vmatmul.mubr.f32.gmra.mrb[0].mxu0 %v3920
  %v3987 = vpop.f32.mrb[0].mxu0
  %v3988 = vadd.f32 %v2370, %v3987
  %v3989 = vpop.f32.mrb[0].mxu0
  %v3990 = vadd.f32 %v2374, %v3989
  %3991 = vdwg.mxu0
  %3992 = vmatprep.subr.mxu0 %v1929
  %3993 = vmatpush1.msra.mxu0 %v1928
  %3994 = vmatprep.subr.mxu0 %v1933
  %3995 = vmatpush1.msra.mxu0 %v1932
  %3996 = vmatprep.subr.mxu0 %v1937
  %3997 = vmatpush1.msra.mxu0 %v1936
  %3998 = vmatprep.subr.mxu0 %v1941
  %3999 = vmatpush1.msra.mxu0 %v1940
  %4000 = vmatprep.subr.mxu0 %v1945
  %4001 = vmatpush1.msra.mxu0 %v1944
  %4002 = vmatprep.subr.mxu0 %v1949
  %4003 = vmatpush1.msra.mxu0 %v1948
  %4004 = vmatprep.subr.mxu0 %v1953
  %4005 = vmatpush1.msra.mxu0 %v1952
  %4006 = vmatprep.subr.mxu0 %v1957
  %4007 = vmatpush1.msra.mxu0 %v1956
  %4008 = vmatprep.subr.mxu0 %v1961
  %4009 = vmatpush1.msra.mxu0 %v1960
  %4010 = vmatprep.subr.mxu0 %v1965
  %4011 = vmatpush1.msra.mxu0 %v1964
  %4012 = vmatprep.subr.mxu0 %v1969
  %4013 = vmatpush1.msra.mxu0 %v1968
  %4014 = vmatprep.subr.mxu0 %v1973
  %4015 = vmatpush1.msra.mxu0 %v1972
  %4016 = vmatprep.subr.mxu0 %v1977
  %4017 = vmatpush1.msra.mxu0 %v1976
  %4018 = vmatprep.subr.mxu0 %v1981
  %4019 = vmatpush1.msra.mxu0 %v1980
  %4020 = vmatprep.subr.mxu0 %v1985
  %4021 = vmatpush1.msra.mxu0 %v1984
  %4022 = vmatprep.subr.mxu0 %v1989
  %4023 = vmatpush1.msra.mxu0 %v1988
  %4024 = vmatprep.subr.mxu0 0.0
  %4025 = vmatpush1.msra.mxu0 0.0
  %4026 = vmatprep.subr.mxu0 0.0
  %4027 = vmatpush1.msra.mxu0 0.0
  %4028 = vmatprep.subr.mxu0 0.0
  %4029 = vmatpush1.msra.mxu0 0.0
  %4030 = vmatprep.subr.mxu0 0.0
  %4031 = vmatpush1.msra.mxu0 0.0
  %4032 = vmatprep.subr.mxu0 0.0
  %4033 = vmatpush1.msra.mxu0 0.0
  %4034 = vmatprep.subr.mxu0 0.0
  %4035 = vmatpush1.msra.mxu0 0.0
  %4036 = vmatprep.subr.mxu0 0.0
  %4037 = vmatpush1.msra.mxu0 0.0
  %4038 = vmatprep.subr.mxu0 0.0
  %4039 = vmatpush1.msra.mxu0 0.0
  %4040 = vmatprep.subr.mxu0 0.0
  %4041 = vmatpush1.msra.mxu0 0.0
  %4042 = vmatprep.subr.mxu0 0.0
  %4043 = vmatpush1.msra.mxu0 0.0
  %4044 = vmatprep.subr.mxu0 0.0
  %4045 = vmatpush1.msra.mxu0 0.0
  %4046 = vmatprep.subr.mxu0 0.0
  %4047 = vmatpush1.msra.mxu0 0.0
  %4048 = vmatprep.subr.mxu0 0.0
  %4049 = vmatpush1.msra.mxu0 0.0
  %4050 = vmatprep.subr.mxu0 0.0
  %4051 = vmatpush1.msra.mxu0 0.0
  %4052 = vmatprep.subr.mxu0 0.0
  %4053 = vmatpush1.msra.mxu0 0.0
  %4054 = vmatprep.subr.mxu0 0.0
  %4055 = vmatpush1.msra.mxu0 0.0
  %4056 = vmatprep.mubr.f32.mxu0 0.0
  %4057 = vmatmul.mubr.f32.gmra.mrb[0].mxu0 %v3920
  %v4058 = vpop.f32.mrb[0].mxu0
  %v4059 = vadd.f32 %v2378, %v4058
  %v4060 = vpop.f32.mrb[0].mxu0
  %v4061 = vadd.f32 %v2382, %v4060
  %4062 = vdwg.mxu0
  %s4063 = scalar_lea.vmem %s14, 40
  %4064 = vst [vmem:[%s4063] sm:$0xff] %v3988
  %4065 = vmatprep.subr.mxu0 %v1878
  %4066 = vmatpush1.msra.mxu0 %v1877
  %4067 = vmatprep.subr.mxu0 %v1881
  %4068 = vmatpush1.msra.mxu0 %v1880
  %4069 = vmatprep.subr.mxu0 %v1884
  %4070 = vmatpush1.msra.mxu0 %v1883
  %4071 = vmatprep.subr.mxu0 %v1887
  %4072 = vmatpush1.msra.mxu0 %v1886
  %4073 = vmatprep.subr.mxu0 %v1890
  %4074 = vmatpush1.msra.mxu0 %v1889
  %4075 = vmatprep.subr.mxu0 %v1893
  %4076 = vmatpush1.msra.mxu0 %v1892
  %4077 = vmatprep.subr.mxu0 %v1896
  %4078 = vmatpush1.msra.mxu0 %v1895
  %4079 = vmatprep.subr.mxu0 %v1899
  %4080 = vmatpush1.msra.mxu0 %v1898
  %4081 = vmatprep.subr.mxu0 %v1902
  %4082 = vmatpush1.msra.mxu0 %v1901
  %4083 = vmatprep.subr.mxu0 %v1905
  %4084 = vmatpush1.msra.mxu0 %v1904
  %4085 = vmatprep.subr.mxu0 %v1908
  %4086 = vmatpush1.msra.mxu0 %v1907
  %4087 = vmatprep.subr.mxu0 %v1911
  %4088 = vmatpush1.msra.mxu0 %v1910
  %4089 = vmatprep.subr.mxu0 %v1914
  %4090 = vmatpush1.msra.mxu0 %v1913
  %4091 = vmatprep.subr.mxu0 %v1917
  %4092 = vmatpush1.msra.mxu0 %v1916
  %4093 = vmatprep.subr.mxu0 %v1920
  %4094 = vmatpush1.msra.mxu0 %v1919
  %4095 = vmatprep.subr.mxu0 %v1923
  %4096 = vmatpush1.msra.mxu0 %v1922
  %4097 = vmatprep.subr.mxu0 0.0
  %4098 = vmatpush1.msra.mxu0 0.0
  %4099 = vmatprep.subr.mxu0 0.0
  %4100 = vmatpush1.msra.mxu0 0.0
  %4101 = vmatprep.subr.mxu0 0.0
  %4102 = vmatpush1.msra.mxu0 0.0
  %4103 = vmatprep.subr.mxu0 0.0
  %4104 = vmatpush1.msra.mxu0 0.0
  %4105 = vmatprep.subr.mxu0 0.0
  %4106 = vmatpush1.msra.mxu0 0.0
  %4107 = vmatprep.subr.mxu0 0.0
  %4108 = vmatpush1.msra.mxu0 0.0
  %4109 = vmatprep.subr.mxu0 0.0
  %4110 = vmatpush1.msra.mxu0 0.0
  %4111 = vmatprep.subr.mxu0 0.0
  %4112 = vmatpush1.msra.mxu0 0.0
  %4113 = vmatprep.subr.mxu0 0.0
  %4114 = vmatpush1.msra.mxu0 0.0
  %4115 = vmatprep.subr.mxu0 0.0
  %4116 = vmatpush1.msra.mxu0 0.0
  %4117 = vmatprep.subr.mxu0 0.0
  %4118 = vmatpush1.msra.mxu0 0.0
  %4119 = vmatprep.subr.mxu0 0.0
  %4120 = vmatpush1.msra.mxu0 0.0
  %4121 = vmatprep.subr.mxu0 0.0
  %4122 = vmatpush1.msra.mxu0 0.0
  %4123 = vmatprep.subr.mxu0 0.0
  %4124 = vmatpush1.msra.mxu0 0.0
  %4125 = vmatprep.subr.mxu0 0.0
  %4126 = vmatpush1.msra.mxu0 0.0
  %4127 = vmatprep.subr.mxu0 0.0
  %4128 = vmatpush1.msra.mxu0 0.0
  %4129 = vmatprep.mubr.f32.mxu0 0.0
  %4130 = vmatmul.mubr.f32.gmra.mrb[0].mxu0 %v3920
  %v4131 = vpop.f32.mrb[0].mxu0
  %v4132 = vadd.f32 0.0, %v4131
  %v4133 = vpop.f32.mrb[0].mxu0
  %v4134 = vadd.f32 0.0, %v4133
  %4135 = vdwg.mxu0
  %4136 = vmatprep.subr.mxu0 0.0
  %4137 = vmatpush1.msra.mxu0 %v1879
  %4138 = vmatprep.subr.mxu0 0.0
  %4139 = vmatpush1.msra.mxu0 %v1882
  %4140 = vmatprep.subr.mxu0 0.0
  %4141 = vmatpush1.msra.mxu0 %v1885
  %4142 = vmatprep.subr.mxu0 0.0
  %4143 = vmatpush1.msra.mxu0 %v1888
  %4144 = vmatprep.subr.mxu0 0.0
  %4145 = vmatpush1.msra.mxu0 %v1891
  %4146 = vmatprep.subr.mxu0 0.0
  %4147 = vmatpush1.msra.mxu0 %v1894
  %4148 = vmatprep.subr.mxu0 0.0
  %4149 = vmatpush1.msra.mxu0 %v1897
  %4150 = vmatprep.subr.mxu0 0.0
  %4151 = vmatpush1.msra.mxu0 %v1900
  %4152 = vmatprep.subr.mxu0 0.0
  %4153 = vmatpush1.msra.mxu0 %v1903
  %4154 = vmatprep.subr.mxu0 0.0
  %4155 = vmatpush1.msra.mxu0 %v1906
  %4156 = vmatprep.subr.mxu0 0.0
  %4157 = vmatpush1.msra.mxu0 %v1909
  %4158 = vmatprep.subr.mxu0 0.0
  %4159 = vmatpush1.msra.mxu0 %v1912
  %4160 = vmatprep.subr.mxu0 0.0
  %4161 = vmatpush1.msra.mxu0 %v1915
  %4162 = vmatprep.subr.mxu0 0.0
  %4163 = vmatpush1.msra.mxu0 %v1918
  %4164 = vmatprep.subr.mxu0 0.0
  %4165 = vmatpush1.msra.mxu0 %v1921
  %4166 = vmatprep.subr.mxu0 0.0
  %4167 = vmatpush1.msra.mxu0 %v1924
  %4168 = vmatprep.subr.mxu0 0.0
  %4169 = vmatpush1.msra.mxu0 0.0
  %4170 = vmatprep.subr.mxu0 0.0
  %4171 = vmatpush1.msra.mxu0 0.0
  %4172 = vmatprep.subr.mxu0 0.0
  %4173 = vmatpush1.msra.mxu0 0.0
  %4174 = vmatprep.subr.mxu0 0.0
  %4175 = vmatpush1.msra.mxu0 0.0
  %4176 = vmatprep.subr.mxu0 0.0
  %4177 = vmatpush1.msra.mxu0 0.0
  %4178 = vmatprep.subr.mxu0 0.0
  %4179 = vmatpush1.msra.mxu0 0.0
  %4180 = vmatprep.subr.mxu0 0.0
  %4181 = vmatpush1.msra.mxu0 0.0
  %4182 = vmatprep.subr.mxu0 0.0
  %4183 = vmatpush1.msra.mxu0 0.0
  %4184 = vmatprep.subr.mxu0 0.0
  %4185 = vmatpush1.msra.mxu0 0.0
  %4186 = vmatprep.subr.mxu0 0.0
  %4187 = vmatpush1.msra.mxu0 0.0
  %4188 = vmatprep.subr.mxu0 0.0
  %4189 = vmatpush1.msra.mxu0 0.0
  %4190 = vmatprep.subr.mxu0 0.0
  %4191 = vmatpush1.msra.mxu0 0.0
  %4192 = vmatprep.subr.mxu0 0.0
  %4193 = vmatpush1.msra.mxu0 0.0
  %4194 = vmatprep.subr.mxu0 0.0
  %4195 = vmatpush1.msra.mxu0 0.0
  %4196 = vmatprep.subr.mxu0 0.0
  %4197 = vmatpush1.msra.mxu0 0.0
  %4198 = vmatprep.subr.mxu0 0.0
  %4199 = vmatpush1.msra.mxu0 0.0
  %4200 = vmatprep.mubr.f32.mxu0 0.0
  %4201 = vmatmul.mubr.f32.gmra.mrb[0].mxu0 %v3920
  %v4202 = vpop.f32.mrb[0].mxu0
  %v4203 = vadd.f32 0.0, %v4202
  %v4204 = vpop.f32.mrb[0].mxu0
  %4205 = vdwg.mxu0
  %v4206 = vadd.f32 %v3990, %v4132
  %v4207 = vxor.u32 %v4206, 2147483648
  %v4208 = vmul.f32 %v4207, 1.442695
  %v4209 = vpow.pop %v4208
  %v4210 = vadd.f32 %v4209, 1.0
  %v4211 = vrcp.pop %v4210
  %v4212 = vmul.f32 1.0, %v4211
  %v4213 = vadd.f32 %v4059, %v4134
  %v4214 = vxor.u32 %v4213, 2147483648
  %v4215 = vmul.f32 %v4214, 1.442695
  %v4216 = vpow.pop %v4215
  %v4217 = vadd.f32 %v4216, 1.0
  %v4218 = vrcp.pop %v4217
  %v4219 = vmul.f32 1.0, %v4218
  %v4220 = vadd.f32 %v4203, %v2356
  %v4221 = vmul.f32 %v4212, %v4220
  %v4222 = vadd.f32 %v4061, %v4221
  %v4223 = vtanh.pop %v4222
  %v4224 = vsub.f32 1.0, %v4219
  %v4225 = vmul.f32 %v4224, %v4223
  %v4226 = vmul.f32 %v4219, %v3920
  %v4227 = vadd.f32 %v4225, %v4226
  %4228 = vmatprep.subr.mxu0 %v1927
  %4229 = vmatpush1.msra.mxu0 %v1926
  %4230 = vmatprep.subr.mxu0 %v1931
  %4231 = vmatpush1.msra.mxu0 %v1930
  %4232 = vmatprep.subr.mxu0 %v1935
  %4233 = vmatpush1.msra.mxu0 %v1934
  %4234 = vmatprep.subr.mxu0 %v1939
  %4235 = vmatpush1.msra.mxu0 %v1938
  %4236 = vmatprep.subr.mxu0 %v1943
  %4237 = vmatpush1.msra.mxu0 %v1942
  %4238 = vmatprep.subr.mxu0 %v1947
  %4239 = vmatpush1.msra.mxu0 %v1946
  %4240 = vmatprep.subr.mxu0 %v1951
  %4241 = vmatpush1.msra.mxu0 %v1950
  %4242 = vmatprep.subr.mxu0 %v1955
  %4243 = vmatpush1.msra.mxu0 %v1954
  %4244 = vmatprep.subr.mxu0 %v1959
  %4245 = vmatpush1.msra.mxu0 %v1958
  %4246 = vmatprep.subr.mxu0 %v1963
  %4247 = vmatpush1.msra.mxu0 %v1962
  %4248 = vmatprep.subr.mxu0 %v1967
  %4249 = vmatpush1.msra.mxu0 %v1966
  %4250 = vmatprep.subr.mxu0 %v1971
  %4251 = vmatpush1.msra.mxu0 %v1970
  %4252 = vmatprep.subr.mxu0 %v1975
  %4253 = vmatpush1.msra.mxu0 %v1974
  %4254 = vmatprep.subr.mxu0 %v1979
  %4255 = vmatpush1.msra.mxu0 %v1978
  %4256 = vmatprep.subr.mxu0 %v1983
  %4257 = vmatpush1.msra.mxu0 %v1982
  %4258 = vmatprep.subr.mxu0 %v1987
  %4259 = vmatpush1.msra.mxu0 %v1986
  %4260 = vmatprep.subr.mxu0 0.0
  %4261 = vmatpush1.msra.mxu0 0.0
  %4262 = vmatprep.subr.mxu0 0.0
  %4263 = vmatpush1.msra.mxu0 0.0
  %4264 = vmatprep.subr.mxu0 0.0
  %4265 = vmatpush1.msra.mxu0 0.0
  %4266 = vmatprep.subr.mxu0 0.0
  %4267 = vmatpush1.msra.mxu0 0.0
  %4268 = vmatprep.subr.mxu0 0.0
  %4269 = vmatpush1.msra.mxu0 0.0
  %4270 = vmatprep.subr.mxu0 0.0
  %4271 = vmatpush1.msra.mxu0 0.0
  %4272 = vmatprep.subr.mxu0 0.0
  %4273 = vmatpush1.msra.mxu0 0.0
  %4274 = vmatprep.subr.mxu0 0.0
  %4275 = vmatpush1.msra.mxu0 0.0
  %4276 = vmatprep.subr.mxu0 0.0
  %4277 = vmatpush1.msra.mxu0 0.0
  %4278 = vmatprep.subr.mxu0 0.0
  %4279 = vmatpush1.msra.mxu0 0.0
  %4280 = vmatprep.subr.mxu0 0.0
  %4281 = vmatpush1.msra.mxu0 0.0
  %4282 = vmatprep.subr.mxu0 0.0
  %4283 = vmatpush1.msra.mxu0 0.0
  %4284 = vmatprep.subr.mxu0 0.0
  %4285 = vmatpush1.msra.mxu0 0.0
  %4286 = vmatprep.subr.mxu0 0.0
  %4287 = vmatpush1.msra.mxu0 0.0
  %4288 = vmatprep.subr.mxu0 0.0
  %4289 = vmatpush1.msra.mxu0 0.0
  %4290 = vmatprep.subr.mxu0 0.0
  %4291 = vmatpush1.msra.mxu0 0.0
  %4292 = vmatprep.mubr.f32.mxu0 0.0
  %4293 = vmatmul.mubr.f32.gmra.mrb[0].mxu0 %v4227
  %v4294 = vpop.f32.mrb[0].mxu0
  %v4295 = vadd.f32 %v2370, %v4294
  %v4296 = vpop.f32.mrb[0].mxu0
  %v4297 = vadd.f32 %v2374, %v4296
  %4298 = vdwg.mxu0
  %4299 = vmatprep.subr.mxu0 %v1929
  %4300 = vmatpush1.msra.mxu0 %v1928
  %4301 = vmatprep.subr.mxu0 %v1933
  %4302 = vmatpush1.msra.mxu0 %v1932
  %4303 = vmatprep.subr.mxu0 %v1937
  %4304 = vmatpush1.msra.mxu0 %v1936
  %4305 = vmatprep.subr.mxu0 %v1941
  %4306 = vmatpush1.msra.mxu0 %v1940
  %4307 = vmatprep.subr.mxu0 %v1945
  %4308 = vmatpush1.msra.mxu0 %v1944
  %4309 = vmatprep.subr.mxu0 %v1949
  %4310 = vmatpush1.msra.mxu0 %v1948
  %4311 = vmatprep.subr.mxu0 %v1953
  %4312 = vmatpush1.msra.mxu0 %v1952
  %4313 = vmatprep.subr.mxu0 %v1957
  %4314 = vmatpush1.msra.mxu0 %v1956
  %4315 = vmatprep.subr.mxu0 %v1961
  %4316 = vmatpush1.msra.mxu0 %v1960
  %4317 = vmatprep.subr.mxu0 %v1965
  %4318 = vmatpush1.msra.mxu0 %v1964
  %4319 = vmatprep.subr.mxu0 %v1969
  %4320 = vmatpush1.msra.mxu0 %v1968
  %4321 = vmatprep.subr.mxu0 %v1973
  %4322 = vmatpush1.msra.mxu0 %v1972
  %4323 = vmatprep.subr.mxu0 %v1977
  %4324 = vmatpush1.msra.mxu0 %v1976
  %4325 = vmatprep.subr.mxu0 %v1981
  %4326 = vmatpush1.msra.mxu0 %v1980
  %4327 = vmatprep.subr.mxu0 %v1985
  %4328 = vmatpush1.msra.mxu0 %v1984
  %4329 = vmatprep.subr.mxu0 %v1989
  %4330 = vmatpush1.msra.mxu0 %v1988
  %4331 = vmatprep.subr.mxu0 0.0
  %4332 = vmatpush1.msra.mxu0 0.0
  %4333 = vmatprep.subr.mxu0 0.0
  %4334 = vmatpush1.msra.mxu0 0.0
  %4335 = vmatprep.subr.mxu0 0.0
  %4336 = vmatpush1.msra.mxu0 0.0
  %4337 = vmatprep.subr.mxu0 0.0
  %4338 = vmatpush1.msra.mxu0 0.0
  %4339 = vmatprep.subr.mxu0 0.0
  %4340 = vmatpush1.msra.mxu0 0.0
  %4341 = vmatprep.subr.mxu0 0.0
  %4342 = vmatpush1.msra.mxu0 0.0
  %4343 = vmatprep.subr.mxu0 0.0
  %4344 = vmatpush1.msra.mxu0 0.0
  %4345 = vmatprep.subr.mxu0 0.0
  %4346 = vmatpush1.msra.mxu0 0.0
  %4347 = vmatprep.subr.mxu0 0.0
  %4348 = vmatpush1.msra.mxu0 0.0
  %4349 = vmatprep.subr.mxu0 0.0
  %4350 = vmatpush1.msra.mxu0 0.0
  %4351 = vmatprep.subr.mxu0 0.0
  %4352 = vmatpush1.msra.mxu0 0.0
  %4353 = vmatprep.subr.mxu0 0.0
  %4354 = vmatpush1.msra.mxu0 0.0
  %4355 = vmatprep.subr.mxu0 0.0
  %4356 = vmatpush1.msra.mxu0 0.0
  %4357 = vmatprep.subr.mxu0 0.0
  %4358 = vmatpush1.msra.mxu0 0.0
  %4359 = vmatprep.subr.mxu0 0.0
  %4360 = vmatpush1.msra.mxu0 0.0
  %4361 = vmatprep.subr.mxu0 0.0
  %4362 = vmatpush1.msra.mxu0 0.0
  %4363 = vmatprep.mubr.f32.mxu0 0.0
  %4364 = vmatmul.mubr.f32.gmra.mrb[0].mxu0 %v4227
  %v4365 = vpop.f32.mrb[0].mxu0
  %v4366 = vadd.f32 %v2378, %v4365
  %v4367 = vpop.f32.mrb[0].mxu0
  %v4368 = vadd.f32 %v2382, %v4367
  %4369 = vdwg.mxu0
  %s4370 = scalar_lea.vmem %s14, 48
  %4371 = vst [vmem:[%s4370] sm:$0xff] %v4295
  %4372 = vmatprep.subr.mxu0 %v1878
  %4373 = vmatpush1.msra.mxu0 %v1877
  %4374 = vmatprep.subr.mxu0 %v1881
  %4375 = vmatpush1.msra.mxu0 %v1880
  %4376 = vmatprep.subr.mxu0 %v1884
  %4377 = vmatpush1.msra.mxu0 %v1883
  %4378 = vmatprep.subr.mxu0 %v1887
  %4379 = vmatpush1.msra.mxu0 %v1886
  %4380 = vmatprep.subr.mxu0 %v1890
  %4381 = vmatpush1.msra.mxu0 %v1889
  %4382 = vmatprep.subr.mxu0 %v1893
  %4383 = vmatpush1.msra.mxu0 %v1892
  %4384 = vmatprep.subr.mxu0 %v1896
  %4385 = vmatpush1.msra.mxu0 %v1895
  %4386 = vmatprep.subr.mxu0 %v1899
  %4387 = vmatpush1.msra.mxu0 %v1898
  %4388 = vmatprep.subr.mxu0 %v1902
  %4389 = vmatpush1.msra.mxu0 %v1901
  %4390 = vmatprep.subr.mxu0 %v1905
  %4391 = vmatpush1.msra.mxu0 %v1904
  %4392 = vmatprep.subr.mxu0 %v1908
  %4393 = vmatpush1.msra.mxu0 %v1907
  %4394 = vmatprep.subr.mxu0 %v1911
  %4395 = vmatpush1.msra.mxu0 %v1910
  %4396 = vmatprep.subr.mxu0 %v1914
  %4397 = vmatpush1.msra.mxu0 %v1913
  %4398 = vmatprep.subr.mxu0 %v1917
  %4399 = vmatpush1.msra.mxu0 %v1916
  %4400 = vmatprep.subr.mxu0 %v1920
  %4401 = vmatpush1.msra.mxu0 %v1919
  %4402 = vmatprep.subr.mxu0 %v1923
  %4403 = vmatpush1.msra.mxu0 %v1922
  %4404 = vmatprep.subr.mxu0 0.0
  %4405 = vmatpush1.msra.mxu0 0.0
  %4406 = vmatprep.subr.mxu0 0.0
  %4407 = vmatpush1.msra.mxu0 0.0
  %4408 = vmatprep.subr.mxu0 0.0
  %4409 = vmatpush1.msra.mxu0 0.0
  %4410 = vmatprep.subr.mxu0 0.0
  %4411 = vmatpush1.msra.mxu0 0.0
  %4412 = vmatprep.subr.mxu0 0.0
  %4413 = vmatpush1.msra.mxu0 0.0
  %4414 = vmatprep.subr.mxu0 0.0
  %4415 = vmatpush1.msra.mxu0 0.0
  %4416 = vmatprep.subr.mxu0 0.0
  %4417 = vmatpush1.msra.mxu0 0.0
  %4418 = vmatprep.subr.mxu0 0.0
  %4419 = vmatpush1.msra.mxu0 0.0
  %4420 = vmatprep.subr.mxu0 0.0
  %4421 = vmatpush1.msra.mxu0 0.0
  %4422 = vmatprep.subr.mxu0 0.0
  %4423 = vmatpush1.msra.mxu0 0.0
  %4424 = vmatprep.subr.mxu0 0.0
  %4425 = vmatpush1.msra.mxu0 0.0
  %4426 = vmatprep.subr.mxu0 0.0
  %4427 = vmatpush1.msra.mxu0 0.0
  %4428 = vmatprep.subr.mxu0 0.0
  %4429 = vmatpush1.msra.mxu0 0.0
  %4430 = vmatprep.subr.mxu0 0.0
  %4431 = vmatpush1.msra.mxu0 0.0
  %4432 = vmatprep.subr.mxu0 0.0
  %4433 = vmatpush1.msra.mxu0 0.0
  %4434 = vmatprep.subr.mxu0 0.0
  %4435 = vmatpush1.msra.mxu0 0.0
  %4436 = vmatprep.mubr.f32.mxu0 0.0
  %4437 = vmatmul.mubr.f32.gmra.mrb[0].mxu0 %v4227
  %v4438 = vpop.f32.mrb[0].mxu0
  %v4439 = vadd.f32 0.0, %v4438
  %v4440 = vpop.f32.mrb[0].mxu0
  %v4441 = vadd.f32 0.0, %v4440
  %4442 = vdwg.mxu0
  %4443 = vmatprep.subr.mxu0 0.0
  %4444 = vmatpush1.msra.mxu0 %v1879
  %4445 = vmatprep.subr.mxu0 0.0
  %4446 = vmatpush1.msra.mxu0 %v1882
  %4447 = vmatprep.subr.mxu0 0.0
  %4448 = vmatpush1.msra.mxu0 %v1885
  %4449 = vmatprep.subr.mxu0 0.0
  %4450 = vmatpush1.msra.mxu0 %v1888
  %4451 = vmatprep.subr.mxu0 0.0
  %4452 = vmatpush1.msra.mxu0 %v1891
  %4453 = vmatprep.subr.mxu0 0.0
  %4454 = vmatpush1.msra.mxu0 %v1894
  %4455 = vmatprep.subr.mxu0 0.0
  %4456 = vmatpush1.msra.mxu0 %v1897
  %4457 = vmatprep.subr.mxu0 0.0
  %4458 = vmatpush1.msra.mxu0 %v1900
  %4459 = vmatprep.subr.mxu0 0.0
  %4460 = vmatpush1.msra.mxu0 %v1903
  %4461 = vmatprep.subr.mxu0 0.0
  %4462 = vmatpush1.msra.mxu0 %v1906
  %4463 = vmatprep.subr.mxu0 0.0
  %4464 = vmatpush1.msra.mxu0 %v1909
  %4465 = vmatprep.subr.mxu0 0.0
  %4466 = vmatpush1.msra.mxu0 %v1912
  %4467 = vmatprep.subr.mxu0 0.0
  %4468 = vmatpush1.msra.mxu0 %v1915
  %4469 = vmatprep.subr.mxu0 0.0
  %4470 = vmatpush1.msra.mxu0 %v1918
  %4471 = vmatprep.subr.mxu0 0.0
  %4472 = vmatpush1.msra.mxu0 %v1921
  %4473 = vmatprep.subr.mxu0 0.0
  %4474 = vmatpush1.msra.mxu0 %v1924
  %4475 = vmatprep.subr.mxu0 0.0
  %4476 = vmatpush1.msra.mxu0 0.0
  %4477 = vmatprep.subr.mxu0 0.0
  %4478 = vmatpush1.msra.mxu0 0.0
  %4479 = vmatprep.subr.mxu0 0.0
  %4480 = vmatpush1.msra.mxu0 0.0
  %4481 = vmatprep.subr.mxu0 0.0
  %4482 = vmatpush1.msra.mxu0 0.0
  %4483 = vmatprep.subr.mxu0 0.0
  %4484 = vmatpush1.msra.mxu0 0.0
  %4485 = vmatprep.subr.mxu0 0.0
  %4486 = vmatpush1.msra.mxu0 0.0
  %4487 = vmatprep.subr.mxu0 0.0
  %4488 = vmatpush1.msra.mxu0 0.0
  %4489 = vmatprep.subr.mxu0 0.0
  %4490 = vmatpush1.msra.mxu0 0.0
  %4491 = vmatprep.subr.mxu0 0.0
  %4492 = vmatpush1.msra.mxu0 0.0
  %4493 = vmatprep.subr.mxu0 0.0
  %4494 = vmatpush1.msra.mxu0 0.0
  %4495 = vmatprep.subr.mxu0 0.0
  %4496 = vmatpush1.msra.mxu0 0.0
  %4497 = vmatprep.subr.mxu0 0.0
  %4498 = vmatpush1.msra.mxu0 0.0
  %4499 = vmatprep.subr.mxu0 0.0
  %4500 = vmatpush1.msra.mxu0 0.0
  %4501 = vmatprep.subr.mxu0 0.0
  %4502 = vmatpush1.msra.mxu0 0.0
  %4503 = vmatprep.subr.mxu0 0.0
  %4504 = vmatpush1.msra.mxu0 0.0
  %4505 = vmatprep.subr.mxu0 0.0
  %4506 = vmatpush1.msra.mxu0 0.0
  %4507 = vmatprep.mubr.f32.mxu0 0.0
  %4508 = vmatmul.mubr.f32.gmra.mrb[0].mxu0 %v4227
  %v4509 = vpop.f32.mrb[0].mxu0
  %v4510 = vadd.f32 0.0, %v4509
  %v4511 = vpop.f32.mrb[0].mxu0
  %4512 = vdwg.mxu0
  %v4513 = vadd.f32 %v4297, %v4439
  %v4514 = vxor.u32 %v4513, 2147483648
  %v4515 = vmul.f32 %v4514, 1.442695
  %v4516 = vpow.pop %v4515
  %v4517 = vadd.f32 %v4516, 1.0
  %v4518 = vrcp.pop %v4517
  %v4519 = vmul.f32 1.0, %v4518
  %v4520 = vadd.f32 %v4366, %v4441
  %v4521 = vxor.u32 %v4520, 2147483648
  %v4522 = vmul.f32 %v4521, 1.442695
  %v4523 = vpow.pop %v4522
  %v4524 = vadd.f32 %v4523, 1.0
  %v4525 = vrcp.pop %v4524
  %v4526 = vmul.f32 1.0, %v4525
  %v4527 = vadd.f32 %v4510, %v2356
  %v4528 = vmul.f32 %v4519, %v4527
  %v4529 = vadd.f32 %v4368, %v4528
  %v4530 = vtanh.pop %v4529
  %v4531 = vsub.f32 1.0, %v4526
  %v4532 = vmul.f32 %v4531, %v4530
  %v4533 = vmul.f32 %v4526, %v4227
  %v4534 = vadd.f32 %v4532, %v4533
  %4535 = vmatprep.subr.mxu0 %v1927
  %4536 = vmatpush1.msra.mxu0 %v1926
  %4537 = vmatprep.subr.mxu0 %v1931
  %4538 = vmatpush1.msra.mxu0 %v1930
  %4539 = vmatprep.subr.mxu0 %v1935
  %4540 = vmatpush1.msra.mxu0 %v1934
  %4541 = vmatprep.subr.mxu0 %v1939
  %4542 = vmatpush1.msra.mxu0 %v1938
  %4543 = vmatprep.subr.mxu0 %v1943
  %4544 = vmatpush1.msra.mxu0 %v1942
  %4545 = vmatprep.subr.mxu0 %v1947
  %4546 = vmatpush1.msra.mxu0 %v1946
  %4547 = vmatprep.subr.mxu0 %v1951
  %4548 = vmatpush1.msra.mxu0 %v1950
  %4549 = vmatprep.subr.mxu0 %v1955
  %4550 = vmatpush1.msra.mxu0 %v1954
  %4551 = vmatprep.subr.mxu0 %v1959
  %4552 = vmatpush1.msra.mxu0 %v1958
  %4553 = vmatprep.subr.mxu0 %v1963
  %4554 = vmatpush1.msra.mxu0 %v1962
  %4555 = vmatprep.subr.mxu0 %v1967
  %4556 = vmatpush1.msra.mxu0 %v1966
  %4557 = vmatprep.subr.mxu0 %v1971
  %4558 = vmatpush1.msra.mxu0 %v1970
  %4559 = vmatprep.subr.mxu0 %v1975
  %4560 = vmatpush1.msra.mxu0 %v1974
  %4561 = vmatprep.subr.mxu0 %v1979
  %4562 = vmatpush1.msra.mxu0 %v1978
  %4563 = vmatprep.subr.mxu0 %v1983
  %4564 = vmatpush1.msra.mxu0 %v1982
  %4565 = vmatprep.subr.mxu0 %v1987
  %4566 = vmatpush1.msra.mxu0 %v1986
  %4567 = vmatprep.subr.mxu0 0.0
  %4568 = vmatpush1.msra.mxu0 0.0
  %4569 = vmatprep.subr.mxu0 0.0
  %4570 = vmatpush1.msra.mxu0 0.0
  %4571 = vmatprep.subr.mxu0 0.0
  %4572 = vmatpush1.msra.mxu0 0.0
  %4573 = vmatprep.subr.mxu0 0.0
  %4574 = vmatpush1.msra.mxu0 0.0
  %4575 = vmatprep.subr.mxu0 0.0
  %4576 = vmatpush1.msra.mxu0 0.0
  %4577 = vmatprep.subr.mxu0 0.0
  %4578 = vmatpush1.msra.mxu0 0.0
  %4579 = vmatprep.subr.mxu0 0.0
  %4580 = vmatpush1.msra.mxu0 0.0
  %4581 = vmatprep.subr.mxu0 0.0
  %4582 = vmatpush1.msra.mxu0 0.0
  %4583 = vmatprep.subr.mxu0 0.0
  %4584 = vmatpush1.msra.mxu0 0.0
  %4585 = vmatprep.subr.mxu0 0.0
  %4586 = vmatpush1.msra.mxu0 0.0
  %4587 = vmatprep.subr.mxu0 0.0
  %4588 = vmatpush1.msra.mxu0 0.0
  %4589 = vmatprep.subr.mxu0 0.0
  %4590 = vmatpush1.msra.mxu0 0.0
  %4591 = vmatprep.subr.mxu0 0.0
  %4592 = vmatpush1.msra.mxu0 0.0
  %4593 = vmatprep.subr.mxu0 0.0
  %4594 = vmatpush1.msra.mxu0 0.0
  %4595 = vmatprep.subr.mxu0 0.0
  %4596 = vmatpush1.msra.mxu0 0.0
  %4597 = vmatprep.subr.mxu0 0.0
  %4598 = vmatpush1.msra.mxu0 0.0
  %4599 = vmatprep.mubr.f32.mxu0 0.0
  %4600 = vmatmul.mubr.f32.gmra.mrb[0].mxu0 %v4534
  %v4601 = vpop.f32.mrb[0].mxu0
  %v4602 = vadd.f32 %v2370, %v4601
  %v4603 = vpop.f32.mrb[0].mxu0
  %4604 = vdwg.mxu0
  %s4605 = scalar_lea.vmem %s14, 56
  %4606 = vst [vmem:[%s4605] sm:$0xff] %v4602
  // Predicated region
  $region54: #{seq2seq_forward.1} parent=0 // pred_check
    _
  $region55: #{seq2seq_forward.1} parent=0 // pred_check_branch
    %4608 = sbr.rel (0) target = $region57
  $region56: #{seq2seq_forward.1} parent=0 // pred_region
    _
  $region57: #{seq2seq_forward.1} parent=0 // pred_fallthru
    _
  // Predicated region
  $region58: #{seq2seq_forward.1} parent=0 // pred_check
    _
  $region59: #{seq2seq_forward.1} parent=0 // pred_check_branch
    %4610 = sbr.rel (0) target = $region61
  $region60: #{seq2seq_forward.1} parent=0 // pred_region
    _
  $region61: #{seq2seq_forward.1} parent=0 // pred_fallthru
    _
  // Predicated region
  $region62: #{seq2seq_forward.1} parent=0 // pred_check
    _
  $region63: #{seq2seq_forward.1} parent=0 // pred_check_branch
    %4612 = sbr.rel (0) target = $region65
  $region64: #{seq2seq_forward.1} parent=0 // pred_region
    _
  $region65: #{seq2seq_forward.1} parent=0 // pred_fallthru
    _
  // Predicated region
  $region66: #{seq2seq_forward.1} parent=0 // pred_check
    _
  $region67: #{seq2seq_forward.1} parent=0 // pred_check_branch
    %4614 = sbr.rel (0) target = $region69
  $region68: #{seq2seq_forward.1} parent=0 // pred_region
    _
  $region69: #{seq2seq_forward.1} parent=0 // pred_fallthru
    _

</llo_original>
